<compile_context>
chip_gen: v6e
topology: v6e:2x2x1
jax: 0.10.0
libtpu: 0.0.40
codegen_flags: <defaults>
</compile_context>

<pallas_src>
import jax
import jax.numpy as jnp
from jax import lax
from jax.experimental import pallas as pl
from jax.experimental.pallas import tpu as pltpu

# ----------------------------- model config ---------------------------------
NUM_STATES = 32
NUM_ACTIONS = 8
CONDITION_DIM = 16
ENCODER_SIZE = [128, 128, 128]
DECODER_SIZE = [128, 128, 128]
NUM_EMBEDDINGS = 64
EMBEDDING_DIM = 32
COMMITMENT_COST = 0.25
BETA = 0.25
LEAKY_SLOPE = 0.2

PAD = 128                    # every slab slot / activation is padded to 128 lanes
LOSS_LANE = NUM_ACTIONS      # lane 8 of the padded output carries sum((q-z)^2) per row

# slots in the packed weight slab (each (128,128) bf16, zero-padded)
(S_W0, S_W1, S_W2, S_W3,     # encoder: 32->128, 128->128, 128->128, 128->32
 S_EMB, S_EMBT,              # codebook (64,32) and its transpose (32,64)
 S_W4,                       # decoder layer 0, fused: rows 0..31 = z-w, 32..47 = cond-w
 S_W5, S_W6, S_W7,           # decoder: 128->128, 128->128, 128->8
 ) = range(10)
N_SLOTS = 10

N_BIAS_ROWS = 16             # rows 0..7 = layer biases, row 8 = ||e_k||^2, rest zero
EMB_SQ_ROW = 8


def _leaky(h):
    return jnp.where(h > 0, h, LEAKY_SLOPE * h)


# ------------------------------- kernel -------------------------------------
def vae_vq_kernel(x_ref, w_ref, b_ref, out_ref):
    f32, bf16 = jnp.float32, jnp.bfloat16
    # (TB,128) bf16; lanes 0..31 = x, lanes 32..47 = x[:, :16] (condition copy)
    xb = x_ref[...]

    def dense(act_bf16, slot, brow, act_fn=_leaky):
        h = (jnp.dot(act_bf16, w_ref[slot], preferred_element_type=f32)
             + b_ref[brow][None, :])
        return act_fn(h)

    # ------------------------------ encoder ---------------------------------
    h = dense(xb, S_W0, 0)
    h = dense(h.astype(bf16), S_W1, 1)
    h = dense(h.astype(bf16), S_W2, 2)
    # z padded to 128 lanes; lanes >= EMBEDDING_DIM are exactly 0 (zero-padded
    # weight columns and bias), which keeps the VQ math below exact.
    z = dense(h.astype(bf16), S_W3, 3, act_fn=lambda v: v)          # (TB,128) f32

    # -------------------------- vector quantizer ----------------------------
    emb_sq = b_ref[EMB_SQ_ROW][None, :]                              # precomputed ||e_k||^2
    cross = jnp.dot(z.astype(bf16), w_ref[S_EMBT],
                    preferred_element_type=f32)                      # (TB,128): z.e_k
    z_sq = jnp.sum(z * z, axis=1, keepdims=True)                     # (TB,1)
    dists = z_sq + emb_sq - 2.0 * cross                              # (TB,128) f32
    k_iota = lax.broadcasted_iota(jnp.int32, dists.shape, 1)
    dists = jnp.where(k_iota < NUM_EMBEDDINGS, dists, 1e30)          # mask padded codewords
    # argmin with first-index tie-break, built from min-reductions (TPU friendly)
    dmin = jnp.min(dists, axis=1, keepdims=True)
    idx = jnp.min(jnp.where(dists == dmin, k_iota, PAD), axis=1, keepdims=True)
    onehot = (k_iota == idx).astype(bf16)                            # (TB,128), exact 0/1
    q = jnp.dot(onehot, w_ref[S_EMB], preferred_element_type=f32)    # (TB,128); lanes>=32 are 0

    # q_latent_loss + commitment_cost * e_latent_loss == (1+cc) * mse(q, z).
    # Emit raw per-row sum of squared diffs; scaled/reduced in the wrapper.
    diff = q - z
    row_sq = jnp.sum(diff * diff, axis=1, keepdims=True)             # (TB,1) f32

    # ------------------------------ decoder ---------------------------------
    # Fused decoder input (single MXU pass): lanes 0..31 = quantized,
    # lanes 32..47 = x[:, :16] (already placed there by the wrapper), rest 0.
    # TODO(synk): straight-through estimator (z + (q - z).detach()) has no
    # meaning in this forward-only kernel (no custom_vjp); q is used directly.
    dec_in = jnp.where(k_iota < EMBEDDING_DIM, q.astype(bf16), xb)   # (TB,128) bf16
    h = dense(dec_in, S_W4, 4)
    h = dense(h.astype(bf16), S_W5, 5)
    h = dense(h.astype(bf16), S_W6, 6)
    out = dense(h.astype(bf16), S_W7, 7, act_fn=lambda v: v)         # (TB,128); lanes>=8 are 0

    # lane-dense store; VQ-loss partial rides along in (otherwise-zero) lane 8
    out_ref[...] = out + jnp.where(k_iota == LOSS_LANE, row_sq, 0.0)


# --------------------------- params & packing -------------------------------
def xavier_uniform(key, fan_in, fan_out, shape):
    limit = jnp.sqrt(6.0 / (fan_in + fan_out))
    return jax.random.uniform(key, shape, jnp.float32, -limit, limit)


def make_params(key):
    """f32 params mirroring the torch module. Linear weights stored transposed
    as (in, out) so y = x @ W + b == torch's x @ W^T + b; biases zero-init."""
    keys = jax.random.split(key, 16)
    k = iter(keys)
    params = {}

    dims = [NUM_STATES] + ENCODER_SIZE + [EMBEDDING_DIM]
    params["enc"] = [(xavier_uniform(next(k), fi, fo, (fi, fo)),
                      jnp.zeros((fo,), jnp.float32))
                     for fi, fo in zip(dims[:-1], dims[1:])]

    params["emb"] = xavier_uniform(next(k), NUM_EMBEDDINGS, EMBEDDING_DIM,
                                   (NUM_EMBEDDINGS, EMBEDDING_DIM))

    dims = [EMBEDDING_DIM + CONDITION_DIM] + DECODER_SIZE + [NUM_ACTIONS]
    params["dec"] = [(xavier_uniform(next(k), fi, fo, (fi, fo)),
                      jnp.zeros((fo,), jnp.float32))
                     for fi, fo in zip(dims[:-1], dims[1:])]
    return params


def pack_params(params):
    """Pack all weights into one (N_SLOTS,128,128) bf16 slab and all biases
    (plus the precomputed ||e_k||^2 row) into one (16,128) f32 slab."""
    (w0, b0), (w1, b1), (w2, b2), (w3, b3) = params["enc"]
    (w4, b4), (w5, b5), (w6, b6), (w7, b7) = params["dec"]
    emb = params["emb"]

    slab = jnp.zeros((N_SLOTS, PAD, PAD), jnp.float32)

    def put(s, slot, mat, row0=0):
        r, c = mat.shape
        return s.at[slot, row0:row0 + r, :c].set(mat)

    slab = put(slab, S_W0, w0)                              # (32,128)
    slab = put(slab, S_W1, w1)
    slab = put(slab, S_W2, w2)
    slab = put(slab, S_W3, w3)                              # (128,32)
    slab = put(slab, S_EMB, emb)                            # (64,32)
    slab = put(slab, S_EMBT, emb.T)                         # (32,64)
    # fused decoder layer-0 weights, matching dec_in layout [q | x_cond | 0]:
    slab = put(slab, S_W4, w4[CONDITION_DIM:, :], row0=0)               # z part (32,128)
    slab = put(slab, S_W4, w4[:CONDITION_DIM, :], row0=EMBEDDING_DIM)   # cond part (16,128)
    slab = put(slab, S_W5, w5)
    slab = put(slab, S_W6, w6)
    slab = put(slab, S_W7, w7)                              # (128,8)
    slab = slab.astype(jnp.bfloat16)

    biases = jnp.zeros((N_BIAS_ROWS, PAD), jnp.float32)
    for i, b in enumerate([b0, b1, b2, b3, b4, b5, b6, b7]):
        biases = biases.at[i, :b.shape[-1]].set(b)
    # hoisted ||e_k||^2 from the bf16-rounded codebook (matches in-kernel bf16 slab)
    emb_bf = emb.astype(jnp.bfloat16).astype(jnp.float32)
    emb_sq = jnp.sum(emb_bf * emb_bf, axis=1)               # (NUM_EMBEDDINGS,)
    biases = biases.at[EMB_SQ_ROW, :NUM_EMBEDDINGS].set(emb_sq)
    return slab, biases


# ------------------------------- wrapper -------------------------------------
def _pick_tile(batch):
    # Prefer the largest tile that still yields >= 2 grid steps so v7x's two
    # TensorCores both get work; otherwise fall back to a single-tile grid.
    for t in (2048, 1024, 512, 256, 128):
        if batch % t == 0 and batch // t >= 2:
            return t
    for t in (2048, 1024, 512, 256, 128):
        if batch % t == 0:
            return t
    return batch              # small / odd batches: single tile == full array


@jax.jit
def vae_forward(x, w_slab, biases):
    B = x.shape[0]
    tile_b = _pick_tile(B)
    num_tiles = B // tile_b

    # pad x to 128 bf16 lanes: lanes 0..31 = x (encoder input), lanes 32..47 =
    # x[:, :16] (condition copy for the fused decoder-input matmul), rest 0.
    xb16 = x.astype(jnp.bfloat16)
    x_pad = jnp.zeros((B, PAD), jnp.bfloat16)
    x_pad = x_pad.at[:, :NUM_STATES].set(xb16)
    x_pad = x_pad.at[:, EMBEDDING_DIM:EMBEDDING_DIM + CONDITION_DIM].set(
        xb16[:, :CONDITION_DIM])

    macs_per_row = (NUM_STATES * 128 + 128 * 128 + 128 * 128 + 128 * EMBEDDING_DIM
                    + 2 * EMBEDDING_DIM * NUM_EMBEDDINGS
                    + (CONDITION_DIM + EMBEDDING_DIM) * 128 + 128 * 128 + 128 * 128
                    + 128 * NUM_ACTIONS)
    cost = pl.CostEstimate(
        flops=2 * B * macs_per_row,
        transcendentals=0,
        bytes_accessed=(x_pad.size * 2 + w_slab.size * 2 + biases.size * 4
                        + B * PAD * 4),
    )

    out_pad = pl.pallas_call(
        vae_vq_kernel,
        out_shape=jax.ShapeDtypeStruct((B, PAD), jnp.float32),
        grid=(num_tiles,),
        in_specs=[
            pl.BlockSpec((tile_b, PAD), lambda i: (i, 0)),            # activations: pipelined
            pl.BlockSpec((N_SLOTS, PAD, PAD), lambda i: (0, 0, 0)),   # weights: VMEM-resident
            pl.BlockSpec((N_BIAS_ROWS, PAD), lambda i: (0, 0)),       # biases + emb_sq
        ],
        out_specs=pl.BlockSpec((tile_b, PAD), lambda i: (i, 0)),      # lane-dense output
        compiler_params=pltpu.CompilerParams(
            dimension_semantics=("parallel",),   # v7x: batch tiles across both TCs
            vmem_limit_bytes=32 * 1024 * 1024,   # allow large tiles (v5e default is 16 MiB)
        ),
        cost_estimate=cost,
    )(x_pad, w_slab, biases)

    recon = out_pad[:, :NUM_ACTIONS]
    mse = jnp.sum(out_pad[:, LOSS_LANE]) / (B * EMBEDDING_DIM)
    loss = (1.0 + COMMITMENT_COST) * mse * BETA
    return recon, loss


# ------------------------------ reference ------------------------------------
def vae_forward_ref(x, params):
    """Plain-JAX reference using the same bf16-rounded matmul operands."""
    bf = lambda a: a.astype(jnp.bfloat16).astype(jnp.float32)
    enc, dec, emb = params["enc"], params["dec"], bf(params["emb"])
    h = bf(x)
    for i, (w, b) in enumerate(enc):
        h = bf(h) @ bf(w) + b
        if i < len(enc) - 1:
            h = jnp.where(h > 0, h, LEAKY_SLOPE * h)
    z = h
    d = (jnp.sum(z * z, 1, keepdims=True) + jnp.sum(emb * emb, 1)[None, :]
         - 2.0 * bf(z) @ emb.T)
    q = emb[jnp.argmin(d, axis=1)]
    loss = (1.0 + COMMITMENT_COST) * jnp.mean((q - z) ** 2)
    h = jnp.concatenate([bf(x)[:, :CONDITION_DIM], q], axis=-1)
    for i, (w, b) in enumerate(dec):
        h = bf(h) @ bf(w) + b
        if i < len(dec) - 1:
            h = jnp.where(h > 0, h, LEAKY_SLOPE * h)
    return h, loss * BETA


# -------------------------------- main ---------------------------------------
if __name__ == "__main__":
    key = jax.random.PRNGKey(0)
    pkey, xkey = jax.random.split(key)
    params = make_params(pkey)
    w_slab, biases = pack_params(params)

    B = 512                                  # 2 batch tiles of 256 -> exercises the grid
    x = jax.random.normal(xkey, (B, NUM_STATES), jnp.float32)

    recon, loss = vae_forward(x, w_slab, biases)
    recon, loss = jax.block_until_ready((recon, loss))

    # sanity check vs plain-JAX reference built from the same bf16-rounded weights
    recon_ref, loss_ref = vae_forward_ref(x, params)
    assert recon.shape == (B, NUM_ACTIONS)
    assert bool(jnp.all(jnp.isfinite(recon))) and bool(jnp.isfinite(loss))
    # per-row check: a rare row may differ if two codewords are near-equidistant
    # (argmin tie resolved differently by MXU vs XLA accumulation order)
    row_ok = jnp.all(jnp.abs(recon - recon_ref) <= 5e-2 + 5e-2 * jnp.abs(recon_ref),
                     axis=1)
    assert float(jnp.mean(row_ok.astype(jnp.float32))) >= 0.99, float(jnp.mean(row_ok))
    assert abs(float(loss) - float(loss_ref)) <= 5e-2 * max(1.0, abs(float(loss_ref)))
    print("KERNEL_OK")
</pallas_src>

<mosaic_0001>
module attributes {stable_mosaic.version = 11 : i64} {
  func.func @vae_vq_kernel(%arg0: i32, %arg1: memref<256x128xbf16, #tpu.memory_space<vmem>>, %arg2: memref<10x128x128xbf16, #tpu.memory_space<vmem>>, %arg3: memref<16x128xf32, #tpu.memory_space<vmem>>, %arg4: memref<256x128xf32, #tpu.memory_space<vmem>>) attributes {dimension_semantics = [#tpu.dimension_semantics<parallel>], iteration_bounds = array<i64: 2>, scalar_prefetch = 0 : i64, scratch_operands = 0 : i64, tpu.core_type = #tpu.core_type<tc>, window_params = [{transform_indices = @transform_0, window_bounds = array<i64: 256, 128>}, {pipeline_mode = #tpu.pipeline_mode<synchronous>, transform_indices = @transform_1, window_bounds = array<i64: 10, 128, 128>}, {pipeline_mode = #tpu.pipeline_mode<synchronous>, transform_indices = @transform_2, window_bounds = array<i64: 16, 128>}, {transform_indices = @transform_3, window_bounds = array<i64: 256, 128>}]} {
    %c0 = arith.constant 0 : index
    %c0_0 = arith.constant 0 : index
    %0 = vector.load %arg1[%c0, %c0_0] : memref<256x128xbf16, #tpu.memory_space<vmem>>, vector<256x128xbf16>
    %c0_1 = arith.constant 0 : index
    %c0_2 = arith.constant 0 : index
    %c0_3 = arith.constant 0 : index
    %1 = vector.load %arg2[%c0_1, %c0_2, %c0_3] : memref<10x128x128xbf16, #tpu.memory_space<vmem>>, vector<1x128x128xbf16>
    %2 = vector.shape_cast %1 : vector<1x128x128xbf16> to vector<128x128xbf16>
    %cst = arith.constant dense<0.000000e+00> : vector<256x128xf32>
    %3 = tpu.matmul %0, %2, %cst {dimension_numbers = #tpu.dot_dimension_numbers<[1], [0], [0], [1], [0, 0, 1, 1], [], []>} : vector<256x128xbf16>, vector<128x128xbf16>, vector<256x128xf32> -> vector<256x128xf32>
    %c0_4 = arith.constant 0 : index
    %c0_5 = arith.constant 0 : index
    %4 = vector.load %arg3[%c0_4, %c0_5] : memref<16x128xf32, #tpu.memory_space<vmem>>, vector<1x128xf32>
    %5 = vector.shape_cast %4 : vector<1x128xf32> to vector<128xf32>
    %6 = vector.shape_cast %5 : vector<128xf32> to vector<1x128xf32>
    %7 = vector.broadcast %6 : vector<1x128xf32> to vector<256x128xf32>
    %8 = arith.addf %3, %7 : vector<256x128xf32>
    %cst_6 = arith.constant 0.000000e+00 : f32
    %9 = vector.broadcast %cst_6 : f32 to vector<256x128xf32>
    %10 = arith.cmpf ogt, %8, %9 : vector<256x128xf32>
    %cst_7 = arith.constant 2.000000e-01 : f32
    %11 = vector.broadcast %cst_7 : f32 to vector<256x128xf32>
    %12 = arith.mulf %11, %8 : vector<256x128xf32>
    %13 = arith.select %10, %8, %12 : vector<256x128xi1>, vector<256x128xf32>
    %14 = arith.truncf %13 : vector<256x128xf32> to vector<256x128xbf16>
    %c1 = arith.constant 1 : index
    %c0_8 = arith.constant 0 : index
    %c0_9 = arith.constant 0 : index
    %15 = vector.load %arg2[%c1, %c0_8, %c0_9] : memref<10x128x128xbf16, #tpu.memory_space<vmem>>, vector<1x128x128xbf16>
    %16 = vector.shape_cast %15 : vector<1x128x128xbf16> to vector<128x128xbf16>
    %cst_10 = arith.constant dense<0.000000e+00> : vector<256x128xf32>
    %17 = tpu.matmul %14, %16, %cst_10 {dimension_numbers = #tpu.dot_dimension_numbers<[1], [0], [0], [1], [0, 0, 1, 1], [], []>} : vector<256x128xbf16>, vector<128x128xbf16>, vector<256x128xf32> -> vector<256x128xf32>
    %c1_11 = arith.constant 1 : index
    %c0_12 = arith.constant 0 : index
    %18 = vector.load %arg3[%c1_11, %c0_12] : memref<16x128xf32, #tpu.memory_space<vmem>>, vector<1x128xf32>
    %19 = vector.shape_cast %18 : vector<1x128xf32> to vector<128xf32>
    %20 = vector.shape_cast %19 : vector<128xf32> to vector<1x128xf32>
    %21 = vector.broadcast %20 : vector<1x128xf32> to vector<256x128xf32>
    %22 = arith.addf %17, %21 : vector<256x128xf32>
    %cst_13 = arith.constant 0.000000e+00 : f32
    %23 = vector.broadcast %cst_13 : f32 to vector<256x128xf32>
    %24 = arith.cmpf ogt, %22, %23 : vector<256x128xf32>
    %cst_14 = arith.constant 2.000000e-01 : f32
    %25 = vector.broadcast %cst_14 : f32 to vector<256x128xf32>
    %26 = arith.mulf %25, %22 : vector<256x128xf32>
    %27 = arith.select %24, %22, %26 : vector<256x128xi1>, vector<256x128xf32>
    %28 = arith.truncf %27 : vector<256x128xf32> to vector<256x128xbf16>
    %c2 = arith.constant 2 : index
    %c0_15 = arith.constant 0 : index
    %c0_16 = arith.constant 0 : index
    %29 = vector.load %arg2[%c2, %c0_15, %c0_16] : memref<10x128x128xbf16, #tpu.memory_space<vmem>>, vector<1x128x128xbf16>
    %30 = vector.shape_cast %29 : vector<1x128x128xbf16> to vector<128x128xbf16>
    %cst_17 = arith.constant dense<0.000000e+00> : vector<256x128xf32>
    %31 = tpu.matmul %28, %30, %cst_17 {dimension_numbers = #tpu.dot_dimension_numbers<[1], [0], [0], [1], [0, 0, 1, 1], [], []>} : vector<256x128xbf16>, vector<128x128xbf16>, vector<256x128xf32> -> vector<256x128xf32>
    %c2_18 = arith.constant 2 : index
    %c0_19 = arith.constant 0 : index
    %32 = vector.load %arg3[%c2_18, %c0_19] : memref<16x128xf32, #tpu.memory_space<vmem>>, vector<1x128xf32>
    %33 = vector.shape_cast %32 : vector<1x128xf32> to vector<128xf32>
    %34 = vector.shape_cast %33 : vector<128xf32> to vector<1x128xf32>
    %35 = vector.broadcast %34 : vector<1x128xf32> to vector<256x128xf32>
    %36 = arith.addf %31, %35 : vector<256x128xf32>
    %cst_20 = arith.constant 0.000000e+00 : f32
    %37 = vector.broadcast %cst_20 : f32 to vector<256x128xf32>
    %38 = arith.cmpf ogt, %36, %37 : vector<256x128xf32>
    %cst_21 = arith.constant 2.000000e-01 : f32
    %39 = vector.broadcast %cst_21 : f32 to vector<256x128xf32>
    %40 = arith.mulf %39, %36 : vector<256x128xf32>
    %41 = arith.select %38, %36, %40 : vector<256x128xi1>, vector<256x128xf32>
    %42 = arith.truncf %41 : vector<256x128xf32> to vector<256x128xbf16>
    %c3 = arith.constant 3 : index
    %c0_22 = arith.constant 0 : index
    %c0_23 = arith.constant 0 : index
    %43 = vector.load %arg2[%c3, %c0_22, %c0_23] : memref<10x128x128xbf16, #tpu.memory_space<vmem>>, vector<1x128x128xbf16>
    %44 = vector.shape_cast %43 : vector<1x128x128xbf16> to vector<128x128xbf16>
    %cst_24 = arith.constant dense<0.000000e+00> : vector<256x128xf32>
    %45 = tpu.matmul %42, %44, %cst_24 {dimension_numbers = #tpu.dot_dimension_numbers<[1], [0], [0], [1], [0, 0, 1, 1], [], []>} : vector<256x128xbf16>, vector<128x128xbf16>, vector<256x128xf32> -> vector<256x128xf32>
    %c3_25 = arith.constant 3 : index
    %c0_26 = arith.constant 0 : index
    %46 = vector.load %arg3[%c3_25, %c0_26] : memref<16x128xf32, #tpu.memory_space<vmem>>, vector<1x128xf32>
    %47 = vector.shape_cast %46 : vector<1x128xf32> to vector<128xf32>
    %48 = vector.shape_cast %47 : vector<128xf32> to vector<1x128xf32>
    %49 = vector.broadcast %48 : vector<1x128xf32> to vector<256x128xf32>
    %50 = arith.addf %45, %49 : vector<256x128xf32>
    %c8 = arith.constant 8 : index
    %c0_27 = arith.constant 0 : index
    %51 = vector.load %arg3[%c8, %c0_27] : memref<16x128xf32, #tpu.memory_space<vmem>>, vector<1x128xf32>
    %52 = vector.shape_cast %51 : vector<1x128xf32> to vector<128xf32>
    %53 = vector.shape_cast %52 : vector<128xf32> to vector<1x128xf32>
    %54 = arith.truncf %50 : vector<256x128xf32> to vector<256x128xbf16>
    %c5 = arith.constant 5 : index
    %c0_28 = arith.constant 0 : index
    %c0_29 = arith.constant 0 : index
    %55 = vector.load %arg2[%c5, %c0_28, %c0_29] : memref<10x128x128xbf16, #tpu.memory_space<vmem>>, vector<1x128x128xbf16>
    %56 = vector.shape_cast %55 : vector<1x128x128xbf16> to vector<128x128xbf16>
    %cst_30 = arith.constant dense<0.000000e+00> : vector<256x128xf32>
    %57 = tpu.matmul %54, %56, %cst_30 {dimension_numbers = #tpu.dot_dimension_numbers<[1], [0], [0], [1], [0, 0, 1, 1], [], []>} : vector<256x128xbf16>, vector<128x128xbf16>, vector<256x128xf32> -> vector<256x128xf32>
    %58 = arith.mulf %50, %50 : vector<256x128xf32>
    %cst_31 = arith.constant dense<0.000000e+00> : vector<256xf32>
    %59 = vector.multi_reduction <add>, %58, %cst_31 [1] : vector<256x128xf32> to vector<256xf32>
    %60 = vector.shape_cast %59 : vector<256xf32> to vector<256x1xf32>
    %61 = vector.broadcast %60 : vector<256x1xf32> to vector<256x128xf32>
    %62 = vector.broadcast %53 : vector<1x128xf32> to vector<256x128xf32>
    %63 = arith.addf %61, %62 : vector<256x128xf32>
    %cst_32 = arith.constant 2.000000e+00 : f32
    %64 = vector.broadcast %cst_32 : f32 to vector<256x128xf32>
    %65 = arith.mulf %64, %57 : vector<256x128xf32>
    %66 = arith.subf %63, %65 : vector<256x128xf32>
    %67 = tpu.iota {dimensions = array<i32: 1>} : vector<256x128xi32>
    %c64_i32 = arith.constant 64 : i32
    %68 = vector.broadcast %c64_i32 : i32 to vector<256x128xi32>
    %69 = arith.cmpi slt, %67, %68 : vector<256x128xi32>
    %cst_33 = arith.constant 1.000000e+30 : f32
    %70 = vector.broadcast %cst_33 : f32 to vector<256x128xf32>
    %71 = arith.select %69, %66, %70 : vector<256x128xi1>, vector<256x128xf32>
    %cst_34 = arith.constant dense<0x7F800000> : vector<256xf32>
    %72 = vector.multi_reduction <minimumf>, %71, %cst_34 [1] : vector<256x128xf32> to vector<256xf32>
    %73 = vector.shape_cast %72 : vector<256xf32> to vector<256x1xf32>
    %74 = vector.broadcast %73 : vector<256x1xf32> to vector<256x128xf32>
    %75 = arith.cmpf oeq, %71, %74 : vector<256x128xf32>
    %c128_i32 = arith.constant 128 : i32
    %76 = vector.broadcast %c128_i32 : i32 to vector<256x128xi32>
    %77 = arith.select %75, %67, %76 : vector<256x128xi1>, vector<256x128xi32>
    %cst_35 = arith.constant dense<2147483647> : vector<256xi32>
    %78 = vector.multi_reduction <minsi>, %77, %cst_35 [1] : vector<256x128xi32> to vector<256xi32>
    %79 = vector.shape_cast %78 : vector<256xi32> to vector<256x1xi32>
    %80 = vector.broadcast %79 : vector<256x1xi32> to vector<256x128xi32>
    %81 = arith.cmpi eq, %67, %80 : vector<256x128xi32>
    %82 = arith.extui %81 : vector<256x128xi1> to vector<256x128xi32>
    %83 = arith.sitofp %82 : vector<256x128xi32> to vector<256x128xf32>
    %84 = arith.truncf %83 : vector<256x128xf32> to vector<256x128xbf16>
    %c4 = arith.constant 4 : index
    %c0_36 = arith.constant 0 : index
    %c0_37 = arith.constant 0 : index
    %85 = vector.load %arg2[%c4, %c0_36, %c0_37] : memref<10x128x128xbf16, #tpu.memory_space<vmem>>, vector<1x128x128xbf16>
    %86 = vector.shape_cast %85 : vector<1x128x128xbf16> to vector<128x128xbf16>
    %cst_38 = arith.constant dense<0.000000e+00> : vector<256x128xf32>
    %87 = tpu.matmul %84, %86, %cst_38 {dimension_numbers = #tpu.dot_dimension_numbers<[1], [0], [0], [1], [0, 0, 1, 1], [], []>} : vector<256x128xbf16>, vector<128x128xbf16>, vector<256x128xf32> -> vector<256x128xf32>
    %88 = arith.subf %87, %50 : vector<256x128xf32>
    %89 = arith.mulf %88, %88 : vector<256x128xf32>
    %cst_39 = arith.constant dense<0.000000e+00> : vector<256xf32>
    %90 = vector.multi_reduction <add>, %89, %cst_39 [1] : vector<256x128xf32> to vector<256xf32>
    %91 = vector.shape_cast %90 : vector<256xf32> to vector<256x1xf32>
    %c32_i32 = arith.constant 32 : i32
    %92 = vector.broadcast %c32_i32 : i32 to vector<256x128xi32>
    %93 = arith.cmpi slt, %67, %92 : vector<256x128xi32>
    %94 = arith.truncf %87 : vector<256x128xf32> to vector<256x128xbf16>
    %95 = arith.select %93, %94, %0 : vector<256x128xi1>, vector<256x128xbf16>
    %c6 = arith.constant 6 : index
    %c0_40 = arith.constant 0 : index
    %c0_41 = arith.constant 0 : index
    %96 = vector.load %arg2[%c6, %c0_40, %c0_41] : memref<10x128x128xbf16, #tpu.memory_space<vmem>>, vector<1x128x128xbf16>
    %97 = vector.shape_cast %96 : vector<1x128x128xbf16> to vector<128x128xbf16>
    %cst_42 = arith.constant dense<0.000000e+00> : vector<256x128xf32>
    %98 = tpu.matmul %95, %97, %cst_42 {dimension_numbers = #tpu.dot_dimension_numbers<[1], [0], [0], [1], [0, 0, 1, 1], [], []>} : vector<256x128xbf16>, vector<128x128xbf16>, vector<256x128xf32> -> vector<256x128xf32>
    %c4_43 = arith.constant 4 : index
    %c0_44 = arith.constant 0 : index
    %99 = vector.load %arg3[%c4_43, %c0_44] : memref<16x128xf32, #tpu.memory_space<vmem>>, vector<1x128xf32>
    %100 = vector.shape_cast %99 : vector<1x128xf32> to vector<128xf32>
    %101 = vector.shape_cast %100 : vector<128xf32> to vector<1x128xf32>
    %102 = vector.broadcast %101 : vector<1x128xf32> to vector<256x128xf32>
    %103 = arith.addf %98, %102 : vector<256x128xf32>
    %cst_45 = arith.constant 0.000000e+00 : f32
    %104 = vector.broadcast %cst_45 : f32 to vector<256x128xf32>
    %105 = arith.cmpf ogt, %103, %104 : vector<256x128xf32>
    %cst_46 = arith.constant 2.000000e-01 : f32
    %106 = vector.broadcast %cst_46 : f32 to vector<256x128xf32>
    %107 = arith.mulf %106, %103 : vector<256x128xf32>
    %108 = arith.select %105, %103, %107 : vector<256x128xi1>, vector<256x128xf32>
    %109 = arith.truncf %108 : vector<256x128xf32> to vector<256x128xbf16>
    %c7 = arith.constant 7 : index
    %c0_47 = arith.constant 0 : index
    %c0_48 = arith.constant 0 : index
    %110 = vector.load %arg2[%c7, %c0_47, %c0_48] : memref<10x128x128xbf16, #tpu.memory_space<vmem>>, vector<1x128x128xbf16>
    %111 = vector.shape_cast %110 : vector<1x128x128xbf16> to vector<128x128xbf16>
    %cst_49 = arith.constant dense<0.000000e+00> : vector<256x128xf32>
    %112 = tpu.matmul %109, %111, %cst_49 {dimension_numbers = #tpu.dot_dimension_numbers<[1], [0], [0], [1], [0, 0, 1, 1], [], []>} : vector<256x128xbf16>, vector<128x128xbf16>, vector<256x128xf32> -> vector<256x128xf32>
    %c5_50 = arith.constant 5 : index
    %c0_51 = arith.constant 0 : index
    %113 = vector.load %arg3[%c5_50, %c0_51] : memref<16x128xf32, #tpu.memory_space<vmem>>, vector<1x128xf32>
    %114 = vector.shape_cast %113 : vector<1x128xf32> to vector<128xf32>
    %115 = vector.shape_cast %114 : vector<128xf32> to vector<1x128xf32>
    %116 = vector.broadcast %115 : vector<1x128xf32> to vector<256x128xf32>
    %117 = arith.addf %112, %116 : vector<256x128xf32>
    %cst_52 = arith.constant 0.000000e+00 : f32
    %118 = vector.broadcast %cst_52 : f32 to vector<256x128xf32>
    %119 = arith.cmpf ogt, %117, %118 : vector<256x128xf32>
    %cst_53 = arith.constant 2.000000e-01 : f32
    %120 = vector.broadcast %cst_53 : f32 to vector<256x128xf32>
    %121 = arith.mulf %120, %117 : vector<256x128xf32>
    %122 = arith.select %119, %117, %121 : vector<256x128xi1>, vector<256x128xf32>
    %123 = arith.truncf %122 : vector<256x128xf32> to vector<256x128xbf16>
    %c8_54 = arith.constant 8 : index
    %c0_55 = arith.constant 0 : index
    %c0_56 = arith.constant 0 : index
    %124 = vector.load %arg2[%c8_54, %c0_55, %c0_56] : memref<10x128x128xbf16, #tpu.memory_space<vmem>>, vector<1x128x128xbf16>
    %125 = vector.shape_cast %124 : vector<1x128x128xbf16> to vector<128x128xbf16>
    %cst_57 = arith.constant dense<0.000000e+00> : vector<256x128xf32>
    %126 = tpu.matmul %123, %125, %cst_57 {dimension_numbers = #tpu.dot_dimension_numbers<[1], [0], [0], [1], [0, 0, 1, 1], [], []>} : vector<256x128xbf16>, vector<128x128xbf16>, vector<256x128xf32> -> vector<256x128xf32>
    %c6_58 = arith.constant 6 : index
    %c0_59 = arith.constant 0 : index
    %127 = vector.load %arg3[%c6_58, %c0_59] : memref<16x128xf32, #tpu.memory_space<vmem>>, vector<1x128xf32>
    %128 = vector.shape_cast %127 : vector<1x128xf32> to vector<128xf32>
    %129 = vector.shape_cast %128 : vector<128xf32> to vector<1x128xf32>
    %130 = vector.broadcast %129 : vector<1x128xf32> to vector<256x128xf32>
    %131 = arith.addf %126, %130 : vector<256x128xf32>
    %cst_60 = arith.constant 0.000000e+00 : f32
    %132 = vector.broadcast %cst_60 : f32 to vector<256x128xf32>
    %133 = arith.cmpf ogt, %131, %132 : vector<256x128xf32>
    %cst_61 = arith.constant 2.000000e-01 : f32
    %134 = vector.broadcast %cst_61 : f32 to vector<256x128xf32>
    %135 = arith.mulf %134, %131 : vector<256x128xf32>
    %136 = arith.select %133, %131, %135 : vector<256x128xi1>, vector<256x128xf32>
    %137 = arith.truncf %136 : vector<256x128xf32> to vector<256x128xbf16>
    %c9 = arith.constant 9 : index
    %c0_62 = arith.constant 0 : index
    %c0_63 = arith.constant 0 : index
    %138 = vector.load %arg2[%c9, %c0_62, %c0_63] : memref<10x128x128xbf16, #tpu.memory_space<vmem>>, vector<1x128x128xbf16>
    %139 = vector.shape_cast %138 : vector<1x128x128xbf16> to vector<128x128xbf16>
    %cst_64 = arith.constant dense<0.000000e+00> : vector<256x128xf32>
    %140 = tpu.matmul %137, %139, %cst_64 {dimension_numbers = #tpu.dot_dimension_numbers<[1], [0], [0], [1], [0, 0, 1, 1], [], []>} : vector<256x128xbf16>, vector<128x128xbf16>, vector<256x128xf32> -> vector<256x128xf32>
    %c7_65 = arith.constant 7 : index
    %c0_66 = arith.constant 0 : index
    %141 = vector.load %arg3[%c7_65, %c0_66] : memref<16x128xf32, #tpu.memory_space<vmem>>, vector<1x128xf32>
    %142 = vector.shape_cast %141 : vector<1x128xf32> to vector<128xf32>
    %143 = vector.shape_cast %142 : vector<128xf32> to vector<1x128xf32>
    %144 = vector.broadcast %143 : vector<1x128xf32> to vector<256x128xf32>
    %145 = arith.addf %140, %144 : vector<256x128xf32>
    %c8_i32 = arith.constant 8 : i32
    %146 = vector.broadcast %c8_i32 : i32 to vector<256x128xi32>
    %147 = arith.cmpi eq, %67, %146 : vector<256x128xi32>
    %cst_67 = arith.constant 0.000000e+00 : f32
    %148 = vector.shape_cast %91 : vector<256x1xf32> to vector<256x1xf32>
    %149 = vector.broadcast %148 : vector<256x1xf32> to vector<256x128xf32>
    %150 = vector.broadcast %cst_67 : f32 to vector<256x128xf32>
    %151 = arith.select %147, %149, %150 : vector<256x128xi1>, vector<256x128xf32>
    %152 = arith.addf %145, %151 : vector<256x128xf32>
    %c0_68 = arith.constant 0 : index
    %c0_69 = arith.constant 0 : index
    %153 = vector.load %arg4[%c0_68, %c0_69] : memref<256x128xf32, #tpu.memory_space<vmem>>, vector<256x128xf32>
    tpu.vector_store %arg4[%c0_68, %c0_69], %152 {strides = array<i32>} : memref<256x128xf32, #tpu.memory_space<vmem>>, vector<256x128xf32>,
    return
  }
  func.func @transform_0(%arg0: i32) -> (i32, i32) {
    %c0_i32 = arith.constant 0 : i32
    %c0_i32_0 = arith.constant 0 : i32
    return %arg0, %c0_i32 : i32, i32
  }
  func.func @transform_1(%arg0: i32) -> (i32, i32, i32) {
    %c0_i32 = arith.constant 0 : i32
    %c0_i32_0 = arith.constant 0 : i32
    %c0_i32_1 = arith.constant 0 : i32
    %c0_i32_2 = arith.constant 0 : i32
    return %c0_i32, %c0_i32_0, %c0_i32_1 : i32, i32, i32
  }
  func.func @transform_2(%arg0: i32) -> (i32, i32) {
    %c0_i32 = arith.constant 0 : i32
    %c0_i32_0 = arith.constant 0 : i32
    %c0_i32_1 = arith.constant 0 : i32
    return %c0_i32, %c0_i32_0 : i32, i32
  }
  func.func @transform_3(%arg0: i32) -> (i32, i32) {
    %c0_i32 = arith.constant 0 : i32
    %c0_i32_0 = arith.constant 0 : i32
    return %arg0, %c0_i32 : i32, i32
  }
}

</mosaic_0001>

<llo_original>
// kernel: vae_forward.1
$region0: #{vae_forward.1}
  #allocation0 [shape = 'u32[]', space=smem, size = 0x4, offset = 0x4, fixed_abs, tag = 'smem constant byte address 0x4 - core index']
  #allocation1 [shape = 'u32[144,128]{1,0:T(1,128)}', space=vmem, size = 0x12000, scoped, tag = 'internal scratch']
  %s0 = inlined_call_operand.vmem [shape: bf16[512,128], index: 0, kind: input, shape index: {}]
  %s1 = inlined_call_operand.vmem [shape: bf16[10,128,128], index: 1, kind: input, shape index: {}]
  %s2 = inlined_call_operand.vmem [shape: f32[16,128], index: 2, kind: input, shape index: {}]
  %s3 = inlined_call_operand.vmem [shape: f32[512,128], index: 3, kind: output, shape index: {}]
  %s4 = sld [smem:[#allocation0]]
  $region45: #{vae_forward.1} parent=0
    _
  %s6 = ssub.s32 1, %s4
  %s7 = scalar_select 0, %s6, %s4
  loop: start=0, step=1, limit=4
  $region2: #{vae_forward.1} parent=0 // loop_pre_header
    _
  $region3: #{vae_forward.1} parent=0 // loop_header
    %s9 = sphi 0, %s13
    %p10 = scmp.ge.s32.totalorder %s9, 4
    %s19 = sphi 0, %s21
    %s22 = sphi 0, %s19
    %s23 = sphi 0, %s22
    %s39 = sphi 0, %s23
    %s43 = sphi 0, %s43
    %s45 = sphi 0, %s43
    %s46 = sphi 0, %s45
    %s60 = sphi 0, %s46
    %s64 = sphi 0, %s64
    %s66 = sphi 0, %s64
    %s67 = sphi 0, %s66
    %s81 = sphi 0, %s67
    %s87 = sphi 0, %s89
    %s90 = sphi 0, %s87
    %s91 = sphi 0, %s90
    %s107 = sphi 0, %s91
  $region4: #{vae_forward.1} parent=0 // loop_header_branch
    %12 = sbr.rel (%p10) target = $region8
  $region5: #{vae_forward.1} parent=0 // loop_body
    %s14 = ssub.s32 %s9, 1
    %s15 = ssub.s32 %s9, 2
    %s16 = sadd.s32 %s9, 1
    %s17 = ssub.s32 %s9, %s16
    %p18 = scmp.eq.s32.totalorder %s17, 0
    %s20 = sadd.s32 %s19, 1
    %s21 = scalar_select %p18, %s19, %s20
    %p24 = pneg %p18
    %p25 = scmp.eq.s32.totalorder %s9, 1
    %p26 = por %p24, %p25
    %p27 = scmp.ne.s32.totalorder %s19, %s22
    %p28 = scmp.eq.s32.totalorder %s9, 0
    %p29 = por %p27, %p28
    %p30 = scmp.ne.s32.totalorder %s19, %s22
    %p31 = scmp.eq.s32.totalorder %s14, 1
    %p32 = por %p30, %p31
    %p33 = scmp.ne.s32.totalorder %s22, %s23
    %p34 = scmp.eq.s32.totalorder %s14, 0
    %p35 = por %p33, %p34
    %p36 = scmp.ne.s32.totalorder %s22, %s23
    %p37 = scmp.eq.s32.totalorder %s15, 1
    %p38 = por %p36, %p37
    %p40 = scmp.ne.s32.totalorder %s23, %s39
    %p41 = scmp.eq.s32.totalorder %s15, 0
    %p42 = por %p40, %p41
    %s44 = sadd.s32 %s43, 1
    %p47 = scmp.eq.s32.totalorder %s9, 1
    %p48 = scmp.ne.s32.totalorder %s43, %s45
    %p49 = scmp.eq.s32.totalorder %s9, 0
    %p50 = por %p48, %p49
    %p51 = scmp.ne.s32.totalorder %s43, %s45
    %p52 = scmp.eq.s32.totalorder %s14, 1
    %p53 = por %p51, %p52
    %p54 = scmp.ne.s32.totalorder %s45, %s46
    %p55 = scmp.eq.s32.totalorder %s14, 0
    %p56 = por %p54, %p55
    %p57 = scmp.ne.s32.totalorder %s45, %s46
    %p58 = scmp.eq.s32.totalorder %s15, 1
    %p59 = por %p57, %p58
    %p61 = scmp.ne.s32.totalorder %s46, %s60
    %p62 = scmp.eq.s32.totalorder %s15, 0
    %p63 = por %p61, %p62
    %s65 = sadd.s32 %s64, 1
    %p68 = scmp.eq.s32.totalorder %s9, 1
    %p69 = scmp.ne.s32.totalorder %s64, %s66
    %p70 = scmp.eq.s32.totalorder %s9, 0
    %p71 = por %p69, %p70
    %p72 = scmp.ne.s32.totalorder %s64, %s66
    %p73 = scmp.eq.s32.totalorder %s14, 1
    %p74 = por %p72, %p73
    %p75 = scmp.ne.s32.totalorder %s66, %s67
    %p76 = scmp.eq.s32.totalorder %s14, 0
    %p77 = por %p75, %p76
    %p78 = scmp.ne.s32.totalorder %s66, %s67
    %p79 = scmp.eq.s32.totalorder %s15, 1
    %p80 = por %p78, %p79
    %p82 = scmp.ne.s32.totalorder %s67, %s81
    %p83 = scmp.eq.s32.totalorder %s15, 0
    %p84 = por %p82, %p83
    %s85 = ssub.s32 %s9, %s16
    %p86 = scmp.eq.s32.totalorder %s85, 0
    %s88 = sadd.s32 %s87, 1
    %s89 = scalar_select %p86, %s87, %s88
    %p92 = pneg %p86
    %p93 = scmp.eq.s32.totalorder %s9, 1
    %p94 = por %p92, %p93
    %p95 = scmp.ne.s32.totalorder %s87, %s90
    %p96 = scmp.eq.s32.totalorder %s9, 0
    %p97 = por %p95, %p96
    %p98 = scmp.ne.s32.totalorder %s87, %s90
    %p99 = scmp.eq.s32.totalorder %s14, 1
    %p100 = por %p98, %p99
    %p101 = scmp.ne.s32.totalorder %s90, %s91
    %p102 = scmp.eq.s32.totalorder %s14, 0
    %p103 = por %p101, %p102
    %p104 = scmp.ne.s32.totalorder %s90, %s91
    %p105 = scmp.eq.s32.totalorder %s15, 1
    %p106 = por %p104, %p105
    %p108 = scmp.ne.s32.totalorder %s91, %s107
    %p109 = scmp.eq.s32.totalorder %s15, 0
    %p110 = por %p108, %p109
    %p111 = scmp.le.s32.totalorder 1, %s9
    %p112 = scmp.lt.s32.totalorder %s9, 3
    %p113 = pnand %p111, %p112
    %p114 = pneg %p113
    // Predicated region
    $region9: #{vae_forward.1} parent=5 // pred_check
      _
    $region10: #{vae_forward.1} parent=5 // pred_check_branch
      %116 = sbr.rel (%p113) target = $region12
    $region11: #{vae_forward.1} parent=5 // pred_region
      %s117 = ssub.s32 %s9, 1
      // Predicated region
      $region13: #{vae_forward.1} parent=11 // pred_check
        %p118 = pneg %p56
      $region14: #{vae_forward.1} parent=11 // pred_check_branch
        %120 = sbr.rel (%p118) target = $region16
      $region15: #{vae_forward.1} parent=11 // pred_region
        _
      $region16: #{vae_forward.1} parent=11 // pred_fallthru
        _
      // Predicated region
      $region17: #{vae_forward.1} parent=11 // pred_check
        %p121 = pneg %p77
      $region18: #{vae_forward.1} parent=11 // pred_check_branch
        %123 = sbr.rel (%p121) target = $region20
      $region19: #{vae_forward.1} parent=11 // pred_region
        _
      $region20: #{vae_forward.1} parent=11 // pred_fallthru
        _
    $region12: #{vae_forward.1} parent=5 // pred_fallthru
      _
    %p124 = scmp.lt.s32.totalorder %s9, 2
    // Predicated region
    $region21: #{vae_forward.1} parent=5 // pred_check
      %p125 = pneg %p124
    $region22: #{vae_forward.1} parent=5 // pred_check_branch
      %127 = sbr.rel (%p125) target = $region24
    $region23: #{vae_forward.1} parent=5 // pred_region
      // Predicated region
      $region25: #{vae_forward.1} parent=23 // pred_check
        %p128 = pneg %p29
      $region26: #{vae_forward.1} parent=23 // pred_check_branch
        %130 = sbr.rel (%p128) target = $region28
      $region27: #{vae_forward.1} parent=23 // pred_region
        %s131 = smul.u32 32, %s9
        %p132 = scmp.lt.s32.totalorder %s131, 63
        %s133 = scalar_select %p132, %s131, 63
        %s134 = smul.addr %s133, 4
        %s135 = scalar_lea.vmem %s0, %s134
        %s136 = smul.u32 32, %s9
      $region28: #{vae_forward.1} parent=23 // pred_fallthru
        _
    $region24: #{vae_forward.1} parent=5 // pred_fallthru
      _
    %p137 = scmp.le.s32.totalorder 1, %s9
    %p138 = scmp.lt.s32.totalorder %s9, 3
    %p139 = pnand %p137, %p138
    %p140 = pneg %p139
    // Predicated region
    $region29: #{vae_forward.1} parent=5 // pred_check
      _
    $region30: #{vae_forward.1} parent=5 // pred_check_branch
      %142 = sbr.rel (%p139) target = $region32
    $region31: #{vae_forward.1} parent=5 // pred_region
      %s143 = ssub.s32 %s9, 1
      %s144 = smul.u32 32, %s14
      %p145 = scmp.lt.s32.totalorder %s144, 63
      %s146 = scalar_select %p145, %s144, 63
      %s147 = smul.addr %s146, 4
      %s148 = scalar_lea.vmem %s0, %s147
      %p149 = pneg %p35
      %p150 = pneg %p32
      %p151 = pneg %p56
      %p152 = pneg %p53
      %p153 = pneg %p77
      %p154 = pneg %p74
      %p155 = pneg %p103
      %p156 = pneg %p100
      %s157 = smul.u32 32, %s14
      %p158 = scmp.lt.s32.totalorder %s157, 63
      %s159 = scalar_select %p158, %s157, 63
      %s160 = smul.addr %s159, 8
      %s161 = scalar_lea.vmem %s3, %s160
      %s162 = smul.u32 32, %s14
      %p163 = scmp.lt.s32.totalorder %s162, 63
      %s164 = scalar_select %p163, %s162, 63
      %s165 = smul.addr %s164, 4
      %s166 = scalar_lea.vmem %s0, %s165
      %s167 = smul.u32 32, %s14
      %s168 = smul.u32 32, %s14
      %p169 = scmp.lt.s32.totalorder %s168, 63
      %s170 = scalar_select %p169, %s168, 63
      %s171 = smul.addr %s170, 8
      %s172 = scalar_lea.vmem %s3, %s171
      %s173 = smul.u32 32, %s14
      %v177 = vld [vmem:[%s166] sm:$0xf]
      %v178 = vld [vmem:[%s166 + $0x4] sm:$0xf]
      %v179 = vld [vmem:[%s166 + $0x8] sm:$0xf]
      %v180 = vld [vmem:[%s166 + $0xc] sm:$0xf]
      %v181 = vld [vmem:[%s166 + $0x10] sm:$0xf]
      %v182 = vld [vmem:[%s166 + $0x14] sm:$0xf]
      %v183 = vld [vmem:[%s166 + $0x18] sm:$0xf]
      %v184 = vld [vmem:[%s166 + $0x1c] sm:$0xf]
      %v185 = vld [vmem:[%s166 + $0x20] sm:$0xf]
      %v186 = vld [vmem:[%s166 + $0x24] sm:$0xf]
      %v187 = vld [vmem:[%s166 + $0x28] sm:$0xf]
      %v188 = vld [vmem:[%s166 + $0x2c] sm:$0xf]
      %v189 = vld [vmem:[%s166 + $0x30] sm:$0xf]
      %v190 = vld [vmem:[%s166 + $0x34] sm:$0xf]
      %v191 = vld [vmem:[%s166 + $0x38] sm:$0xf]
      %v192 = vld [vmem:[%s166 + $0x3c] sm:$0xf]
      %v193 = vld [vmem:[%s166 + $0x40] sm:$0xf]
      %v194 = vld [vmem:[%s166 + $0x44] sm:$0xf]
      %v195 = vld [vmem:[%s166 + $0x48] sm:$0xf]
      %v196 = vld [vmem:[%s166 + $0x4c] sm:$0xf]
      %v197 = vld [vmem:[%s166 + $0x50] sm:$0xf]
      %v198 = vld [vmem:[%s166 + $0x54] sm:$0xf]
      %v199 = vld [vmem:[%s166 + $0x58] sm:$0xf]
      %v200 = vld [vmem:[%s166 + $0x5c] sm:$0xf]
      %v201 = vld [vmem:[%s166 + $0x60] sm:$0xf]
      %v202 = vld [vmem:[%s166 + $0x64] sm:$0xf]
      %v203 = vld [vmem:[%s166 + $0x68] sm:$0xf]
      %v204 = vld [vmem:[%s166 + $0x6c] sm:$0xf]
      %v205 = vld [vmem:[%s166 + $0x70] sm:$0xf]
      %v206 = vld [vmem:[%s166 + $0x74] sm:$0xf]
      %v207 = vld [vmem:[%s166 + $0x78] sm:$0xf]
      %v208 = vld [vmem:[%s166 + $0x7c] sm:$0xf]
      %v209 = vld [vmem:[%s1] sm:$0xf]
      %v210 = vld [vmem:[%s1 + $0x4] sm:$0xf]
      %v211 = vld [vmem:[%s1 + $0x8] sm:$0xf]
      %v212 = vld [vmem:[%s1 + $0xc] sm:$0xf]
      %v213 = vld [vmem:[%s1 + $0x10] sm:$0xf]
      %v214 = vld [vmem:[%s1 + $0x14] sm:$0xf]
      %v215 = vld [vmem:[%s1 + $0x18] sm:$0xf]
      %v216 = vld [vmem:[%s1 + $0x1c] sm:$0xf]
      %v217 = vld [vmem:[%s1 + $0x20] sm:$0xf]
      %v218 = vld [vmem:[%s1 + $0x24] sm:$0xf]
      %v219 = vld [vmem:[%s1 + $0x28] sm:$0xf]
      %v220 = vld [vmem:[%s1 + $0x2c] sm:$0xf]
      %v221 = vld [vmem:[%s1 + $0x30] sm:$0xf]
      %v222 = vld [vmem:[%s1 + $0x34] sm:$0xf]
      %v223 = vld [vmem:[%s1 + $0x38] sm:$0xf]
      %v224 = vld [vmem:[%s1 + $0x3c] sm:$0xf]
      %v225 = vld [vmem:[%s2] sm:$0x1]
      %v226 = vlaneseq
      %v227 = vshrl.u32 %v226, 7
      %v228 = vsub.s32 0, %v227
      %v229 = vrot.slane %v225, %v228
      %v262 = vunpack.c.l.b16 %v177
      %v263 = vunpack.c.l.b16 %v178
      %v264 = vunpack.c.l.b16 %v179
      %v265 = vunpack.c.l.b16 %v180
      %v266 = vunpack.c.l.b16 %v181
      %v267 = vunpack.c.l.b16 %v182
      %v268 = vunpack.c.l.b16 %v183
      %v269 = vunpack.c.l.b16 %v184
      %v270 = vunpack.c.l.b16 %v185
      %v271 = vunpack.c.l.b16 %v186
      %v272 = vunpack.c.l.b16 %v187
      %v273 = vunpack.c.l.b16 %v188
      %v274 = vunpack.c.l.b16 %v189
      %v275 = vunpack.c.l.b16 %v190
      %v276 = vunpack.c.l.b16 %v191
      %v277 = vunpack.c.l.b16 %v192
      %v278 = vunpack.c.l.b16 %v193
      %v279 = vunpack.c.l.b16 %v194
      %v280 = vunpack.c.l.b16 %v195
      %v281 = vunpack.c.l.b16 %v196
      %v282 = vunpack.c.l.b16 %v197
      %v283 = vunpack.c.l.b16 %v198
      %v284 = vunpack.c.l.b16 %v199
      %v285 = vunpack.c.l.b16 %v200
      %v286 = vunpack.c.l.b16 %v201
      %v287 = vunpack.c.l.b16 %v202
      %v288 = vunpack.c.l.b16 %v203
      %v289 = vunpack.c.l.b16 %v204
      %v290 = vunpack.c.l.b16 %v205
      %v291 = vunpack.c.l.b16 %v206
      %v292 = vunpack.c.l.b16 %v207
      %v293 = vunpack.c.l.b16 %v208
      %v294 = vpack.c.b16 %v263, %v262
      %v295 = vpack.c.b16 %v265, %v264
      %v296 = vpack.c.b16 %v267, %v266
      %v297 = vpack.c.b16 %v269, %v268
      %v298 = vpack.c.b16 %v271, %v270
      %v299 = vpack.c.b16 %v273, %v272
      %v300 = vpack.c.b16 %v275, %v274
      %v301 = vpack.c.b16 %v277, %v276
      %v302 = vpack.c.b16 %v279, %v278
      %v303 = vpack.c.b16 %v281, %v280
      %v304 = vpack.c.b16 %v283, %v282
      %v305 = vpack.c.b16 %v285, %v284
      %v306 = vpack.c.b16 %v287, %v286
      %v307 = vpack.c.b16 %v289, %v288
      %v308 = vpack.c.b16 %v291, %v290
      %v309 = vpack.c.b16 %v293, %v292
      %v342 = vunpack.c.l.b16 %v209
      %v343 = vunpack.c.l.b16 %v210
      %v344 = vunpack.c.l.b16 %v211
      %v345 = vunpack.c.l.b16 %v212
      %v346 = vunpack.c.l.b16 %v213
      %v347 = vunpack.c.l.b16 %v214
      %v348 = vunpack.c.l.b16 %v215
      %v349 = vunpack.c.l.b16 %v216
      %v350 = vunpack.c.l.b16 %v217
      %v351 = vunpack.c.l.b16 %v218
      %v352 = vunpack.c.l.b16 %v219
      %v353 = vunpack.c.l.b16 %v220
      %v354 = vunpack.c.l.b16 %v221
      %v355 = vunpack.c.l.b16 %v222
      %v356 = vunpack.c.l.b16 %v223
      %v357 = vunpack.c.l.b16 %v224
      %v358 = vpack.c.b16 %v343, %v342
      %v359 = vpack.c.b16 %v345, %v344
      %v360 = vpack.c.b16 %v347, %v346
      %v361 = vpack.c.b16 %v349, %v348
      %v362 = vpack.c.b16 %v351, %v350
      %v363 = vpack.c.b16 %v353, %v352
      %v364 = vpack.c.b16 %v355, %v354
      %v365 = vpack.c.b16 %v357, %v356
      %374 = vmatprep.subr.bf16.mxu0 0
      %375 = vmatpush1.bf16.msra.mxu0 %v365
      %376 = vmatprep.subr.bf16.mxu0 0
      %377 = vmatpush1.bf16.msra.mxu0 %v364
      %378 = vmatprep.subr.bf16.mxu0 0
      %379 = vmatpush1.bf16.msra.mxu0 %v363
      %380 = vmatprep.subr.bf16.mxu0 0
      %381 = vmatpush1.bf16.msra.mxu0 %v362
      %382 = vmatprep.subr.bf16.mxu0 0
      %383 = vmatpush1.bf16.msra.mxu0 %v361
      %384 = vmatprep.subr.bf16.mxu0 0
      %385 = vmatpush1.bf16.msra.mxu0 %v360
      %386 = vmatprep.subr.bf16.mxu0 0
      %387 = vmatpush1.bf16.msra.mxu0 %v359
      %388 = vmatprep.subr.bf16.mxu0 0
      %389 = vmatpush1.bf16.msra.mxu0 %v358
      %390 = vmatprep.subr.bf16.mxu0 0
      %391 = vmatpush2.bf16.msra.mxu0 0
      %392 = vmatprep.subr.bf16.mxu0 0
      %393 = vmatpush2.bf16.msra.mxu0 0
      %394 = vmatprep.subr.bf16.mxu0 0
      %395 = vmatpush2.bf16.msra.mxu0 0
      %396 = vmatprep.subr.bf16.mxu0 0
      %397 = vmatpush2.bf16.msra.mxu0 0
      %398 = vmatprep.subr.bf16.mxu0 0
      %399 = vmatpush2.bf16.msra.mxu0 0
      %400 = vmatprep.subr.bf16.mxu0 0
      %401 = vmatpush2.bf16.msra.mxu0 0
      %402 = vmatprep.subr.bf16.mxu0 0
      %403 = vmatpush2.bf16.msra.mxu0 0
      %404 = vmatprep.subr.bf16.mxu0 0
      %405 = vmatpush2.bf16.msra.mxu0 0
      %406 = vmatprep.mubr.bf16.mxu0 0
      %407 = vmatmul.mubr.bf16.gmra.mxu0 %v294
      %v408 = vpop.f32.mrf.mxu0
      %v409 = vadd.f32 %v229, %v408
      %v410 = vpop.f32.mrf.mxu0
      %v411 = vpop.f32.mrf.mxu0
      %v412 = vadd.f32 %v229, %v411
      %v413 = vpop.f32.mrf.mxu0
      %414 = vmatprep.mubr.bf16.mxu0 0
      %415 = vmatmul.mubr.bf16.gmra.mxu0 %v295
      %v416 = vpop.f32.mrf.mxu0
      %v417 = vadd.f32 %v229, %v416
      %v418 = vpop.f32.mrf.mxu0
      %v419 = vpop.f32.mrf.mxu0
      %v420 = vadd.f32 %v229, %v419
      %v421 = vpop.f32.mrf.mxu0
      %422 = vmatprep.mubr.bf16.mxu0 0
      %423 = vmatmul.mubr.bf16.gmra.mxu0 %v296
      %v424 = vpop.f32.mrf.mxu0
      %v425 = vadd.f32 %v229, %v424
      %v426 = vpop.f32.mrf.mxu0
      %v427 = vpop.f32.mrf.mxu0
      %v428 = vadd.f32 %v229, %v427
      %v429 = vpop.f32.mrf.mxu0
      %430 = vmatprep.mubr.bf16.mxu0 0
      %431 = vmatmul.mubr.bf16.gmra.mxu0 %v297
      %v432 = vpop.f32.mrf.mxu0
      %v433 = vadd.f32 %v229, %v432
      %v434 = vpop.f32.mrf.mxu0
      %v435 = vpop.f32.mrf.mxu0
      %v436 = vadd.f32 %v229, %v435
      %v437 = vpop.f32.mrf.mxu0
      %438 = vmatprep.mubr.bf16.mxu0 0
      %439 = vmatmul.mubr.bf16.gmra.mxu0 %v298
      %v440 = vpop.f32.mrf.mxu0
      %v441 = vadd.f32 %v229, %v440
      %v442 = vpop.f32.mrf.mxu0
      %v443 = vpop.f32.mrf.mxu0
      %v444 = vadd.f32 %v229, %v443
      %v445 = vpop.f32.mrf.mxu0
      %446 = vmatprep.mubr.bf16.mxu0 0
      %447 = vmatmul.mubr.bf16.gmra.mxu0 %v299
      %v448 = vpop.f32.mrf.mxu0
      %v449 = vadd.f32 %v229, %v448
      %v450 = vpop.f32.mrf.mxu0
      %v451 = vpop.f32.mrf.mxu0
      %v452 = vadd.f32 %v229, %v451
      %v453 = vpop.f32.mrf.mxu0
      %454 = vmatprep.mubr.bf16.mxu0 0
      %455 = vmatmul.mubr.bf16.gmra.mxu0 %v300
      %v456 = vpop.f32.mrf.mxu0
      %v457 = vadd.f32 %v229, %v456
      %v458 = vpop.f32.mrf.mxu0
      %v459 = vpop.f32.mrf.mxu0
      %v460 = vadd.f32 %v229, %v459
      %v461 = vpop.f32.mrf.mxu0
      %462 = vmatprep.mubr.bf16.mxu0 0
      %463 = vmatmul.mubr.bf16.gmra.mxu0 %v301
      %v464 = vpop.f32.mrf.mxu0
      %v465 = vadd.f32 %v229, %v464
      %v466 = vpop.f32.mrf.mxu0
      %v467 = vpop.f32.mrf.mxu0
      %v468 = vadd.f32 %v229, %v467
      %v469 = vpop.f32.mrf.mxu0
      %470 = vmatprep.mubr.bf16.mxu0 0
      %471 = vmatmul.mubr.bf16.gmra.mxu0 %v302
      %v472 = vpop.f32.mrf.mxu0
      %v473 = vadd.f32 %v229, %v472
      %v474 = vpop.f32.mrf.mxu0
      %v475 = vpop.f32.mrf.mxu0
      %v476 = vadd.f32 %v229, %v475
      %v477 = vpop.f32.mrf.mxu0
      %478 = vmatprep.mubr.bf16.mxu0 0
      %479 = vmatmul.mubr.bf16.gmra.mxu0 %v303
      %v480 = vpop.f32.mrf.mxu0
      %v481 = vadd.f32 %v229, %v480
      %v482 = vpop.f32.mrf.mxu0
      %v483 = vpop.f32.mrf.mxu0
      %v484 = vadd.f32 %v229, %v483
      %v485 = vpop.f32.mrf.mxu0
      %486 = vmatprep.mubr.bf16.mxu0 0
      %487 = vmatmul.mubr.bf16.gmra.mxu0 %v304
      %v488 = vpop.f32.mrf.mxu0
      %v489 = vadd.f32 %v229, %v488
      %v490 = vpop.f32.mrf.mxu0
      %v491 = vpop.f32.mrf.mxu0
      %v492 = vadd.f32 %v229, %v491
      %v493 = vpop.f32.mrf.mxu0
      %494 = vmatprep.mubr.bf16.mxu0 0
      %495 = vmatmul.mubr.bf16.gmra.mxu0 %v305
      %v496 = vpop.f32.mrf.mxu0
      %v497 = vadd.f32 %v229, %v496
      %v498 = vpop.f32.mrf.mxu0
      %v499 = vpop.f32.mrf.mxu0
      %v500 = vadd.f32 %v229, %v499
      %v501 = vpop.f32.mrf.mxu0
      %502 = vmatprep.mubr.bf16.mxu0 0
      %503 = vmatmul.mubr.bf16.gmra.mxu0 %v306
      %v504 = vpop.f32.mrf.mxu0
      %v505 = vadd.f32 %v229, %v504
      %v506 = vpop.f32.mrf.mxu0
      %v507 = vpop.f32.mrf.mxu0
      %v508 = vadd.f32 %v229, %v507
      %v509 = vpop.f32.mrf.mxu0
      %510 = vmatprep.mubr.bf16.mxu0 0
      %511 = vmatmul.mubr.bf16.gmra.mxu0 %v307
      %v512 = vpop.f32.mrf.mxu0
      %v513 = vadd.f32 %v229, %v512
      %v514 = vpop.f32.mrf.mxu0
      %v515 = vpop.f32.mrf.mxu0
      %v516 = vadd.f32 %v229, %v515
      %v517 = vpop.f32.mrf.mxu0
      %518 = vmatprep.mubr.bf16.mxu0 0
      %519 = vmatmul.mubr.bf16.gmra.mxu0 %v308
      %v520 = vpop.f32.mrf.mxu0
      %v521 = vadd.f32 %v229, %v520
      %v522 = vpop.f32.mrf.mxu0
      %v523 = vpop.f32.mrf.mxu0
      %v524 = vadd.f32 %v229, %v523
      %v525 = vpop.f32.mrf.mxu0
      %526 = vmatprep.mubr.bf16.mxu0 0
      %527 = vmatmul.mubr.bf16.gmra.mxu0 %v309
      %v528 = vpop.f32.mrf.mxu0
      %v529 = vadd.f32 %v229, %v528
      %v530 = vpop.f32.mrf.mxu0
      %v531 = vpop.f32.mrf.mxu0
      %v532 = vadd.f32 %v229, %v531
      %v533 = vpop.f32.mrf.mxu0
      %534 = vdwg.mxu0
      %vm535 = vcmp.gt.f32.partialorder %v409, 0.0
      %vm536 = vcmp.gt.f32.partialorder %v412, 0.0
      %vm537 = vcmp.gt.f32.partialorder %v417, 0.0
      %vm538 = vcmp.gt.f32.partialorder %v420, 0.0
      %vm539 = vcmp.gt.f32.partialorder %v425, 0.0
      %vm540 = vcmp.gt.f32.partialorder %v428, 0.0
      %vm541 = vcmp.gt.f32.partialorder %v433, 0.0
      %vm542 = vcmp.gt.f32.partialorder %v436, 0.0
      %vm543 = vcmp.gt.f32.partialorder %v441, 0.0
      %vm544 = vcmp.gt.f32.partialorder %v444, 0.0
      %vm545 = vcmp.gt.f32.partialorder %v449, 0.0
      %vm546 = vcmp.gt.f32.partialorder %v452, 0.0
      %vm547 = vcmp.gt.f32.partialorder %v457, 0.0
      %vm548 = vcmp.gt.f32.partialorder %v460, 0.0
      %vm549 = vcmp.gt.f32.partialorder %v465, 0.0
      %vm550 = vcmp.gt.f32.partialorder %v468, 0.0
      %vm551 = vcmp.gt.f32.partialorder %v473, 0.0
      %vm552 = vcmp.gt.f32.partialorder %v476, 0.0
      %vm553 = vcmp.gt.f32.partialorder %v481, 0.0
      %vm554 = vcmp.gt.f32.partialorder %v484, 0.0
      %vm555 = vcmp.gt.f32.partialorder %v489, 0.0
      %vm556 = vcmp.gt.f32.partialorder %v492, 0.0
      %vm557 = vcmp.gt.f32.partialorder %v497, 0.0
      %vm558 = vcmp.gt.f32.partialorder %v500, 0.0
      %vm559 = vcmp.gt.f32.partialorder %v505, 0.0
      %vm560 = vcmp.gt.f32.partialorder %v508, 0.0
      %vm561 = vcmp.gt.f32.partialorder %v513, 0.0
      %vm562 = vcmp.gt.f32.partialorder %v516, 0.0
      %vm563 = vcmp.gt.f32.partialorder %v521, 0.0
      %vm564 = vcmp.gt.f32.partialorder %v524, 0.0
      %vm565 = vcmp.gt.f32.partialorder %v529, 0.0
      %vm566 = vcmp.gt.f32.partialorder %v532, 0.0
      %v567 = vmul.f32 %v409, 0.2
      %v568 = vmul.f32 %v412, 0.2
      %v569 = vmul.f32 %v417, 0.2
      %v570 = vmul.f32 %v420, 0.2
      %v571 = vmul.f32 %v425, 0.2
      %v572 = vmul.f32 %v428, 0.2
      %v573 = vmul.f32 %v433, 0.2
      %v574 = vmul.f32 %v436, 0.2
      %v575 = vmul.f32 %v441, 0.2
      %v576 = vmul.f32 %v444, 0.2
      %v577 = vmul.f32 %v449, 0.2
      %v578 = vmul.f32 %v452, 0.2
      %v579 = vmul.f32 %v457, 0.2
      %v580 = vmul.f32 %v460, 0.2
      %v581 = vmul.f32 %v465, 0.2
      %v582 = vmul.f32 %v468, 0.2
      %v583 = vmul.f32 %v473, 0.2
      %v584 = vmul.f32 %v476, 0.2
      %v585 = vmul.f32 %v481, 0.2
      %v586 = vmul.f32 %v484, 0.2
      %v587 = vmul.f32 %v489, 0.2
      %v588 = vmul.f32 %v492, 0.2
      %v589 = vmul.f32 %v497, 0.2
      %v590 = vmul.f32 %v500, 0.2
      %v591 = vmul.f32 %v505, 0.2
      %v592 = vmul.f32 %v508, 0.2
      %v593 = vmul.f32 %v513, 0.2
      %v594 = vmul.f32 %v516, 0.2
      %v595 = vmul.f32 %v521, 0.2
      %v596 = vmul.f32 %v524, 0.2
      %v597 = vmul.f32 %v529, 0.2
      %v598 = vmul.f32 %v532, 0.2
      %v599 = vsel %vm535, %v409, %v567
      %v600 = vsel %vm536, %v412, %v568
      %v601 = vsel %vm537, %v417, %v569
      %v602 = vsel %vm538, %v420, %v570
      %v603 = vsel %vm539, %v425, %v571
      %v604 = vsel %vm540, %v428, %v572
      %v605 = vsel %vm541, %v433, %v573
      %v606 = vsel %vm542, %v436, %v574
      %v607 = vsel %vm543, %v441, %v575
      %v608 = vsel %vm544, %v444, %v576
      %v609 = vsel %vm545, %v449, %v577
      %v610 = vsel %vm546, %v452, %v578
      %v611 = vsel %vm547, %v457, %v579
      %v612 = vsel %vm548, %v460, %v580
      %v613 = vsel %vm549, %v465, %v581
      %v614 = vsel %vm550, %v468, %v582
      %v615 = vsel %vm551, %v473, %v583
      %v616 = vsel %vm552, %v476, %v584
      %v617 = vsel %vm553, %v481, %v585
      %v618 = vsel %vm554, %v484, %v586
      %v619 = vsel %vm555, %v489, %v587
      %v620 = vsel %vm556, %v492, %v588
      %v621 = vsel %vm557, %v497, %v589
      %v622 = vsel %vm558, %v500, %v590
      %v623 = vsel %vm559, %v505, %v591
      %v624 = vsel %vm560, %v508, %v592
      %v625 = vsel %vm561, %v513, %v593
      %v626 = vsel %vm562, %v516, %v594
      %v627 = vsel %vm563, %v521, %v595
      %v628 = vsel %vm564, %v524, %v596
      %v629 = vsel %vm565, %v529, %v597
      %v630 = vsel %vm566, %v532, %v598
      %v631 = vpack.c.bf16 %v600, %v599
      %v632 = vpack.c.bf16 %v602, %v601
      %v633 = vpack.c.bf16 %v604, %v603
      %v634 = vpack.c.bf16 %v606, %v605
      %v635 = vpack.c.bf16 %v608, %v607
      %v636 = vpack.c.bf16 %v610, %v609
      %v637 = vpack.c.bf16 %v612, %v611
      %v638 = vpack.c.bf16 %v614, %v613
      %v639 = vpack.c.bf16 %v616, %v615
      %v640 = vpack.c.bf16 %v618, %v617
      %v641 = vpack.c.bf16 %v620, %v619
      %v642 = vpack.c.bf16 %v622, %v621
      %v643 = vpack.c.bf16 %v624, %v623
      %v644 = vpack.c.bf16 %v626, %v625
      %v645 = vpack.c.bf16 %v628, %v627
      %v646 = vpack.c.bf16 %v630, %v629
      %s647 = scalar_lea.vmem %s1, 64
      %v648 = vld [vmem:[%s647] sm:$0xf]
      %v649 = vld [vmem:[%s647 + $0x4] sm:$0xf]
      %v650 = vld [vmem:[%s647 + $0x8] sm:$0xf]
      %v651 = vld [vmem:[%s647 + $0xc] sm:$0xf]
      %v652 = vld [vmem:[%s647 + $0x10] sm:$0xf]
      %v653 = vld [vmem:[%s647 + $0x14] sm:$0xf]
      %v654 = vld [vmem:[%s647 + $0x18] sm:$0xf]
      %v655 = vld [vmem:[%s647 + $0x1c] sm:$0xf]
      %v656 = vld [vmem:[%s647 + $0x20] sm:$0xf]
      %v657 = vld [vmem:[%s647 + $0x24] sm:$0xf]
      %v658 = vld [vmem:[%s647 + $0x28] sm:$0xf]
      %v659 = vld [vmem:[%s647 + $0x2c] sm:$0xf]
      %v660 = vld [vmem:[%s647 + $0x30] sm:$0xf]
      %v661 = vld [vmem:[%s647 + $0x34] sm:$0xf]
      %v662 = vld [vmem:[%s647 + $0x38] sm:$0xf]
      %v663 = vld [vmem:[%s647 + $0x3c] sm:$0xf]
      %v664 = vld [vmem:[%s2 + $0x1] sm:$0x1]
      %v665 = vlaneseq
      %v666 = vshrl.u32 %v665, 7
      %v667 = vsub.s32 0, %v666
      %v668 = vrot.slane %v664, %v667
      %v685 = vunpack.c.l.b16 %v648
      %v686 = vunpack.c.l.b16 %v649
      %v687 = vunpack.c.l.b16 %v650
      %v688 = vunpack.c.l.b16 %v651
      %v689 = vunpack.c.l.b16 %v652
      %v690 = vunpack.c.l.b16 %v653
      %v691 = vunpack.c.l.b16 %v654
      %v692 = vunpack.c.l.b16 %v655
      %v693 = vunpack.c.l.b16 %v656
      %v694 = vunpack.c.l.b16 %v657
      %v695 = vunpack.c.l.b16 %v658
      %v696 = vunpack.c.l.b16 %v659
      %v697 = vunpack.c.l.b16 %v660
      %v698 = vunpack.c.l.b16 %v661
      %v699 = vunpack.c.l.b16 %v662
      %v700 = vunpack.c.l.b16 %v663
      %v701 = vpack.c.b16 %v686, %v685
      %v702 = vpack.c.b16 %v688, %v687
      %v703 = vpack.c.b16 %v690, %v689
      %v704 = vpack.c.b16 %v692, %v691
      %v705 = vpack.c.b16 %v694, %v693
      %v706 = vpack.c.b16 %v696, %v695
      %v707 = vpack.c.b16 %v698, %v697
      %v708 = vpack.c.b16 %v700, %v699
      %717 = vmatprep.subr.bf16.mxu0 0
      %718 = vmatpush1.bf16.msra.mxu0 %v708
      %719 = vmatprep.subr.bf16.mxu0 0
      %720 = vmatpush1.bf16.msra.mxu0 %v707
      %721 = vmatprep.subr.bf16.mxu0 0
      %722 = vmatpush1.bf16.msra.mxu0 %v706
      %723 = vmatprep.subr.bf16.mxu0 0
      %724 = vmatpush1.bf16.msra.mxu0 %v705
      %725 = vmatprep.subr.bf16.mxu0 0
      %726 = vmatpush1.bf16.msra.mxu0 %v704
      %727 = vmatprep.subr.bf16.mxu0 0
      %728 = vmatpush1.bf16.msra.mxu0 %v703
      %729 = vmatprep.subr.bf16.mxu0 0
      %730 = vmatpush1.bf16.msra.mxu0 %v702
      %731 = vmatprep.subr.bf16.mxu0 0
      %732 = vmatpush1.bf16.msra.mxu0 %v701
      %733 = vmatprep.subr.bf16.mxu0 0
      %734 = vmatpush2.bf16.msra.mxu0 0
      %735 = vmatprep.subr.bf16.mxu0 0
      %736 = vmatpush2.bf16.msra.mxu0 0
      %737 = vmatprep.subr.bf16.mxu0 0
      %738 = vmatpush2.bf16.msra.mxu0 0
      %739 = vmatprep.subr.bf16.mxu0 0
      %740 = vmatpush2.bf16.msra.mxu0 0
      %741 = vmatprep.subr.bf16.mxu0 0
      %742 = vmatpush2.bf16.msra.mxu0 0
      %743 = vmatprep.subr.bf16.mxu0 0
      %744 = vmatpush2.bf16.msra.mxu0 0
      %745 = vmatprep.subr.bf16.mxu0 0
      %746 = vmatpush2.bf16.msra.mxu0 0
      %747 = vmatprep.subr.bf16.mxu0 0
      %748 = vmatpush2.bf16.msra.mxu0 0
      %749 = vmatprep.mubr.bf16.mxu0 0
      %750 = vmatmul.mubr.bf16.gmra.mxu0 %v631
      %v751 = vpop.f32.mrf.mxu0
      %v752 = vadd.f32 %v668, %v751
      %v753 = vpop.f32.mrf.mxu0
      %v754 = vpop.f32.mrf.mxu0
      %v755 = vadd.f32 %v668, %v754
      %v756 = vpop.f32.mrf.mxu0
      %757 = vmatprep.mubr.bf16.mxu0 0
      %758 = vmatmul.mubr.bf16.gmra.mxu0 %v632
      %v759 = vpop.f32.mrf.mxu0
      %v760 = vadd.f32 %v668, %v759
      %v761 = vpop.f32.mrf.mxu0
      %v762 = vpop.f32.mrf.mxu0
      %v763 = vadd.f32 %v668, %v762
      %v764 = vpop.f32.mrf.mxu0
      %765 = vmatprep.mubr.bf16.mxu0 0
      %766 = vmatmul.mubr.bf16.gmra.mxu0 %v633
      %v767 = vpop.f32.mrf.mxu0
      %v768 = vadd.f32 %v668, %v767
      %v769 = vpop.f32.mrf.mxu0
      %v770 = vpop.f32.mrf.mxu0
      %v771 = vadd.f32 %v668, %v770
      %v772 = vpop.f32.mrf.mxu0
      %773 = vmatprep.mubr.bf16.mxu0 0
      %774 = vmatmul.mubr.bf16.gmra.mxu0 %v634
      %v775 = vpop.f32.mrf.mxu0
      %v776 = vadd.f32 %v668, %v775
      %v777 = vpop.f32.mrf.mxu0
      %v778 = vpop.f32.mrf.mxu0
      %v779 = vadd.f32 %v668, %v778
      %v780 = vpop.f32.mrf.mxu0
      %781 = vmatprep.mubr.bf16.mxu0 0
      %782 = vmatmul.mubr.bf16.gmra.mxu0 %v635
      %v783 = vpop.f32.mrf.mxu0
      %v784 = vadd.f32 %v668, %v783
      %v785 = vpop.f32.mrf.mxu0
      %v786 = vpop.f32.mrf.mxu0
      %v787 = vadd.f32 %v668, %v786
      %v788 = vpop.f32.mrf.mxu0
      %789 = vmatprep.mubr.bf16.mxu0 0
      %790 = vmatmul.mubr.bf16.gmra.mxu0 %v636
      %v791 = vpop.f32.mrf.mxu0
      %v792 = vadd.f32 %v668, %v791
      %v793 = vpop.f32.mrf.mxu0
      %v794 = vpop.f32.mrf.mxu0
      %v795 = vadd.f32 %v668, %v794
      %v796 = vpop.f32.mrf.mxu0
      %797 = vmatprep.mubr.bf16.mxu0 0
      %798 = vmatmul.mubr.bf16.gmra.mxu0 %v637
      %v799 = vpop.f32.mrf.mxu0
      %v800 = vadd.f32 %v668, %v799
      %v801 = vpop.f32.mrf.mxu0
      %v802 = vpop.f32.mrf.mxu0
      %v803 = vadd.f32 %v668, %v802
      %v804 = vpop.f32.mrf.mxu0
      %805 = vmatprep.mubr.bf16.mxu0 0
      %806 = vmatmul.mubr.bf16.gmra.mxu0 %v638
      %v807 = vpop.f32.mrf.mxu0
      %v808 = vadd.f32 %v668, %v807
      %v809 = vpop.f32.mrf.mxu0
      %v810 = vpop.f32.mrf.mxu0
      %v811 = vadd.f32 %v668, %v810
      %v812 = vpop.f32.mrf.mxu0
      %813 = vmatprep.mubr.bf16.mxu0 0
      %814 = vmatmul.mubr.bf16.gmra.mxu0 %v639
      %v815 = vpop.f32.mrf.mxu0
      %v816 = vadd.f32 %v668, %v815
      %v817 = vpop.f32.mrf.mxu0
      %v818 = vpop.f32.mrf.mxu0
      %v819 = vadd.f32 %v668, %v818
      %v820 = vpop.f32.mrf.mxu0
      %821 = vmatprep.mubr.bf16.mxu0 0
      %822 = vmatmul.mubr.bf16.gmra.mxu0 %v640
      %v823 = vpop.f32.mrf.mxu0
      %v824 = vadd.f32 %v668, %v823
      %v825 = vpop.f32.mrf.mxu0
      %v826 = vpop.f32.mrf.mxu0
      %v827 = vadd.f32 %v668, %v826
      %v828 = vpop.f32.mrf.mxu0
      %829 = vmatprep.mubr.bf16.mxu0 0
      %830 = vmatmul.mubr.bf16.gmra.mxu0 %v641
      %v831 = vpop.f32.mrf.mxu0
      %v832 = vadd.f32 %v668, %v831
      %v833 = vpop.f32.mrf.mxu0
      %v834 = vpop.f32.mrf.mxu0
      %v835 = vadd.f32 %v668, %v834
      %v836 = vpop.f32.mrf.mxu0
      %837 = vmatprep.mubr.bf16.mxu0 0
      %838 = vmatmul.mubr.bf16.gmra.mxu0 %v642
      %v839 = vpop.f32.mrf.mxu0
      %v840 = vadd.f32 %v668, %v839
      %v841 = vpop.f32.mrf.mxu0
      %v842 = vpop.f32.mrf.mxu0
      %v843 = vadd.f32 %v668, %v842
      %v844 = vpop.f32.mrf.mxu0
      %845 = vmatprep.mubr.bf16.mxu0 0
      %846 = vmatmul.mubr.bf16.gmra.mxu0 %v643
      %v847 = vpop.f32.mrf.mxu0
      %v848 = vadd.f32 %v668, %v847
      %v849 = vpop.f32.mrf.mxu0
      %v850 = vpop.f32.mrf.mxu0
      %v851 = vadd.f32 %v668, %v850
      %v852 = vpop.f32.mrf.mxu0
      %853 = vmatprep.mubr.bf16.mxu0 0
      %854 = vmatmul.mubr.bf16.gmra.mxu0 %v644
      %v855 = vpop.f32.mrf.mxu0
      %v856 = vadd.f32 %v668, %v855
      %v857 = vpop.f32.mrf.mxu0
      %v858 = vpop.f32.mrf.mxu0
      %v859 = vadd.f32 %v668, %v858
      %v860 = vpop.f32.mrf.mxu0
      %861 = vmatprep.mubr.bf16.mxu0 0
      %862 = vmatmul.mubr.bf16.gmra.mxu0 %v645
      %v863 = vpop.f32.mrf.mxu0
      %v864 = vadd.f32 %v668, %v863
      %v865 = vpop.f32.mrf.mxu0
      %v866 = vpop.f32.mrf.mxu0
      %v867 = vadd.f32 %v668, %v866
      %v868 = vpop.f32.mrf.mxu0
      %869 = vmatprep.mubr.bf16.mxu0 0
      %870 = vmatmul.mubr.bf16.gmra.mxu0 %v646
      %v871 = vpop.f32.mrf.mxu0
      %v872 = vadd.f32 %v668, %v871
      %v873 = vpop.f32.mrf.mxu0
      %v874 = vpop.f32.mrf.mxu0
      %v875 = vadd.f32 %v668, %v874
      %v876 = vpop.f32.mrf.mxu0
      %877 = vdwg.mxu0
      %vm878 = vcmp.gt.f32.partialorder %v752, 0.0
      %vm879 = vcmp.gt.f32.partialorder %v755, 0.0
      %vm880 = vcmp.gt.f32.partialorder %v760, 0.0
      %vm881 = vcmp.gt.f32.partialorder %v763, 0.0
      %vm882 = vcmp.gt.f32.partialorder %v768, 0.0
      %vm883 = vcmp.gt.f32.partialorder %v771, 0.0
      %vm884 = vcmp.gt.f32.partialorder %v776, 0.0
      %vm885 = vcmp.gt.f32.partialorder %v779, 0.0
      %vm886 = vcmp.gt.f32.partialorder %v784, 0.0
      %vm887 = vcmp.gt.f32.partialorder %v787, 0.0
      %vm888 = vcmp.gt.f32.partialorder %v792, 0.0
      %vm889 = vcmp.gt.f32.partialorder %v795, 0.0
      %vm890 = vcmp.gt.f32.partialorder %v800, 0.0
      %vm891 = vcmp.gt.f32.partialorder %v803, 0.0
      %vm892 = vcmp.gt.f32.partialorder %v808, 0.0
      %vm893 = vcmp.gt.f32.partialorder %v811, 0.0
      %vm894 = vcmp.gt.f32.partialorder %v816, 0.0
      %vm895 = vcmp.gt.f32.partialorder %v819, 0.0
      %vm896 = vcmp.gt.f32.partialorder %v824, 0.0
      %vm897 = vcmp.gt.f32.partialorder %v827, 0.0
      %vm898 = vcmp.gt.f32.partialorder %v832, 0.0
      %vm899 = vcmp.gt.f32.partialorder %v835, 0.0
      %vm900 = vcmp.gt.f32.partialorder %v840, 0.0
      %vm901 = vcmp.gt.f32.partialorder %v843, 0.0
      %vm902 = vcmp.gt.f32.partialorder %v848, 0.0
      %vm903 = vcmp.gt.f32.partialorder %v851, 0.0
      %vm904 = vcmp.gt.f32.partialorder %v856, 0.0
      %vm905 = vcmp.gt.f32.partialorder %v859, 0.0
      %vm906 = vcmp.gt.f32.partialorder %v864, 0.0
      %vm907 = vcmp.gt.f32.partialorder %v867, 0.0
      %vm908 = vcmp.gt.f32.partialorder %v872, 0.0
      %vm909 = vcmp.gt.f32.partialorder %v875, 0.0
      %v910 = vmul.f32 %v752, 0.2
      %v911 = vmul.f32 %v755, 0.2
      %v912 = vmul.f32 %v760, 0.2
      %v913 = vmul.f32 %v763, 0.2
      %v914 = vmul.f32 %v768, 0.2
      %v915 = vmul.f32 %v771, 0.2
      %v916 = vmul.f32 %v776, 0.2
      %v917 = vmul.f32 %v779, 0.2
      %v918 = vmul.f32 %v784, 0.2
      %v919 = vmul.f32 %v787, 0.2
      %v920 = vmul.f32 %v792, 0.2
      %v921 = vmul.f32 %v795, 0.2
      %v922 = vmul.f32 %v800, 0.2
      %v923 = vmul.f32 %v803, 0.2
      %v924 = vmul.f32 %v808, 0.2
      %v925 = vmul.f32 %v811, 0.2
      %v926 = vmul.f32 %v816, 0.2
      %v927 = vmul.f32 %v819, 0.2
      %v928 = vmul.f32 %v824, 0.2
      %v929 = vmul.f32 %v827, 0.2
      %v930 = vmul.f32 %v832, 0.2
      %v931 = vmul.f32 %v835, 0.2
      %v932 = vmul.f32 %v840, 0.2
      %v933 = vmul.f32 %v843, 0.2
      %v934 = vmul.f32 %v848, 0.2
      %v935 = vmul.f32 %v851, 0.2
      %v936 = vmul.f32 %v856, 0.2
      %v937 = vmul.f32 %v859, 0.2
      %v938 = vmul.f32 %v864, 0.2
      %v939 = vmul.f32 %v867, 0.2
      %v940 = vmul.f32 %v872, 0.2
      %v941 = vmul.f32 %v875, 0.2
      %v942 = vsel %vm878, %v752, %v910
      %v943 = vsel %vm879, %v755, %v911
      %v944 = vsel %vm880, %v760, %v912
      %v945 = vsel %vm881, %v763, %v913
      %v946 = vsel %vm882, %v768, %v914
      %v947 = vsel %vm883, %v771, %v915
      %v948 = vsel %vm884, %v776, %v916
      %v949 = vsel %vm885, %v779, %v917
      %v950 = vsel %vm886, %v784, %v918
      %v951 = vsel %vm887, %v787, %v919
      %v952 = vsel %vm888, %v792, %v920
      %v953 = vsel %vm889, %v795, %v921
      %v954 = vsel %vm890, %v800, %v922
      %v955 = vsel %vm891, %v803, %v923
      %v956 = vsel %vm892, %v808, %v924
      %v957 = vsel %vm893, %v811, %v925
      %v958 = vsel %vm894, %v816, %v926
      %v959 = vsel %vm895, %v819, %v927
      %v960 = vsel %vm896, %v824, %v928
      %v961 = vsel %vm897, %v827, %v929
      %v962 = vsel %vm898, %v832, %v930
      %v963 = vsel %vm899, %v835, %v931
      %v964 = vsel %vm900, %v840, %v932
      %v965 = vsel %vm901, %v843, %v933
      %v966 = vsel %vm902, %v848, %v934
      %v967 = vsel %vm903, %v851, %v935
      %v968 = vsel %vm904, %v856, %v936
      %v969 = vsel %vm905, %v859, %v937
      %v970 = vsel %vm906, %v864, %v938
      %v971 = vsel %vm907, %v867, %v939
      %v972 = vsel %vm908, %v872, %v940
      %v973 = vsel %vm909, %v875, %v941
      %v974 = vpack.c.bf16 %v943, %v942
      %v975 = vpack.c.bf16 %v945, %v944
      %v976 = vpack.c.bf16 %v947, %v946
      %v977 = vpack.c.bf16 %v949, %v948
      %v978 = vpack.c.bf16 %v951, %v950
      %v979 = vpack.c.bf16 %v953, %v952
      %v980 = vpack.c.bf16 %v955, %v954
      %v981 = vpack.c.bf16 %v957, %v956
      %v982 = vpack.c.bf16 %v959, %v958
      %v983 = vpack.c.bf16 %v961, %v960
      %v984 = vpack.c.bf16 %v963, %v962
      %v985 = vpack.c.bf16 %v965, %v964
      %v986 = vpack.c.bf16 %v967, %v966
      %v987 = vpack.c.bf16 %v969, %v968
      %v988 = vpack.c.bf16 %v971, %v970
      %v989 = vpack.c.bf16 %v973, %v972
      %s990 = scalar_lea.vmem %s1, 128
      %v991 = vld [vmem:[%s990] sm:$0xf]
      %v992 = vld [vmem:[%s990 + $0x4] sm:$0xf]
      %v993 = vld [vmem:[%s990 + $0x8] sm:$0xf]
      %v994 = vld [vmem:[%s990 + $0xc] sm:$0xf]
      %v995 = vld [vmem:[%s990 + $0x10] sm:$0xf]
      %v996 = vld [vmem:[%s990 + $0x14] sm:$0xf]
      %v997 = vld [vmem:[%s990 + $0x18] sm:$0xf]
      %v998 = vld [vmem:[%s990 + $0x1c] sm:$0xf]
      %v999 = vld [vmem:[%s990 + $0x20] sm:$0xf]
      %v1000 = vld [vmem:[%s990 + $0x24] sm:$0xf]
      %v1001 = vld [vmem:[%s990 + $0x28] sm:$0xf]
      %v1002 = vld [vmem:[%s990 + $0x2c] sm:$0xf]
      %v1003 = vld [vmem:[%s990 + $0x30] sm:$0xf]
      %v1004 = vld [vmem:[%s990 + $0x34] sm:$0xf]
      %v1005 = vld [vmem:[%s990 + $0x38] sm:$0xf]
      %v1006 = vld [vmem:[%s990 + $0x3c] sm:$0xf]
      %v1007 = vld [vmem:[%s2 + $0x2] sm:$0x1]
      %v1008 = vlaneseq
      %v1009 = vshrl.u32 %v1008, 7
      %v1010 = vsub.s32 0, %v1009
      %v1011 = vrot.slane %v1007, %v1010
      %v1028 = vunpack.c.l.b16 %v991
      %v1029 = vunpack.c.l.b16 %v992
      %v1030 = vunpack.c.l.b16 %v993
      %v1031 = vunpack.c.l.b16 %v994
      %v1032 = vunpack.c.l.b16 %v995
      %v1033 = vunpack.c.l.b16 %v996
      %v1034 = vunpack.c.l.b16 %v997
      %v1035 = vunpack.c.l.b16 %v998
      %v1036 = vunpack.c.l.b16 %v999
      %v1037 = vunpack.c.l.b16 %v1000
      %v1038 = vunpack.c.l.b16 %v1001
      %v1039 = vunpack.c.l.b16 %v1002
      %v1040 = vunpack.c.l.b16 %v1003
      %v1041 = vunpack.c.l.b16 %v1004
      %v1042 = vunpack.c.l.b16 %v1005
      %v1043 = vunpack.c.l.b16 %v1006
      %v1044 = vpack.c.b16 %v1029, %v1028
      %v1045 = vpack.c.b16 %v1031, %v1030
      %v1046 = vpack.c.b16 %v1033, %v1032
      %v1047 = vpack.c.b16 %v1035, %v1034
      %v1048 = vpack.c.b16 %v1037, %v1036
      %v1049 = vpack.c.b16 %v1039, %v1038
      %v1050 = vpack.c.b16 %v1041, %v1040
      %v1051 = vpack.c.b16 %v1043, %v1042
      %1060 = vmatprep.subr.bf16.mxu0 0
      %1061 = vmatpush1.bf16.msra.mxu0 %v1051
      %1062 = vmatprep.subr.bf16.mxu0 0
      %1063 = vmatpush1.bf16.msra.mxu0 %v1050
      %1064 = vmatprep.subr.bf16.mxu0 0
      %1065 = vmatpush1.bf16.msra.mxu0 %v1049
      %1066 = vmatprep.subr.bf16.mxu0 0
      %1067 = vmatpush1.bf16.msra.mxu0 %v1048
      %1068 = vmatprep.subr.bf16.mxu0 0
      %1069 = vmatpush1.bf16.msra.mxu0 %v1047
      %1070 = vmatprep.subr.bf16.mxu0 0
      %1071 = vmatpush1.bf16.msra.mxu0 %v1046
      %1072 = vmatprep.subr.bf16.mxu0 0
      %1073 = vmatpush1.bf16.msra.mxu0 %v1045
      %1074 = vmatprep.subr.bf16.mxu0 0
      %1075 = vmatpush1.bf16.msra.mxu0 %v1044
      %1076 = vmatprep.subr.bf16.mxu0 0
      %1077 = vmatpush2.bf16.msra.mxu0 0
      %1078 = vmatprep.subr.bf16.mxu0 0
      %1079 = vmatpush2.bf16.msra.mxu0 0
      %1080 = vmatprep.subr.bf16.mxu0 0
      %1081 = vmatpush2.bf16.msra.mxu0 0
      %1082 = vmatprep.subr.bf16.mxu0 0
      %1083 = vmatpush2.bf16.msra.mxu0 0
      %1084 = vmatprep.subr.bf16.mxu0 0
      %1085 = vmatpush2.bf16.msra.mxu0 0
      %1086 = vmatprep.subr.bf16.mxu0 0
      %1087 = vmatpush2.bf16.msra.mxu0 0
      %1088 = vmatprep.subr.bf16.mxu0 0
      %1089 = vmatpush2.bf16.msra.mxu0 0
      %1090 = vmatprep.subr.bf16.mxu0 0
      %1091 = vmatpush2.bf16.msra.mxu0 0
      %1092 = vmatprep.mubr.bf16.mxu0 0
      %1093 = vmatmul.mubr.bf16.gmra.mxu0 %v974
      %v1094 = vpop.f32.mrf.mxu0
      %v1095 = vadd.f32 %v1011, %v1094
      %v1096 = vpop.f32.mrf.mxu0
      %v1097 = vpop.f32.mrf.mxu0
      %v1098 = vadd.f32 %v1011, %v1097
      %v1099 = vpop.f32.mrf.mxu0
      %1100 = vmatprep.mubr.bf16.mxu0 0
      %1101 = vmatmul.mubr.bf16.gmra.mxu0 %v975
      %v1102 = vpop.f32.mrf.mxu0
      %v1103 = vadd.f32 %v1011, %v1102
      %v1104 = vpop.f32.mrf.mxu0
      %v1105 = vpop.f32.mrf.mxu0
      %v1106 = vadd.f32 %v1011, %v1105
      %v1107 = vpop.f32.mrf.mxu0
      %1108 = vmatprep.mubr.bf16.mxu0 0
      %1109 = vmatmul.mubr.bf16.gmra.mxu0 %v976
      %v1110 = vpop.f32.mrf.mxu0
      %v1111 = vadd.f32 %v1011, %v1110
      %v1112 = vpop.f32.mrf.mxu0
      %v1113 = vpop.f32.mrf.mxu0
      %v1114 = vadd.f32 %v1011, %v1113
      %v1115 = vpop.f32.mrf.mxu0
      %1116 = vmatprep.mubr.bf16.mxu0 0
      %1117 = vmatmul.mubr.bf16.gmra.mxu0 %v977
      %v1118 = vpop.f32.mrf.mxu0
      %v1119 = vadd.f32 %v1011, %v1118
      %v1120 = vpop.f32.mrf.mxu0
      %v1121 = vpop.f32.mrf.mxu0
      %v1122 = vadd.f32 %v1011, %v1121
      %v1123 = vpop.f32.mrf.mxu0
      %1124 = vmatprep.mubr.bf16.mxu0 0
      %1125 = vmatmul.mubr.bf16.gmra.mxu0 %v978
      %v1126 = vpop.f32.mrf.mxu0
      %v1127 = vadd.f32 %v1011, %v1126
      %v1128 = vpop.f32.mrf.mxu0
      %v1129 = vpop.f32.mrf.mxu0
      %v1130 = vadd.f32 %v1011, %v1129
      %v1131 = vpop.f32.mrf.mxu0
      %1132 = vmatprep.mubr.bf16.mxu0 0
      %1133 = vmatmul.mubr.bf16.gmra.mxu0 %v979
      %v1134 = vpop.f32.mrf.mxu0
      %v1135 = vadd.f32 %v1011, %v1134
      %v1136 = vpop.f32.mrf.mxu0
      %v1137 = vpop.f32.mrf.mxu0
      %v1138 = vadd.f32 %v1011, %v1137
      %v1139 = vpop.f32.mrf.mxu0
      %1140 = vmatprep.mubr.bf16.mxu0 0
      %1141 = vmatmul.mubr.bf16.gmra.mxu0 %v980
      %v1142 = vpop.f32.mrf.mxu0
      %v1143 = vadd.f32 %v1011, %v1142
      %v1144 = vpop.f32.mrf.mxu0
      %v1145 = vpop.f32.mrf.mxu0
      %v1146 = vadd.f32 %v1011, %v1145
      %v1147 = vpop.f32.mrf.mxu0
      %1148 = vmatprep.mubr.bf16.mxu0 0
      %1149 = vmatmul.mubr.bf16.gmra.mxu0 %v981
      %v1150 = vpop.f32.mrf.mxu0
      %v1151 = vadd.f32 %v1011, %v1150
      %v1152 = vpop.f32.mrf.mxu0
      %v1153 = vpop.f32.mrf.mxu0
      %v1154 = vadd.f32 %v1011, %v1153
      %v1155 = vpop.f32.mrf.mxu0
      %1156 = vmatprep.mubr.bf16.mxu0 0
      %1157 = vmatmul.mubr.bf16.gmra.mxu0 %v982
      %v1158 = vpop.f32.mrf.mxu0
      %v1159 = vadd.f32 %v1011, %v1158
      %v1160 = vpop.f32.mrf.mxu0
      %v1161 = vpop.f32.mrf.mxu0
      %v1162 = vadd.f32 %v1011, %v1161
      %v1163 = vpop.f32.mrf.mxu0
      %1164 = vmatprep.mubr.bf16.mxu0 0
      %1165 = vmatmul.mubr.bf16.gmra.mxu0 %v983
      %v1166 = vpop.f32.mrf.mxu0
      %v1167 = vadd.f32 %v1011, %v1166
      %v1168 = vpop.f32.mrf.mxu0
      %v1169 = vpop.f32.mrf.mxu0
      %v1170 = vadd.f32 %v1011, %v1169
      %v1171 = vpop.f32.mrf.mxu0
      %1172 = vmatprep.mubr.bf16.mxu0 0
      %1173 = vmatmul.mubr.bf16.gmra.mxu0 %v984
      %v1174 = vpop.f32.mrf.mxu0
      %v1175 = vadd.f32 %v1011, %v1174
      %v1176 = vpop.f32.mrf.mxu0
      %v1177 = vpop.f32.mrf.mxu0
      %v1178 = vadd.f32 %v1011, %v1177
      %v1179 = vpop.f32.mrf.mxu0
      %1180 = vmatprep.mubr.bf16.mxu0 0
      %1181 = vmatmul.mubr.bf16.gmra.mxu0 %v985
      %v1182 = vpop.f32.mrf.mxu0
      %v1183 = vadd.f32 %v1011, %v1182
      %v1184 = vpop.f32.mrf.mxu0
      %v1185 = vpop.f32.mrf.mxu0
      %v1186 = vadd.f32 %v1011, %v1185
      %v1187 = vpop.f32.mrf.mxu0
      %1188 = vmatprep.mubr.bf16.mxu0 0
      %1189 = vmatmul.mubr.bf16.gmra.mxu0 %v986
      %v1190 = vpop.f32.mrf.mxu0
      %v1191 = vadd.f32 %v1011, %v1190
      %v1192 = vpop.f32.mrf.mxu0
      %v1193 = vpop.f32.mrf.mxu0
      %v1194 = vadd.f32 %v1011, %v1193
      %v1195 = vpop.f32.mrf.mxu0
      %1196 = vmatprep.mubr.bf16.mxu0 0
      %1197 = vmatmul.mubr.bf16.gmra.mxu0 %v987
      %v1198 = vpop.f32.mrf.mxu0
      %v1199 = vadd.f32 %v1011, %v1198
      %v1200 = vpop.f32.mrf.mxu0
      %v1201 = vpop.f32.mrf.mxu0
      %v1202 = vadd.f32 %v1011, %v1201
      %v1203 = vpop.f32.mrf.mxu0
      %1204 = vmatprep.mubr.bf16.mxu0 0
      %1205 = vmatmul.mubr.bf16.gmra.mxu0 %v988
      %v1206 = vpop.f32.mrf.mxu0
      %v1207 = vadd.f32 %v1011, %v1206
      %v1208 = vpop.f32.mrf.mxu0
      %v1209 = vpop.f32.mrf.mxu0
      %v1210 = vadd.f32 %v1011, %v1209
      %v1211 = vpop.f32.mrf.mxu0
      %1212 = vmatprep.mubr.bf16.mxu0 0
      %1213 = vmatmul.mubr.bf16.gmra.mxu0 %v989
      %v1214 = vpop.f32.mrf.mxu0
      %v1215 = vadd.f32 %v1011, %v1214
      %v1216 = vpop.f32.mrf.mxu0
      %v1217 = vpop.f32.mrf.mxu0
      %v1218 = vadd.f32 %v1011, %v1217
      %v1219 = vpop.f32.mrf.mxu0
      %1220 = vdwg.mxu0
      %vm1221 = vcmp.gt.f32.partialorder %v1095, 0.0
      %vm1222 = vcmp.gt.f32.partialorder %v1098, 0.0
      %vm1223 = vcmp.gt.f32.partialorder %v1103, 0.0
      %vm1224 = vcmp.gt.f32.partialorder %v1106, 0.0
      %vm1225 = vcmp.gt.f32.partialorder %v1111, 0.0
      %vm1226 = vcmp.gt.f32.partialorder %v1114, 0.0
      %vm1227 = vcmp.gt.f32.partialorder %v1119, 0.0
      %vm1228 = vcmp.gt.f32.partialorder %v1122, 0.0
      %vm1229 = vcmp.gt.f32.partialorder %v1127, 0.0
      %vm1230 = vcmp.gt.f32.partialorder %v1130, 0.0
      %vm1231 = vcmp.gt.f32.partialorder %v1135, 0.0
      %vm1232 = vcmp.gt.f32.partialorder %v1138, 0.0
      %vm1233 = vcmp.gt.f32.partialorder %v1143, 0.0
      %vm1234 = vcmp.gt.f32.partialorder %v1146, 0.0
      %vm1235 = vcmp.gt.f32.partialorder %v1151, 0.0
      %vm1236 = vcmp.gt.f32.partialorder %v1154, 0.0
      %vm1237 = vcmp.gt.f32.partialorder %v1159, 0.0
      %vm1238 = vcmp.gt.f32.partialorder %v1162, 0.0
      %vm1239 = vcmp.gt.f32.partialorder %v1167, 0.0
      %vm1240 = vcmp.gt.f32.partialorder %v1170, 0.0
      %vm1241 = vcmp.gt.f32.partialorder %v1175, 0.0
      %vm1242 = vcmp.gt.f32.partialorder %v1178, 0.0
      %vm1243 = vcmp.gt.f32.partialorder %v1183, 0.0
      %vm1244 = vcmp.gt.f32.partialorder %v1186, 0.0
      %vm1245 = vcmp.gt.f32.partialorder %v1191, 0.0
      %vm1246 = vcmp.gt.f32.partialorder %v1194, 0.0
      %vm1247 = vcmp.gt.f32.partialorder %v1199, 0.0
      %vm1248 = vcmp.gt.f32.partialorder %v1202, 0.0
      %vm1249 = vcmp.gt.f32.partialorder %v1207, 0.0
      %vm1250 = vcmp.gt.f32.partialorder %v1210, 0.0
      %vm1251 = vcmp.gt.f32.partialorder %v1215, 0.0
      %vm1252 = vcmp.gt.f32.partialorder %v1218, 0.0
      %v1253 = vmul.f32 %v1095, 0.2
      %v1254 = vmul.f32 %v1098, 0.2
      %v1255 = vmul.f32 %v1103, 0.2
      %v1256 = vmul.f32 %v1106, 0.2
      %v1257 = vmul.f32 %v1111, 0.2
      %v1258 = vmul.f32 %v1114, 0.2
      %v1259 = vmul.f32 %v1119, 0.2
      %v1260 = vmul.f32 %v1122, 0.2
      %v1261 = vmul.f32 %v1127, 0.2
      %v1262 = vmul.f32 %v1130, 0.2
      %v1263 = vmul.f32 %v1135, 0.2
      %v1264 = vmul.f32 %v1138, 0.2
      %v1265 = vmul.f32 %v1143, 0.2
      %v1266 = vmul.f32 %v1146, 0.2
      %v1267 = vmul.f32 %v1151, 0.2
      %v1268 = vmul.f32 %v1154, 0.2
      %v1269 = vmul.f32 %v1159, 0.2
      %v1270 = vmul.f32 %v1162, 0.2
      %v1271 = vmul.f32 %v1167, 0.2
      %v1272 = vmul.f32 %v1170, 0.2
      %v1273 = vmul.f32 %v1175, 0.2
      %v1274 = vmul.f32 %v1178, 0.2
      %v1275 = vmul.f32 %v1183, 0.2
      %v1276 = vmul.f32 %v1186, 0.2
      %v1277 = vmul.f32 %v1191, 0.2
      %v1278 = vmul.f32 %v1194, 0.2
      %v1279 = vmul.f32 %v1199, 0.2
      %v1280 = vmul.f32 %v1202, 0.2
      %v1281 = vmul.f32 %v1207, 0.2
      %v1282 = vmul.f32 %v1210, 0.2
      %v1283 = vmul.f32 %v1215, 0.2
      %v1284 = vmul.f32 %v1218, 0.2
      %v1285 = vsel %vm1221, %v1095, %v1253
      %v1286 = vsel %vm1222, %v1098, %v1254
      %v1287 = vsel %vm1223, %v1103, %v1255
      %v1288 = vsel %vm1224, %v1106, %v1256
      %v1289 = vsel %vm1225, %v1111, %v1257
      %v1290 = vsel %vm1226, %v1114, %v1258
      %v1291 = vsel %vm1227, %v1119, %v1259
      %v1292 = vsel %vm1228, %v1122, %v1260
      %v1293 = vsel %vm1229, %v1127, %v1261
      %v1294 = vsel %vm1230, %v1130, %v1262
      %v1295 = vsel %vm1231, %v1135, %v1263
      %v1296 = vsel %vm1232, %v1138, %v1264
      %v1297 = vsel %vm1233, %v1143, %v1265
      %v1298 = vsel %vm1234, %v1146, %v1266
      %v1299 = vsel %vm1235, %v1151, %v1267
      %v1300 = vsel %vm1236, %v1154, %v1268
      %v1301 = vsel %vm1237, %v1159, %v1269
      %v1302 = vsel %vm1238, %v1162, %v1270
      %v1303 = vsel %vm1239, %v1167, %v1271
      %v1304 = vsel %vm1240, %v1170, %v1272
      %v1305 = vsel %vm1241, %v1175, %v1273
      %v1306 = vsel %vm1242, %v1178, %v1274
      %v1307 = vsel %vm1243, %v1183, %v1275
      %v1308 = vsel %vm1244, %v1186, %v1276
      %v1309 = vsel %vm1245, %v1191, %v1277
      %v1310 = vsel %vm1246, %v1194, %v1278
      %v1311 = vsel %vm1247, %v1199, %v1279
      %v1312 = vsel %vm1248, %v1202, %v1280
      %v1313 = vsel %vm1249, %v1207, %v1281
      %v1314 = vsel %vm1250, %v1210, %v1282
      %v1315 = vsel %vm1251, %v1215, %v1283
      %v1316 = vsel %vm1252, %v1218, %v1284
      %v1317 = vpack.c.bf16 %v1286, %v1285
      %v1318 = vpack.c.bf16 %v1288, %v1287
      %v1319 = vpack.c.bf16 %v1290, %v1289
      %v1320 = vpack.c.bf16 %v1292, %v1291
      %v1321 = vpack.c.bf16 %v1294, %v1293
      %v1322 = vpack.c.bf16 %v1296, %v1295
      %v1323 = vpack.c.bf16 %v1298, %v1297
      %v1324 = vpack.c.bf16 %v1300, %v1299
      %v1325 = vpack.c.bf16 %v1302, %v1301
      %v1326 = vpack.c.bf16 %v1304, %v1303
      %v1327 = vpack.c.bf16 %v1306, %v1305
      %v1328 = vpack.c.bf16 %v1308, %v1307
      %v1329 = vpack.c.bf16 %v1310, %v1309
      %v1330 = vpack.c.bf16 %v1312, %v1311
      %v1331 = vpack.c.bf16 %v1314, %v1313
      %v1332 = vpack.c.bf16 %v1316, %v1315
      %s1333 = scalar_lea.vmem %s1, 192
      %v1334 = vld [vmem:[%s1333] sm:$0xf]
      %v1335 = vld [vmem:[%s1333 + $0x4] sm:$0xf]
      %v1336 = vld [vmem:[%s1333 + $0x8] sm:$0xf]
      %v1337 = vld [vmem:[%s1333 + $0xc] sm:$0xf]
      %v1338 = vld [vmem:[%s1333 + $0x10] sm:$0xf]
      %v1339 = vld [vmem:[%s1333 + $0x14] sm:$0xf]
      %v1340 = vld [vmem:[%s1333 + $0x18] sm:$0xf]
      %v1341 = vld [vmem:[%s1333 + $0x1c] sm:$0xf]
      %v1342 = vld [vmem:[%s1333 + $0x20] sm:$0xf]
      %v1343 = vld [vmem:[%s1333 + $0x24] sm:$0xf]
      %v1344 = vld [vmem:[%s1333 + $0x28] sm:$0xf]
      %v1345 = vld [vmem:[%s1333 + $0x2c] sm:$0xf]
      %v1346 = vld [vmem:[%s1333 + $0x30] sm:$0xf]
      %v1347 = vld [vmem:[%s1333 + $0x34] sm:$0xf]
      %v1348 = vld [vmem:[%s1333 + $0x38] sm:$0xf]
      %v1349 = vld [vmem:[%s1333 + $0x3c] sm:$0xf]
      %v1350 = vld [vmem:[%s2 + $0x3] sm:$0x1]
      %v1351 = vlaneseq
      %v1352 = vshrl.u32 %v1351, 7
      %v1353 = vsub.s32 0, %v1352
      %v1354 = vrot.slane %v1350, %v1353
      %v1371 = vunpack.c.l.b16 %v1334
      %v1372 = vunpack.c.l.b16 %v1335
      %v1373 = vunpack.c.l.b16 %v1336
      %v1374 = vunpack.c.l.b16 %v1337
      %v1375 = vunpack.c.l.b16 %v1338
      %v1376 = vunpack.c.l.b16 %v1339
      %v1377 = vunpack.c.l.b16 %v1340
      %v1378 = vunpack.c.l.b16 %v1341
      %v1379 = vunpack.c.l.b16 %v1342
      %v1380 = vunpack.c.l.b16 %v1343
      %v1381 = vunpack.c.l.b16 %v1344
      %v1382 = vunpack.c.l.b16 %v1345
      %v1383 = vunpack.c.l.b16 %v1346
      %v1384 = vunpack.c.l.b16 %v1347
      %v1385 = vunpack.c.l.b16 %v1348
      %v1386 = vunpack.c.l.b16 %v1349
      %v1387 = vpack.c.b16 %v1372, %v1371
      %v1388 = vpack.c.b16 %v1374, %v1373
      %v1389 = vpack.c.b16 %v1376, %v1375
      %v1390 = vpack.c.b16 %v1378, %v1377
      %v1391 = vpack.c.b16 %v1380, %v1379
      %v1392 = vpack.c.b16 %v1382, %v1381
      %v1393 = vpack.c.b16 %v1384, %v1383
      %v1394 = vpack.c.b16 %v1386, %v1385
      %1403 = vmatprep.subr.bf16.mxu0 0
      %1404 = vmatpush1.bf16.msra.mxu0 %v1394
      %1405 = vmatprep.subr.bf16.mxu0 0
      %1406 = vmatpush1.bf16.msra.mxu0 %v1393
      %1407 = vmatprep.subr.bf16.mxu0 0
      %1408 = vmatpush1.bf16.msra.mxu0 %v1392
      %1409 = vmatprep.subr.bf16.mxu0 0
      %1410 = vmatpush1.bf16.msra.mxu0 %v1391
      %1411 = vmatprep.subr.bf16.mxu0 0
      %1412 = vmatpush1.bf16.msra.mxu0 %v1390
      %1413 = vmatprep.subr.bf16.mxu0 0
      %1414 = vmatpush1.bf16.msra.mxu0 %v1389
      %1415 = vmatprep.subr.bf16.mxu0 0
      %1416 = vmatpush1.bf16.msra.mxu0 %v1388
      %1417 = vmatprep.subr.bf16.mxu0 0
      %1418 = vmatpush1.bf16.msra.mxu0 %v1387
      %1419 = vmatprep.subr.bf16.mxu0 0
      %1420 = vmatpush2.bf16.msra.mxu0 0
      %1421 = vmatprep.subr.bf16.mxu0 0
      %1422 = vmatpush2.bf16.msra.mxu0 0
      %1423 = vmatprep.subr.bf16.mxu0 0
      %1424 = vmatpush2.bf16.msra.mxu0 0
      %1425 = vmatprep.subr.bf16.mxu0 0
      %1426 = vmatpush2.bf16.msra.mxu0 0
      %1427 = vmatprep.subr.bf16.mxu0 0
      %1428 = vmatpush2.bf16.msra.mxu0 0
      %1429 = vmatprep.subr.bf16.mxu0 0
      %1430 = vmatpush2.bf16.msra.mxu0 0
      %1431 = vmatprep.subr.bf16.mxu0 0
      %1432 = vmatpush2.bf16.msra.mxu0 0
      %1433 = vmatprep.subr.bf16.mxu0 0
      %1434 = vmatpush2.bf16.msra.mxu0 0
      %1435 = vmatprep.mubr.bf16.mxu0 0
      %1436 = vmatmul.mubr.bf16.gmra.mxu0 %v1317
      %v1437 = vpop.f32.mrf.mxu0
      %v1438 = vadd.f32 %v1354, %v1437
      %v1439 = vpop.f32.mrf.mxu0
      %v1440 = vpop.f32.mrf.mxu0
      %v1441 = vadd.f32 %v1354, %v1440
      %v1442 = vpop.f32.mrf.mxu0
      %1443 = vmatprep.mubr.bf16.mxu0 0
      %1444 = vmatmul.mubr.bf16.gmra.mxu0 %v1318
      %v1445 = vpop.f32.mrf.mxu0
      %v1446 = vadd.f32 %v1354, %v1445
      %v1447 = vpop.f32.mrf.mxu0
      %v1448 = vpop.f32.mrf.mxu0
      %v1449 = vadd.f32 %v1354, %v1448
      %v1450 = vpop.f32.mrf.mxu0
      %1451 = vmatprep.mubr.bf16.mxu0 0
      %1452 = vmatmul.mubr.bf16.gmra.mxu0 %v1319
      %v1453 = vpop.f32.mrf.mxu0
      %v1454 = vadd.f32 %v1354, %v1453
      %v1455 = vpop.f32.mrf.mxu0
      %v1456 = vpop.f32.mrf.mxu0
      %v1457 = vadd.f32 %v1354, %v1456
      %v1458 = vpop.f32.mrf.mxu0
      %1459 = vmatprep.mubr.bf16.mxu0 0
      %1460 = vmatmul.mubr.bf16.gmra.mxu0 %v1320
      %v1461 = vpop.f32.mrf.mxu0
      %v1462 = vadd.f32 %v1354, %v1461
      %v1463 = vpop.f32.mrf.mxu0
      %v1464 = vpop.f32.mrf.mxu0
      %v1465 = vadd.f32 %v1354, %v1464
      %v1466 = vpop.f32.mrf.mxu0
      %1467 = vmatprep.mubr.bf16.mxu0 0
      %1468 = vmatmul.mubr.bf16.gmra.mxu0 %v1321
      %v1469 = vpop.f32.mrf.mxu0
      %v1470 = vadd.f32 %v1354, %v1469
      %v1471 = vpop.f32.mrf.mxu0
      %v1472 = vpop.f32.mrf.mxu0
      %v1473 = vadd.f32 %v1354, %v1472
      %v1474 = vpop.f32.mrf.mxu0
      %1475 = vmatprep.mubr.bf16.mxu0 0
      %1476 = vmatmul.mubr.bf16.gmra.mxu0 %v1322
      %v1477 = vpop.f32.mrf.mxu0
      %v1478 = vadd.f32 %v1354, %v1477
      %v1479 = vpop.f32.mrf.mxu0
      %v1480 = vpop.f32.mrf.mxu0
      %v1481 = vadd.f32 %v1354, %v1480
      %v1482 = vpop.f32.mrf.mxu0
      %1483 = vmatprep.mubr.bf16.mxu0 0
      %1484 = vmatmul.mubr.bf16.gmra.mxu0 %v1323
      %v1485 = vpop.f32.mrf.mxu0
      %v1486 = vadd.f32 %v1354, %v1485
      %v1487 = vpop.f32.mrf.mxu0
      %v1488 = vpop.f32.mrf.mxu0
      %v1489 = vadd.f32 %v1354, %v1488
      %v1490 = vpop.f32.mrf.mxu0
      %1491 = vmatprep.mubr.bf16.mxu0 0
      %1492 = vmatmul.mubr.bf16.gmra.mxu0 %v1324
      %v1493 = vpop.f32.mrf.mxu0
      %v1494 = vadd.f32 %v1354, %v1493
      %v1495 = vpop.f32.mrf.mxu0
      %v1496 = vpop.f32.mrf.mxu0
      %v1497 = vadd.f32 %v1354, %v1496
      %v1498 = vpop.f32.mrf.mxu0
      %1499 = vmatprep.mubr.bf16.mxu0 0
      %1500 = vmatmul.mubr.bf16.gmra.mxu0 %v1325
      %v1501 = vpop.f32.mrf.mxu0
      %v1502 = vadd.f32 %v1354, %v1501
      %v1503 = vpop.f32.mrf.mxu0
      %v1504 = vpop.f32.mrf.mxu0
      %v1505 = vadd.f32 %v1354, %v1504
      %v1506 = vpop.f32.mrf.mxu0
      %1507 = vmatprep.mubr.bf16.mxu0 0
      %1508 = vmatmul.mubr.bf16.gmra.mxu0 %v1326
      %v1509 = vpop.f32.mrf.mxu0
      %v1510 = vadd.f32 %v1354, %v1509
      %v1511 = vpop.f32.mrf.mxu0
      %v1512 = vpop.f32.mrf.mxu0
      %v1513 = vadd.f32 %v1354, %v1512
      %v1514 = vpop.f32.mrf.mxu0
      %1515 = vmatprep.mubr.bf16.mxu0 0
      %1516 = vmatmul.mubr.bf16.gmra.mxu0 %v1327
      %v1517 = vpop.f32.mrf.mxu0
      %v1518 = vadd.f32 %v1354, %v1517
      %v1519 = vpop.f32.mrf.mxu0
      %v1520 = vpop.f32.mrf.mxu0
      %v1521 = vadd.f32 %v1354, %v1520
      %v1522 = vpop.f32.mrf.mxu0
      %1523 = vmatprep.mubr.bf16.mxu0 0
      %1524 = vmatmul.mubr.bf16.gmra.mxu0 %v1328
      %v1525 = vpop.f32.mrf.mxu0
      %v1526 = vadd.f32 %v1354, %v1525
      %v1527 = vpop.f32.mrf.mxu0
      %v1528 = vpop.f32.mrf.mxu0
      %v1529 = vadd.f32 %v1354, %v1528
      %v1530 = vpop.f32.mrf.mxu0
      %1531 = vmatprep.mubr.bf16.mxu0 0
      %1532 = vmatmul.mubr.bf16.gmra.mxu0 %v1329
      %v1533 = vpop.f32.mrf.mxu0
      %v1534 = vadd.f32 %v1354, %v1533
      %v1535 = vpop.f32.mrf.mxu0
      %v1536 = vpop.f32.mrf.mxu0
      %v1537 = vadd.f32 %v1354, %v1536
      %v1538 = vpop.f32.mrf.mxu0
      %1539 = vmatprep.mubr.bf16.mxu0 0
      %1540 = vmatmul.mubr.bf16.gmra.mxu0 %v1330
      %v1541 = vpop.f32.mrf.mxu0
      %v1542 = vadd.f32 %v1354, %v1541
      %v1543 = vpop.f32.mrf.mxu0
      %v1544 = vpop.f32.mrf.mxu0
      %v1545 = vadd.f32 %v1354, %v1544
      %v1546 = vpop.f32.mrf.mxu0
      %1547 = vmatprep.mubr.bf16.mxu0 0
      %1548 = vmatmul.mubr.bf16.gmra.mxu0 %v1331
      %v1549 = vpop.f32.mrf.mxu0
      %v1550 = vadd.f32 %v1354, %v1549
      %v1551 = vpop.f32.mrf.mxu0
      %v1552 = vpop.f32.mrf.mxu0
      %v1553 = vadd.f32 %v1354, %v1552
      %v1554 = vpop.f32.mrf.mxu0
      %1555 = vmatprep.mubr.bf16.mxu0 0
      %1556 = vmatmul.mubr.bf16.gmra.mxu0 %v1332
      %v1557 = vpop.f32.mrf.mxu0
      %v1558 = vadd.f32 %v1354, %v1557
      %v1559 = vpop.f32.mrf.mxu0
      %v1560 = vpop.f32.mrf.mxu0
      %v1561 = vadd.f32 %v1354, %v1560
      %v1562 = vpop.f32.mrf.mxu0
      %1563 = vdwg.mxu0
      %v1564 = vld [vmem:[%s2 + $0x8] sm:$0x1]
      %v1565 = vpack.c.bf16 %v1441, %v1438
      %v1566 = vpack.c.bf16 %v1449, %v1446
      %v1567 = vpack.c.bf16 %v1457, %v1454
      %v1568 = vpack.c.bf16 %v1465, %v1462
      %v1569 = vpack.c.bf16 %v1473, %v1470
      %v1570 = vpack.c.bf16 %v1481, %v1478
      %v1571 = vpack.c.bf16 %v1489, %v1486
      %v1572 = vpack.c.bf16 %v1497, %v1494
      %v1573 = vpack.c.bf16 %v1505, %v1502
      %v1574 = vpack.c.bf16 %v1513, %v1510
      %v1575 = vpack.c.bf16 %v1521, %v1518
      %v1576 = vpack.c.bf16 %v1529, %v1526
      %v1577 = vpack.c.bf16 %v1537, %v1534
      %v1578 = vpack.c.bf16 %v1545, %v1542
      %v1579 = vpack.c.bf16 %v1553, %v1550
      %v1580 = vpack.c.bf16 %v1561, %v1558
      %s1581 = scalar_lea.vmem %s1, 320
      %v1582 = vld [vmem:[%s1581] sm:$0xf]
      %v1583 = vld [vmem:[%s1581 + $0x4] sm:$0xf]
      %v1584 = vld [vmem:[%s1581 + $0x8] sm:$0xf]
      %v1585 = vld [vmem:[%s1581 + $0xc] sm:$0xf]
      %v1586 = vld [vmem:[%s1581 + $0x10] sm:$0xf]
      %v1587 = vld [vmem:[%s1581 + $0x14] sm:$0xf]
      %v1588 = vld [vmem:[%s1581 + $0x18] sm:$0xf]
      %v1589 = vld [vmem:[%s1581 + $0x1c] sm:$0xf]
      %v1590 = vld [vmem:[%s1581 + $0x20] sm:$0xf]
      %v1591 = vld [vmem:[%s1581 + $0x24] sm:$0xf]
      %v1592 = vld [vmem:[%s1581 + $0x28] sm:$0xf]
      %v1593 = vld [vmem:[%s1581 + $0x2c] sm:$0xf]
      %v1594 = vld [vmem:[%s1581 + $0x30] sm:$0xf]
      %v1595 = vld [vmem:[%s1581 + $0x34] sm:$0xf]
      %v1596 = vld [vmem:[%s1581 + $0x38] sm:$0xf]
      %v1597 = vld [vmem:[%s1581 + $0x3c] sm:$0xf]
      %v1614 = vunpack.c.l.b16 %v1582
      %v1615 = vunpack.c.l.b16 %v1583
      %v1616 = vunpack.c.l.b16 %v1584
      %v1617 = vunpack.c.l.b16 %v1585
      %v1618 = vunpack.c.l.b16 %v1586
      %v1619 = vunpack.c.l.b16 %v1587
      %v1620 = vunpack.c.l.b16 %v1588
      %v1621 = vunpack.c.l.b16 %v1589
      %v1622 = vunpack.c.l.b16 %v1590
      %v1623 = vunpack.c.l.b16 %v1591
      %v1624 = vunpack.c.l.b16 %v1592
      %v1625 = vunpack.c.l.b16 %v1593
      %v1626 = vunpack.c.l.b16 %v1594
      %v1627 = vunpack.c.l.b16 %v1595
      %v1628 = vunpack.c.l.b16 %v1596
      %v1629 = vunpack.c.l.b16 %v1597
      %v1630 = vpack.c.b16 %v1615, %v1614
      %v1631 = vpack.c.b16 %v1617, %v1616
      %v1632 = vpack.c.b16 %v1619, %v1618
      %v1633 = vpack.c.b16 %v1621, %v1620
      %v1634 = vpack.c.b16 %v1623, %v1622
      %v1635 = vpack.c.b16 %v1625, %v1624
      %v1636 = vpack.c.b16 %v1627, %v1626
      %v1637 = vpack.c.b16 %v1629, %v1628
      %1646 = vmatprep.subr.bf16.mxu0 0
      %1647 = vmatpush1.bf16.msra.mxu0 %v1637
      %1648 = vmatprep.subr.bf16.mxu0 0
      %1649 = vmatpush1.bf16.msra.mxu0 %v1636
      %1650 = vmatprep.subr.bf16.mxu0 0
      %1651 = vmatpush1.bf16.msra.mxu0 %v1635
      %1652 = vmatprep.subr.bf16.mxu0 0
      %1653 = vmatpush1.bf16.msra.mxu0 %v1634
      %1654 = vmatprep.subr.bf16.mxu0 0
      %1655 = vmatpush1.bf16.msra.mxu0 %v1633
      %1656 = vmatprep.subr.bf16.mxu0 0
      %1657 = vmatpush1.bf16.msra.mxu0 %v1632
      %1658 = vmatprep.subr.bf16.mxu0 0
      %1659 = vmatpush1.bf16.msra.mxu0 %v1631
      %1660 = vmatprep.subr.bf16.mxu0 0
      %1661 = vmatpush1.bf16.msra.mxu0 %v1630
      %1662 = vmatprep.subr.bf16.mxu0 0
      %1663 = vmatpush2.bf16.msra.mxu0 0
      %1664 = vmatprep.subr.bf16.mxu0 0
      %1665 = vmatpush2.bf16.msra.mxu0 0
      %1666 = vmatprep.subr.bf16.mxu0 0
      %1667 = vmatpush2.bf16.msra.mxu0 0
      %1668 = vmatprep.subr.bf16.mxu0 0
      %1669 = vmatpush2.bf16.msra.mxu0 0
      %1670 = vmatprep.subr.bf16.mxu0 0
      %1671 = vmatpush2.bf16.msra.mxu0 0
      %1672 = vmatprep.subr.bf16.mxu0 0
      %1673 = vmatpush2.bf16.msra.mxu0 0
      %1674 = vmatprep.subr.bf16.mxu0 0
      %1675 = vmatpush2.bf16.msra.mxu0 0
      %1676 = vmatprep.subr.bf16.mxu0 0
      %1677 = vmatpush2.bf16.msra.mxu0 0
      %1678 = vmatprep.mubr.bf16.mxu0 0
      %1679 = vmatmul.mubr.bf16.gmra.mxu0 %v1565
      %v1680 = vpop.f32.mrf.mxu0
      %v1681 = vadd.f32 0.0, %v1680
      %v1682 = vpop.f32.mrf.mxu0
      %v1683 = vpop.f32.mrf.mxu0
      %v1684 = vadd.f32 0.0, %v1683
      %v1685 = vpop.f32.mrf.mxu0
      %1686 = vmatprep.mubr.bf16.mxu0 0
      %1687 = vmatmul.mubr.bf16.gmra.mxu0 %v1566
      %v1688 = vpop.f32.mrf.mxu0
      %v1689 = vadd.f32 0.0, %v1688
      %v1690 = vpop.f32.mrf.mxu0
      %v1691 = vpop.f32.mrf.mxu0
      %v1692 = vadd.f32 0.0, %v1691
      %v1693 = vpop.f32.mrf.mxu0
      %1694 = vmatprep.mubr.bf16.mxu0 0
      %1695 = vmatmul.mubr.bf16.gmra.mxu0 %v1567
      %v1696 = vpop.f32.mrf.mxu0
      %v1697 = vadd.f32 0.0, %v1696
      %v1698 = vpop.f32.mrf.mxu0
      %v1699 = vpop.f32.mrf.mxu0
      %v1700 = vadd.f32 0.0, %v1699
      %v1701 = vpop.f32.mrf.mxu0
      %1702 = vmatprep.mubr.bf16.mxu0 0
      %1703 = vmatmul.mubr.bf16.gmra.mxu0 %v1568
      %v1704 = vpop.f32.mrf.mxu0
      %v1705 = vadd.f32 0.0, %v1704
      %v1706 = vpop.f32.mrf.mxu0
      %v1707 = vpop.f32.mrf.mxu0
      %v1708 = vadd.f32 0.0, %v1707
      %v1709 = vpop.f32.mrf.mxu0
      %1710 = vmatprep.mubr.bf16.mxu0 0
      %1711 = vmatmul.mubr.bf16.gmra.mxu0 %v1569
      %v1712 = vpop.f32.mrf.mxu0
      %v1713 = vadd.f32 0.0, %v1712
      %v1714 = vpop.f32.mrf.mxu0
      %v1715 = vpop.f32.mrf.mxu0
      %v1716 = vadd.f32 0.0, %v1715
      %v1717 = vpop.f32.mrf.mxu0
      %1718 = vmatprep.mubr.bf16.mxu0 0
      %1719 = vmatmul.mubr.bf16.gmra.mxu0 %v1570
      %v1720 = vpop.f32.mrf.mxu0
      %v1721 = vadd.f32 0.0, %v1720
      %v1722 = vpop.f32.mrf.mxu0
      %v1723 = vpop.f32.mrf.mxu0
      %v1724 = vadd.f32 0.0, %v1723
      %v1725 = vpop.f32.mrf.mxu0
      %1726 = vmatprep.mubr.bf16.mxu0 0
      %1727 = vmatmul.mubr.bf16.gmra.mxu0 %v1571
      %v1728 = vpop.f32.mrf.mxu0
      %v1729 = vadd.f32 0.0, %v1728
      %v1730 = vpop.f32.mrf.mxu0
      %v1731 = vpop.f32.mrf.mxu0
      %v1732 = vadd.f32 0.0, %v1731
      %v1733 = vpop.f32.mrf.mxu0
      %1734 = vmatprep.mubr.bf16.mxu0 0
      %1735 = vmatmul.mubr.bf16.gmra.mxu0 %v1572
      %v1736 = vpop.f32.mrf.mxu0
      %v1737 = vadd.f32 0.0, %v1736
      %v1738 = vpop.f32.mrf.mxu0
      %v1739 = vpop.f32.mrf.mxu0
      %v1740 = vadd.f32 0.0, %v1739
      %v1741 = vpop.f32.mrf.mxu0
      %1742 = vmatprep.mubr.bf16.mxu0 0
      %1743 = vmatmul.mubr.bf16.gmra.mxu0 %v1573
      %v1744 = vpop.f32.mrf.mxu0
      %v1745 = vadd.f32 0.0, %v1744
      %v1746 = vpop.f32.mrf.mxu0
      %v1747 = vpop.f32.mrf.mxu0
      %v1748 = vadd.f32 0.0, %v1747
      %v1749 = vpop.f32.mrf.mxu0
      %1750 = vmatprep.mubr.bf16.mxu0 0
      %1751 = vmatmul.mubr.bf16.gmra.mxu0 %v1574
      %v1752 = vpop.f32.mrf.mxu0
      %v1753 = vadd.f32 0.0, %v1752
      %v1754 = vpop.f32.mrf.mxu0
      %v1755 = vpop.f32.mrf.mxu0
      %v1756 = vadd.f32 0.0, %v1755
      %v1757 = vpop.f32.mrf.mxu0
      %1758 = vmatprep.mubr.bf16.mxu0 0
      %1759 = vmatmul.mubr.bf16.gmra.mxu0 %v1575
      %v1760 = vpop.f32.mrf.mxu0
      %v1761 = vadd.f32 0.0, %v1760
      %v1762 = vpop.f32.mrf.mxu0
      %v1763 = vpop.f32.mrf.mxu0
      %v1764 = vadd.f32 0.0, %v1763
      %v1765 = vpop.f32.mrf.mxu0
      %1766 = vmatprep.mubr.bf16.mxu0 0
      %1767 = vmatmul.mubr.bf16.gmra.mxu0 %v1576
      %v1768 = vpop.f32.mrf.mxu0
      %v1769 = vadd.f32 0.0, %v1768
      %v1770 = vpop.f32.mrf.mxu0
      %v1771 = vpop.f32.mrf.mxu0
      %v1772 = vadd.f32 0.0, %v1771
      %v1773 = vpop.f32.mrf.mxu0
      %1774 = vmatprep.mubr.bf16.mxu0 0
      %1775 = vmatmul.mubr.bf16.gmra.mxu0 %v1577
      %v1776 = vpop.f32.mrf.mxu0
      %v1777 = vadd.f32 0.0, %v1776
      %v1778 = vpop.f32.mrf.mxu0
      %v1779 = vpop.f32.mrf.mxu0
      %v1780 = vadd.f32 0.0, %v1779
      %v1781 = vpop.f32.mrf.mxu0
      %1782 = vmatprep.mubr.bf16.mxu0 0
      %1783 = vmatmul.mubr.bf16.gmra.mxu0 %v1578
      %v1784 = vpop.f32.mrf.mxu0
      %v1785 = vadd.f32 0.0, %v1784
      %v1786 = vpop.f32.mrf.mxu0
      %v1787 = vpop.f32.mrf.mxu0
      %v1788 = vadd.f32 0.0, %v1787
      %v1789 = vpop.f32.mrf.mxu0
      %1790 = vmatprep.mubr.bf16.mxu0 0
      %1791 = vmatmul.mubr.bf16.gmra.mxu0 %v1579
      %v1792 = vpop.f32.mrf.mxu0
      %v1793 = vadd.f32 0.0, %v1792
      %v1794 = vpop.f32.mrf.mxu0
      %v1795 = vpop.f32.mrf.mxu0
      %v1796 = vadd.f32 0.0, %v1795
      %v1797 = vpop.f32.mrf.mxu0
      %1798 = vmatprep.mubr.bf16.mxu0 0
      %1799 = vmatmul.mubr.bf16.gmra.mxu0 %v1580
      %v1800 = vpop.f32.mrf.mxu0
      %v1801 = vadd.f32 0.0, %v1800
      %v1802 = vpop.f32.mrf.mxu0
      %v1803 = vpop.f32.mrf.mxu0
      %v1804 = vadd.f32 0.0, %v1803
      %v1805 = vpop.f32.mrf.mxu0
      %1806 = vdwg.mxu0
      %v1807 = vmul.f32 %v1438, %v1438
      %v1808 = vmul.f32 %v1441, %v1441
      %v1809 = vmul.f32 %v1446, %v1446
      %v1810 = vmul.f32 %v1449, %v1449
      %v1811 = vmul.f32 %v1454, %v1454
      %v1812 = vmul.f32 %v1457, %v1457
      %v1813 = vmul.f32 %v1462, %v1462
      %v1814 = vmul.f32 %v1465, %v1465
      %v1815 = vmul.f32 %v1470, %v1470
      %v1816 = vmul.f32 %v1473, %v1473
      %v1817 = vmul.f32 %v1478, %v1478
      %v1818 = vmul.f32 %v1481, %v1481
      %v1819 = vmul.f32 %v1486, %v1486
      %v1820 = vmul.f32 %v1489, %v1489
      %v1821 = vmul.f32 %v1494, %v1494
      %v1822 = vmul.f32 %v1497, %v1497
      %v1823 = vmul.f32 %v1502, %v1502
      %v1824 = vmul.f32 %v1505, %v1505
      %v1825 = vmul.f32 %v1510, %v1510
      %v1826 = vmul.f32 %v1513, %v1513
      %v1827 = vmul.f32 %v1518, %v1518
      %v1828 = vmul.f32 %v1521, %v1521
      %v1829 = vmul.f32 %v1526, %v1526
      %v1830 = vmul.f32 %v1529, %v1529
      %v1831 = vmul.f32 %v1534, %v1534
      %v1832 = vmul.f32 %v1537, %v1537
      %v1833 = vmul.f32 %v1542, %v1542
      %v1834 = vmul.f32 %v1545, %v1545
      %v1835 = vmul.f32 %v1550, %v1550
      %v1836 = vmul.f32 %v1553, %v1553
      %v1837 = vmul.f32 %v1558, %v1558
      %v1838 = vmul.f32 %v1561, %v1561
      %1839 = vadd.xlane.f32.xlu0 %v1807
      %v1840 = vpop.xlane.xlu0 %1839
      %1841 = vadd.xlane.f32.xlu0 %v1808
      %v1842 = vpop.xlane.xlu0 %1841
      %1843 = vadd.xlane.f32.xlu0 %v1809
      %v1844 = vpop.xlane.xlu0 %1843
      %1845 = vadd.xlane.f32.xlu0 %v1810
      %v1846 = vpop.xlane.xlu0 %1845
      %1847 = vadd.xlane.f32.xlu0 %v1811
      %v1848 = vpop.xlane.xlu0 %1847
      %1849 = vadd.xlane.f32.xlu0 %v1812
      %v1850 = vpop.xlane.xlu0 %1849
      %1851 = vadd.xlane.f32.xlu0 %v1813
      %v1852 = vpop.xlane.xlu0 %1851
      %1853 = vadd.xlane.f32.xlu0 %v1814
      %v1854 = vpop.xlane.xlu0 %1853
      %1855 = vadd.xlane.f32.xlu0 %v1815
      %v1856 = vpop.xlane.xlu0 %1855
      %1857 = vadd.xlane.f32.xlu0 %v1816
      %v1858 = vpop.xlane.xlu0 %1857
      %1859 = vadd.xlane.f32.xlu0 %v1817
      %v1860 = vpop.xlane.xlu0 %1859
      %1861 = vadd.xlane.f32.xlu0 %v1818
      %v1862 = vpop.xlane.xlu0 %1861
      %1863 = vadd.xlane.f32.xlu0 %v1819
      %v1864 = vpop.xlane.xlu0 %1863
      %1865 = vadd.xlane.f32.xlu0 %v1820
      %v1866 = vpop.xlane.xlu0 %1865
      %1867 = vadd.xlane.f32.xlu0 %v1821
      %v1868 = vpop.xlane.xlu0 %1867
      %1869 = vadd.xlane.f32.xlu0 %v1822
      %v1870 = vpop.xlane.xlu0 %1869
      %1871 = vadd.xlane.f32.xlu0 %v1823
      %v1872 = vpop.xlane.xlu0 %1871
      %1873 = vadd.xlane.f32.xlu0 %v1824
      %v1874 = vpop.xlane.xlu0 %1873
      %1875 = vadd.xlane.f32.xlu0 %v1825
      %v1876 = vpop.xlane.xlu0 %1875
      %1877 = vadd.xlane.f32.xlu0 %v1826
      %v1878 = vpop.xlane.xlu0 %1877
      %1879 = vadd.xlane.f32.xlu0 %v1827
      %v1880 = vpop.xlane.xlu0 %1879
      %1881 = vadd.xlane.f32.xlu0 %v1828
      %v1882 = vpop.xlane.xlu0 %1881
      %1883 = vadd.xlane.f32.xlu0 %v1829
      %v1884 = vpop.xlane.xlu0 %1883
      %1885 = vadd.xlane.f32.xlu0 %v1830
      %v1886 = vpop.xlane.xlu0 %1885
      %1887 = vadd.xlane.f32.xlu0 %v1831
      %v1888 = vpop.xlane.xlu0 %1887
      %1889 = vadd.xlane.f32.xlu0 %v1832
      %v1890 = vpop.xlane.xlu0 %1889
      %1891 = vadd.xlane.f32.xlu0 %v1833
      %v1892 = vpop.xlane.xlu0 %1891
      %1893 = vadd.xlane.f32.xlu0 %v1834
      %v1894 = vpop.xlane.xlu0 %1893
      %1895 = vadd.xlane.f32.xlu0 %v1835
      %v1896 = vpop.xlane.xlu0 %1895
      %1897 = vadd.xlane.f32.xlu0 %v1836
      %v1898 = vpop.xlane.xlu0 %1897
      %1899 = vadd.xlane.f32.xlu0 %v1837
      %v1900 = vpop.xlane.xlu0 %1899
      %1901 = vadd.xlane.f32.xlu0 %v1838
      %v1902 = vpop.xlane.xlu0 %1901
      %v1903 = vlaneseq
      %v1904 = vshrl.u32 %v1903, 7
      %v1905 = vsub.s32 0, %v1904
      %v1906 = vrot.slane %v1564, %v1905
      %v1907 = vadd.f32 %v1840, %v1906
      %v1908 = vadd.f32 %v1842, %v1906
      %v1909 = vadd.f32 %v1844, %v1906
      %v1910 = vadd.f32 %v1846, %v1906
      %v1911 = vadd.f32 %v1848, %v1906
      %v1912 = vadd.f32 %v1850, %v1906
      %v1913 = vadd.f32 %v1852, %v1906
      %v1914 = vadd.f32 %v1854, %v1906
      %v1915 = vadd.f32 %v1856, %v1906
      %v1916 = vadd.f32 %v1858, %v1906
      %v1917 = vadd.f32 %v1860, %v1906
      %v1918 = vadd.f32 %v1862, %v1906
      %v1919 = vadd.f32 %v1864, %v1906
      %v1920 = vadd.f32 %v1866, %v1906
      %v1921 = vadd.f32 %v1868, %v1906
      %v1922 = vadd.f32 %v1870, %v1906
      %v1923 = vadd.f32 %v1872, %v1906
      %v1924 = vadd.f32 %v1874, %v1906
      %v1925 = vadd.f32 %v1876, %v1906
      %v1926 = vadd.f32 %v1878, %v1906
      %v1927 = vadd.f32 %v1880, %v1906
      %v1928 = vadd.f32 %v1882, %v1906
      %v1929 = vadd.f32 %v1884, %v1906
      %v1930 = vadd.f32 %v1886, %v1906
      %v1931 = vadd.f32 %v1888, %v1906
      %v1932 = vadd.f32 %v1890, %v1906
      %v1933 = vadd.f32 %v1892, %v1906
      %v1934 = vadd.f32 %v1894, %v1906
      %v1935 = vadd.f32 %v1896, %v1906
      %v1936 = vadd.f32 %v1898, %v1906
      %v1937 = vadd.f32 %v1900, %v1906
      %v1938 = vadd.f32 %v1902, %v1906
      %v1939 = vmul.f32 %v1681, 2.0
      %v1940 = vmul.f32 %v1684, 2.0
      %v1941 = vmul.f32 %v1689, 2.0
      %v1942 = vmul.f32 %v1692, 2.0
      %v1943 = vmul.f32 %v1697, 2.0
      %v1944 = vmul.f32 %v1700, 2.0
      %v1945 = vmul.f32 %v1705, 2.0
      %v1946 = vmul.f32 %v1708, 2.0
      %v1947 = vmul.f32 %v1713, 2.0
      %v1948 = vmul.f32 %v1716, 2.0
      %v1949 = vmul.f32 %v1721, 2.0
      %v1950 = vmul.f32 %v1724, 2.0
      %v1951 = vmul.f32 %v1729, 2.0
      %v1952 = vmul.f32 %v1732, 2.0
      %v1953 = vmul.f32 %v1737, 2.0
      %v1954 = vmul.f32 %v1740, 2.0
      %v1955 = vmul.f32 %v1745, 2.0
      %v1956 = vmul.f32 %v1748, 2.0
      %v1957 = vmul.f32 %v1753, 2.0
      %v1958 = vmul.f32 %v1756, 2.0
      %v1959 = vmul.f32 %v1761, 2.0
      %v1960 = vmul.f32 %v1764, 2.0
      %v1961 = vmul.f32 %v1769, 2.0
      %v1962 = vmul.f32 %v1772, 2.0
      %v1963 = vmul.f32 %v1777, 2.0
      %v1964 = vmul.f32 %v1780, 2.0
      %v1965 = vmul.f32 %v1785, 2.0
      %v1966 = vmul.f32 %v1788, 2.0
      %v1967 = vmul.f32 %v1793, 2.0
      %v1968 = vmul.f32 %v1796, 2.0
      %v1969 = vmul.f32 %v1801, 2.0
      %v1970 = vmul.f32 %v1804, 2.0
      %v1971 = vsub.f32 %v1907, %v1939
      %v1972 = vsub.f32 %v1908, %v1940
      %v1973 = vsub.f32 %v1909, %v1941
      %v1974 = vsub.f32 %v1910, %v1942
      %v1975 = vsub.f32 %v1911, %v1943
      %v1976 = vsub.f32 %v1912, %v1944
      %v1977 = vsub.f32 %v1913, %v1945
      %v1978 = vsub.f32 %v1914, %v1946
      %v1979 = vsub.f32 %v1915, %v1947
      %v1980 = vsub.f32 %v1916, %v1948
      %v1981 = vsub.f32 %v1917, %v1949
      %v1982 = vsub.f32 %v1918, %v1950
      %v1983 = vsub.f32 %v1919, %v1951
      %v1984 = vsub.f32 %v1920, %v1952
      %v1985 = vsub.f32 %v1921, %v1953
      %v1986 = vsub.f32 %v1922, %v1954
      %v1987 = vsub.f32 %v1923, %v1955
      %v1988 = vsub.f32 %v1924, %v1956
      %v1989 = vsub.f32 %v1925, %v1957
      %v1990 = vsub.f32 %v1926, %v1958
      %v1991 = vsub.f32 %v1927, %v1959
      %v1992 = vsub.f32 %v1928, %v1960
      %v1993 = vsub.f32 %v1929, %v1961
      %v1994 = vsub.f32 %v1930, %v1962
      %v1995 = vsub.f32 %v1931, %v1963
      %v1996 = vsub.f32 %v1932, %v1964
      %v1997 = vsub.f32 %v1933, %v1965
      %v1998 = vsub.f32 %v1934, %v1966
      %v1999 = vsub.f32 %v1935, %v1967
      %v2000 = vsub.f32 %v1936, %v1968
      %v2001 = vsub.f32 %v1937, %v1969
      %v2002 = vsub.f32 %v1938, %v1970
      %v2003 = vlaneseq
      %v2004 = vand.u32 %v2003, 127
      %vm2005 = vcmp.lt.s32.totalorder %v2004, 64
      %v2006 = vsel %vm2005, %v1971, 1e+30
      %v2007 = vsel %vm2005, %v1972, 1e+30
      %v2008 = vsel %vm2005, %v1973, 1e+30
      %v2009 = vsel %vm2005, %v1974, 1e+30
      %v2010 = vsel %vm2005, %v1975, 1e+30
      %v2011 = vsel %vm2005, %v1976, 1e+30
      %v2012 = vsel %vm2005, %v1977, 1e+30
      %v2013 = vsel %vm2005, %v1978, 1e+30
      %v2014 = vsel %vm2005, %v1979, 1e+30
      %v2015 = vsel %vm2005, %v1980, 1e+30
      %v2016 = vsel %vm2005, %v1981, 1e+30
      %v2017 = vsel %vm2005, %v1982, 1e+30
      %v2018 = vsel %vm2005, %v1983, 1e+30
      %v2019 = vsel %vm2005, %v1984, 1e+30
      %v2020 = vsel %vm2005, %v1985, 1e+30
      %v2021 = vsel %vm2005, %v1986, 1e+30
      %v2022 = vsel %vm2005, %v1987, 1e+30
      %v2023 = vsel %vm2005, %v1988, 1e+30
      %v2024 = vsel %vm2005, %v1989, 1e+30
      %v2025 = vsel %vm2005, %v1990, 1e+30
      %v2026 = vsel %vm2005, %v1991, 1e+30
      %v2027 = vsel %vm2005, %v1992, 1e+30
      %v2028 = vsel %vm2005, %v1993, 1e+30
      %v2029 = vsel %vm2005, %v1994, 1e+30
      %v2030 = vsel %vm2005, %v1995, 1e+30
      %v2031 = vsel %vm2005, %v1996, 1e+30
      %v2032 = vsel %vm2005, %v1997, 1e+30
      %v2033 = vsel %vm2005, %v1998, 1e+30
      %v2034 = vsel %vm2005, %v1999, 1e+30
      %v2035 = vsel %vm2005, %v2000, 1e+30
      %v2036 = vsel %vm2005, %v2001, 1e+30
      %v2037 = vsel %vm2005, %v2002, 1e+30
      %2038 = vmin.xlane.f32.xlu0 %v2006
      %v2039 = vpop.xlane.xlu0 %2038
      %2040 = vmin.xlane.f32.xlu0 %v2007
      %v2041 = vpop.xlane.xlu0 %2040
      %2042 = vmin.xlane.f32.xlu0 %v2008
      %v2043 = vpop.xlane.xlu0 %2042
      %2044 = vmin.xlane.f32.xlu0 %v2009
      %v2045 = vpop.xlane.xlu0 %2044
      %2046 = vmin.xlane.f32.xlu0 %v2010
      %v2047 = vpop.xlane.xlu0 %2046
      %2048 = vmin.xlane.f32.xlu0 %v2011
      %v2049 = vpop.xlane.xlu0 %2048
      %2050 = vmin.xlane.f32.xlu0 %v2012
      %v2051 = vpop.xlane.xlu0 %2050
      %2052 = vmin.xlane.f32.xlu0 %v2013
      %v2053 = vpop.xlane.xlu0 %2052
      %2054 = vmin.xlane.f32.xlu0 %v2014
      %v2055 = vpop.xlane.xlu0 %2054
      %2056 = vmin.xlane.f32.xlu0 %v2015
      %v2057 = vpop.xlane.xlu0 %2056
      %2058 = vmin.xlane.f32.xlu0 %v2016
      %v2059 = vpop.xlane.xlu0 %2058
      %2060 = vmin.xlane.f32.xlu0 %v2017
      %v2061 = vpop.xlane.xlu0 %2060
      %2062 = vmin.xlane.f32.xlu0 %v2018
      %v2063 = vpop.xlane.xlu0 %2062
      %2064 = vmin.xlane.f32.xlu0 %v2019
      %v2065 = vpop.xlane.xlu0 %2064
      %2066 = vmin.xlane.f32.xlu0 %v2020
      %v2067 = vpop.xlane.xlu0 %2066
      %2068 = vmin.xlane.f32.xlu0 %v2021
      %v2069 = vpop.xlane.xlu0 %2068
      %2070 = vmin.xlane.f32.xlu0 %v2022
      %v2071 = vpop.xlane.xlu0 %2070
      %2072 = vmin.xlane.f32.xlu0 %v2023
      %v2073 = vpop.xlane.xlu0 %2072
      %2074 = vmin.xlane.f32.xlu0 %v2024
      %v2075 = vpop.xlane.xlu0 %2074
      %2076 = vmin.xlane.f32.xlu0 %v2025
      %v2077 = vpop.xlane.xlu0 %2076
      %2078 = vmin.xlane.f32.xlu0 %v2026
      %v2079 = vpop.xlane.xlu0 %2078
      %2080 = vmin.xlane.f32.xlu0 %v2027
      %v2081 = vpop.xlane.xlu0 %2080
      %2082 = vmin.xlane.f32.xlu0 %v2028
      %v2083 = vpop.xlane.xlu0 %2082
      %2084 = vmin.xlane.f32.xlu0 %v2029
      %v2085 = vpop.xlane.xlu0 %2084
      %2086 = vmin.xlane.f32.xlu0 %v2030
      %v2087 = vpop.xlane.xlu0 %2086
      %2088 = vmin.xlane.f32.xlu0 %v2031
      %v2089 = vpop.xlane.xlu0 %2088
      %2090 = vmin.xlane.f32.xlu0 %v2032
      %v2091 = vpop.xlane.xlu0 %2090
      %2092 = vmin.xlane.f32.xlu0 %v2033
      %v2093 = vpop.xlane.xlu0 %2092
      %2094 = vmin.xlane.f32.xlu0 %v2034
      %v2095 = vpop.xlane.xlu0 %2094
      %2096 = vmin.xlane.f32.xlu0 %v2035
      %v2097 = vpop.xlane.xlu0 %2096
      %2098 = vmin.xlane.f32.xlu0 %v2036
      %v2099 = vpop.xlane.xlu0 %2098
      %2100 = vmin.xlane.f32.xlu0 %v2037
      %v2101 = vpop.xlane.xlu0 %2100
      %vm2102 = vcmp.eq.f32.partialorder %v2006, %v2039
      %vm2103 = vcmp.eq.f32.partialorder %v2007, %v2041
      %vm2104 = vcmp.eq.f32.partialorder %v2008, %v2043
      %vm2105 = vcmp.eq.f32.partialorder %v2009, %v2045
      %vm2106 = vcmp.eq.f32.partialorder %v2010, %v2047
      %vm2107 = vcmp.eq.f32.partialorder %v2011, %v2049
      %vm2108 = vcmp.eq.f32.partialorder %v2012, %v2051
      %vm2109 = vcmp.eq.f32.partialorder %v2013, %v2053
      %vm2110 = vcmp.eq.f32.partialorder %v2014, %v2055
      %vm2111 = vcmp.eq.f32.partialorder %v2015, %v2057
      %vm2112 = vcmp.eq.f32.partialorder %v2016, %v2059
      %vm2113 = vcmp.eq.f32.partialorder %v2017, %v2061
      %vm2114 = vcmp.eq.f32.partialorder %v2018, %v2063
      %vm2115 = vcmp.eq.f32.partialorder %v2019, %v2065
      %vm2116 = vcmp.eq.f32.partialorder %v2020, %v2067
      %vm2117 = vcmp.eq.f32.partialorder %v2021, %v2069
      %vm2118 = vcmp.eq.f32.partialorder %v2022, %v2071
      %vm2119 = vcmp.eq.f32.partialorder %v2023, %v2073
      %vm2120 = vcmp.eq.f32.partialorder %v2024, %v2075
      %vm2121 = vcmp.eq.f32.partialorder %v2025, %v2077
      %vm2122 = vcmp.eq.f32.partialorder %v2026, %v2079
      %vm2123 = vcmp.eq.f32.partialorder %v2027, %v2081
      %vm2124 = vcmp.eq.f32.partialorder %v2028, %v2083
      %vm2125 = vcmp.eq.f32.partialorder %v2029, %v2085
      %vm2126 = vcmp.eq.f32.partialorder %v2030, %v2087
      %vm2127 = vcmp.eq.f32.partialorder %v2031, %v2089
      %vm2128 = vcmp.eq.f32.partialorder %v2032, %v2091
      %vm2129 = vcmp.eq.f32.partialorder %v2033, %v2093
      %vm2130 = vcmp.eq.f32.partialorder %v2034, %v2095
      %vm2131 = vcmp.eq.f32.partialorder %v2035, %v2097
      %vm2132 = vcmp.eq.f32.partialorder %v2036, %v2099
      %vm2133 = vcmp.eq.f32.partialorder %v2037, %v2101
      %v2134 = vsel %vm2102, %v2004, 128
      %v2135 = vsel %vm2103, %v2004, 128
      %v2136 = vsel %vm2104, %v2004, 128
      %v2137 = vsel %vm2105, %v2004, 128
      %v2138 = vsel %vm2106, %v2004, 128
      %v2139 = vsel %vm2107, %v2004, 128
      %v2140 = vsel %vm2108, %v2004, 128
      %v2141 = vsel %vm2109, %v2004, 128
      %v2142 = vsel %vm2110, %v2004, 128
      %v2143 = vsel %vm2111, %v2004, 128
      %v2144 = vsel %vm2112, %v2004, 128
      %v2145 = vsel %vm2113, %v2004, 128
      %v2146 = vsel %vm2114, %v2004, 128
      %v2147 = vsel %vm2115, %v2004, 128
      %v2148 = vsel %vm2116, %v2004, 128
      %v2149 = vsel %vm2117, %v2004, 128
      %v2150 = vsel %vm2118, %v2004, 128
      %v2151 = vsel %vm2119, %v2004, 128
      %v2152 = vsel %vm2120, %v2004, 128
      %v2153 = vsel %vm2121, %v2004, 128
      %v2154 = vsel %vm2122, %v2004, 128
      %v2155 = vsel %vm2123, %v2004, 128
      %v2156 = vsel %vm2124, %v2004, 128
      %v2157 = vsel %vm2125, %v2004, 128
      %v2158 = vsel %vm2126, %v2004, 128
      %v2159 = vsel %vm2127, %v2004, 128
      %v2160 = vsel %vm2128, %v2004, 128
      %v2161 = vsel %vm2129, %v2004, 128
      %v2162 = vsel %vm2130, %v2004, 128
      %v2163 = vsel %vm2131, %v2004, 128
      %v2164 = vsel %vm2132, %v2004, 128
      %v2165 = vsel %vm2133, %v2004, 128
      %v2166 = vand.u32 %v2134, 65535
      %v2167 = vshra.s32 %v2134, 16
      %v2168 = vcvt.s32.f32 %v2166
      %v2169 = vcvt.s32.f32 %v2167
      %2170 = vmin.xlane.f32.xlu0 %v2169
      %v2171 = vpop.xlane.xlu0 %2170
      %vm2172 = vcmp.eq.f32.partialorder %v2169, %v2171
      %v2173 = vsel %vm2172, %v2168, inf
      %2174 = vmin.xlane.f32.xlu0 %v2173
      %v2175 = vpop.xlane.xlu0 %2174
      %v2176 = vcvt.f32.s32 %v2175
      %v2177 = vcvt.f32.s32 %v2171
      %v2178 = vshll.u32 %v2177, 16
      %v2179 = vadd.s32 %v2178, %v2176
      %v2180 = vand.u32 %v2135, 65535
      %v2181 = vshra.s32 %v2135, 16
      %v2182 = vcvt.s32.f32 %v2180
      %v2183 = vcvt.s32.f32 %v2181
      %2184 = vmin.xlane.f32.xlu0 %v2183
      %v2185 = vpop.xlane.xlu0 %2184
      %vm2186 = vcmp.eq.f32.partialorder %v2183, %v2185
      %v2187 = vsel %vm2186, %v2182, inf
      %2188 = vmin.xlane.f32.xlu0 %v2187
      %v2189 = vpop.xlane.xlu0 %2188
      %v2190 = vcvt.f32.s32 %v2189
      %v2191 = vcvt.f32.s32 %v2185
      %v2192 = vshll.u32 %v2191, 16
      %v2193 = vadd.s32 %v2192, %v2190
      %v2194 = vand.u32 %v2136, 65535
      %v2195 = vshra.s32 %v2136, 16
      %v2196 = vcvt.s32.f32 %v2194
      %v2197 = vcvt.s32.f32 %v2195
      %2198 = vmin.xlane.f32.xlu0 %v2197
      %v2199 = vpop.xlane.xlu0 %2198
      %vm2200 = vcmp.eq.f32.partialorder %v2197, %v2199
      %v2201 = vsel %vm2200, %v2196, inf
      %2202 = vmin.xlane.f32.xlu0 %v2201
      %v2203 = vpop.xlane.xlu0 %2202
      %v2204 = vcvt.f32.s32 %v2203
      %v2205 = vcvt.f32.s32 %v2199
      %v2206 = vshll.u32 %v2205, 16
      %v2207 = vadd.s32 %v2206, %v2204
      %v2208 = vand.u32 %v2137, 65535
      %v2209 = vshra.s32 %v2137, 16
      %v2210 = vcvt.s32.f32 %v2208
      %v2211 = vcvt.s32.f32 %v2209
      %2212 = vmin.xlane.f32.xlu0 %v2211
      %v2213 = vpop.xlane.xlu0 %2212
      %vm2214 = vcmp.eq.f32.partialorder %v2211, %v2213
      %v2215 = vsel %vm2214, %v2210, inf
      %2216 = vmin.xlane.f32.xlu0 %v2215
      %v2217 = vpop.xlane.xlu0 %2216
      %v2218 = vcvt.f32.s32 %v2217
      %v2219 = vcvt.f32.s32 %v2213
      %v2220 = vshll.u32 %v2219, 16
      %v2221 = vadd.s32 %v2220, %v2218
      %v2222 = vand.u32 %v2138, 65535
      %v2223 = vshra.s32 %v2138, 16
      %v2224 = vcvt.s32.f32 %v2222
      %v2225 = vcvt.s32.f32 %v2223
      %2226 = vmin.xlane.f32.xlu0 %v2225
      %v2227 = vpop.xlane.xlu0 %2226
      %vm2228 = vcmp.eq.f32.partialorder %v2225, %v2227
      %v2229 = vsel %vm2228, %v2224, inf
      %2230 = vmin.xlane.f32.xlu0 %v2229
      %v2231 = vpop.xlane.xlu0 %2230
      %v2232 = vcvt.f32.s32 %v2231
      %v2233 = vcvt.f32.s32 %v2227
      %v2234 = vshll.u32 %v2233, 16
      %v2235 = vadd.s32 %v2234, %v2232
      %v2236 = vand.u32 %v2139, 65535
      %v2237 = vshra.s32 %v2139, 16
      %v2238 = vcvt.s32.f32 %v2236
      %v2239 = vcvt.s32.f32 %v2237
      %2240 = vmin.xlane.f32.xlu0 %v2239
      %v2241 = vpop.xlane.xlu0 %2240
      %vm2242 = vcmp.eq.f32.partialorder %v2239, %v2241
      %v2243 = vsel %vm2242, %v2238, inf
      %2244 = vmin.xlane.f32.xlu0 %v2243
      %v2245 = vpop.xlane.xlu0 %2244
      %v2246 = vcvt.f32.s32 %v2245
      %v2247 = vcvt.f32.s32 %v2241
      %v2248 = vshll.u32 %v2247, 16
      %v2249 = vadd.s32 %v2248, %v2246
      %v2250 = vand.u32 %v2140, 65535
      %v2251 = vshra.s32 %v2140, 16
      %v2252 = vcvt.s32.f32 %v2250
      %v2253 = vcvt.s32.f32 %v2251
      %2254 = vmin.xlane.f32.xlu0 %v2253
      %v2255 = vpop.xlane.xlu0 %2254
      %vm2256 = vcmp.eq.f32.partialorder %v2253, %v2255
      %v2257 = vsel %vm2256, %v2252, inf
      %2258 = vmin.xlane.f32.xlu0 %v2257
      %v2259 = vpop.xlane.xlu0 %2258
      %v2260 = vcvt.f32.s32 %v2259
      %v2261 = vcvt.f32.s32 %v2255
      %v2262 = vshll.u32 %v2261, 16
      %v2263 = vadd.s32 %v2262, %v2260
      %v2264 = vand.u32 %v2141, 65535
      %v2265 = vshra.s32 %v2141, 16
      %v2266 = vcvt.s32.f32 %v2264
      %v2267 = vcvt.s32.f32 %v2265
      %2268 = vmin.xlane.f32.xlu0 %v2267
      %v2269 = vpop.xlane.xlu0 %2268
      %vm2270 = vcmp.eq.f32.partialorder %v2267, %v2269
      %v2271 = vsel %vm2270, %v2266, inf
      %2272 = vmin.xlane.f32.xlu0 %v2271
      %v2273 = vpop.xlane.xlu0 %2272
      %v2274 = vcvt.f32.s32 %v2273
      %v2275 = vcvt.f32.s32 %v2269
      %v2276 = vshll.u32 %v2275, 16
      %v2277 = vadd.s32 %v2276, %v2274
      %v2278 = vand.u32 %v2142, 65535
      %v2279 = vshra.s32 %v2142, 16
      %v2280 = vcvt.s32.f32 %v2278
      %v2281 = vcvt.s32.f32 %v2279
      %2282 = vmin.xlane.f32.xlu0 %v2281
      %v2283 = vpop.xlane.xlu0 %2282
      %vm2284 = vcmp.eq.f32.partialorder %v2281, %v2283
      %v2285 = vsel %vm2284, %v2280, inf
      %2286 = vmin.xlane.f32.xlu0 %v2285
      %v2287 = vpop.xlane.xlu0 %2286
      %v2288 = vcvt.f32.s32 %v2287
      %v2289 = vcvt.f32.s32 %v2283
      %v2290 = vshll.u32 %v2289, 16
      %v2291 = vadd.s32 %v2290, %v2288
      %v2292 = vand.u32 %v2143, 65535
      %v2293 = vshra.s32 %v2143, 16
      %v2294 = vcvt.s32.f32 %v2292
      %v2295 = vcvt.s32.f32 %v2293
      %2296 = vmin.xlane.f32.xlu0 %v2295
      %v2297 = vpop.xlane.xlu0 %2296
      %vm2298 = vcmp.eq.f32.partialorder %v2295, %v2297
      %v2299 = vsel %vm2298, %v2294, inf
      %2300 = vmin.xlane.f32.xlu0 %v2299
      %v2301 = vpop.xlane.xlu0 %2300
      %v2302 = vcvt.f32.s32 %v2301
      %v2303 = vcvt.f32.s32 %v2297
      %v2304 = vshll.u32 %v2303, 16
      %v2305 = vadd.s32 %v2304, %v2302
      %v2306 = vand.u32 %v2144, 65535
      %v2307 = vshra.s32 %v2144, 16
      %v2308 = vcvt.s32.f32 %v2306
      %v2309 = vcvt.s32.f32 %v2307
      %2310 = vmin.xlane.f32.xlu0 %v2309
      %v2311 = vpop.xlane.xlu0 %2310
      %vm2312 = vcmp.eq.f32.partialorder %v2309, %v2311
      %v2313 = vsel %vm2312, %v2308, inf
      %2314 = vmin.xlane.f32.xlu0 %v2313
      %v2315 = vpop.xlane.xlu0 %2314
      %v2316 = vcvt.f32.s32 %v2315
      %v2317 = vcvt.f32.s32 %v2311
      %v2318 = vshll.u32 %v2317, 16
      %v2319 = vadd.s32 %v2318, %v2316
      %v2320 = vand.u32 %v2145, 65535
      %v2321 = vshra.s32 %v2145, 16
      %v2322 = vcvt.s32.f32 %v2320
      %v2323 = vcvt.s32.f32 %v2321
      %2324 = vmin.xlane.f32.xlu0 %v2323
      %v2325 = vpop.xlane.xlu0 %2324
      %vm2326 = vcmp.eq.f32.partialorder %v2323, %v2325
      %v2327 = vsel %vm2326, %v2322, inf
      %2328 = vmin.xlane.f32.xlu0 %v2327
      %v2329 = vpop.xlane.xlu0 %2328
      %v2330 = vcvt.f32.s32 %v2329
      %v2331 = vcvt.f32.s32 %v2325
      %v2332 = vshll.u32 %v2331, 16
      %v2333 = vadd.s32 %v2332, %v2330
      %v2334 = vand.u32 %v2146, 65535
      %v2335 = vshra.s32 %v2146, 16
      %v2336 = vcvt.s32.f32 %v2334
      %v2337 = vcvt.s32.f32 %v2335
      %2338 = vmin.xlane.f32.xlu0 %v2337
      %v2339 = vpop.xlane.xlu0 %2338
      %vm2340 = vcmp.eq.f32.partialorder %v2337, %v2339
      %v2341 = vsel %vm2340, %v2336, inf
      %2342 = vmin.xlane.f32.xlu0 %v2341
      %v2343 = vpop.xlane.xlu0 %2342
      %v2344 = vcvt.f32.s32 %v2343
      %v2345 = vcvt.f32.s32 %v2339
      %v2346 = vshll.u32 %v2345, 16
      %v2347 = vadd.s32 %v2346, %v2344
      %v2348 = vand.u32 %v2147, 65535
      %v2349 = vshra.s32 %v2147, 16
      %v2350 = vcvt.s32.f32 %v2348
      %v2351 = vcvt.s32.f32 %v2349
      %2352 = vmin.xlane.f32.xlu0 %v2351
      %v2353 = vpop.xlane.xlu0 %2352
      %vm2354 = vcmp.eq.f32.partialorder %v2351, %v2353
      %v2355 = vsel %vm2354, %v2350, inf
      %2356 = vmin.xlane.f32.xlu0 %v2355
      %v2357 = vpop.xlane.xlu0 %2356
      %v2358 = vcvt.f32.s32 %v2357
      %v2359 = vcvt.f32.s32 %v2353
      %v2360 = vshll.u32 %v2359, 16
      %v2361 = vadd.s32 %v2360, %v2358
      %v2362 = vand.u32 %v2148, 65535
      %v2363 = vshra.s32 %v2148, 16
      %v2364 = vcvt.s32.f32 %v2362
      %v2365 = vcvt.s32.f32 %v2363
      %2366 = vmin.xlane.f32.xlu0 %v2365
      %v2367 = vpop.xlane.xlu0 %2366
      %vm2368 = vcmp.eq.f32.partialorder %v2365, %v2367
      %v2369 = vsel %vm2368, %v2364, inf
      %2370 = vmin.xlane.f32.xlu0 %v2369
      %v2371 = vpop.xlane.xlu0 %2370
      %v2372 = vcvt.f32.s32 %v2371
      %v2373 = vcvt.f32.s32 %v2367
      %v2374 = vshll.u32 %v2373, 16
      %v2375 = vadd.s32 %v2374, %v2372
      %v2376 = vand.u32 %v2149, 65535
      %v2377 = vshra.s32 %v2149, 16
      %v2378 = vcvt.s32.f32 %v2376
      %v2379 = vcvt.s32.f32 %v2377
      %2380 = vmin.xlane.f32.xlu0 %v2379
      %v2381 = vpop.xlane.xlu0 %2380
      %vm2382 = vcmp.eq.f32.partialorder %v2379, %v2381
      %v2383 = vsel %vm2382, %v2378, inf
      %2384 = vmin.xlane.f32.xlu0 %v2383
      %v2385 = vpop.xlane.xlu0 %2384
      %v2386 = vcvt.f32.s32 %v2385
      %v2387 = vcvt.f32.s32 %v2381
      %v2388 = vshll.u32 %v2387, 16
      %v2389 = vadd.s32 %v2388, %v2386
      %v2390 = vand.u32 %v2150, 65535
      %v2391 = vshra.s32 %v2150, 16
      %v2392 = vcvt.s32.f32 %v2390
      %v2393 = vcvt.s32.f32 %v2391
      %2394 = vmin.xlane.f32.xlu0 %v2393
      %v2395 = vpop.xlane.xlu0 %2394
      %vm2396 = vcmp.eq.f32.partialorder %v2393, %v2395
      %v2397 = vsel %vm2396, %v2392, inf
      %2398 = vmin.xlane.f32.xlu0 %v2397
      %v2399 = vpop.xlane.xlu0 %2398
      %v2400 = vcvt.f32.s32 %v2399
      %v2401 = vcvt.f32.s32 %v2395
      %v2402 = vshll.u32 %v2401, 16
      %v2403 = vadd.s32 %v2402, %v2400
      %v2404 = vand.u32 %v2151, 65535
      %v2405 = vshra.s32 %v2151, 16
      %v2406 = vcvt.s32.f32 %v2404
      %v2407 = vcvt.s32.f32 %v2405
      %2408 = vmin.xlane.f32.xlu0 %v2407
      %v2409 = vpop.xlane.xlu0 %2408
      %vm2410 = vcmp.eq.f32.partialorder %v2407, %v2409
      %v2411 = vsel %vm2410, %v2406, inf
      %2412 = vmin.xlane.f32.xlu0 %v2411
      %v2413 = vpop.xlane.xlu0 %2412
      %v2414 = vcvt.f32.s32 %v2413
      %v2415 = vcvt.f32.s32 %v2409
      %v2416 = vshll.u32 %v2415, 16
      %v2417 = vadd.s32 %v2416, %v2414
      %v2418 = vand.u32 %v2152, 65535
      %v2419 = vshra.s32 %v2152, 16
      %v2420 = vcvt.s32.f32 %v2418
      %v2421 = vcvt.s32.f32 %v2419
      %2422 = vmin.xlane.f32.xlu0 %v2421
      %v2423 = vpop.xlane.xlu0 %2422
      %vm2424 = vcmp.eq.f32.partialorder %v2421, %v2423
      %v2425 = vsel %vm2424, %v2420, inf
      %2426 = vmin.xlane.f32.xlu0 %v2425
      %v2427 = vpop.xlane.xlu0 %2426
      %v2428 = vcvt.f32.s32 %v2427
      %v2429 = vcvt.f32.s32 %v2423
      %v2430 = vshll.u32 %v2429, 16
      %v2431 = vadd.s32 %v2430, %v2428
      %v2432 = vand.u32 %v2153, 65535
      %v2433 = vshra.s32 %v2153, 16
      %v2434 = vcvt.s32.f32 %v2432
      %v2435 = vcvt.s32.f32 %v2433
      %2436 = vmin.xlane.f32.xlu0 %v2435
      %v2437 = vpop.xlane.xlu0 %2436
      %vm2438 = vcmp.eq.f32.partialorder %v2435, %v2437
      %v2439 = vsel %vm2438, %v2434, inf
      %2440 = vmin.xlane.f32.xlu0 %v2439
      %v2441 = vpop.xlane.xlu0 %2440
      %v2442 = vcvt.f32.s32 %v2441
      %v2443 = vcvt.f32.s32 %v2437
      %v2444 = vshll.u32 %v2443, 16
      %v2445 = vadd.s32 %v2444, %v2442
      %v2446 = vand.u32 %v2154, 65535
      %v2447 = vshra.s32 %v2154, 16
      %v2448 = vcvt.s32.f32 %v2446
      %v2449 = vcvt.s32.f32 %v2447
      %2450 = vmin.xlane.f32.xlu0 %v2449
      %v2451 = vpop.xlane.xlu0 %2450
      %vm2452 = vcmp.eq.f32.partialorder %v2449, %v2451
      %v2453 = vsel %vm2452, %v2448, inf
      %2454 = vmin.xlane.f32.xlu0 %v2453
      %v2455 = vpop.xlane.xlu0 %2454
      %v2456 = vcvt.f32.s32 %v2455
      %v2457 = vcvt.f32.s32 %v2451
      %v2458 = vshll.u32 %v2457, 16
      %v2459 = vadd.s32 %v2458, %v2456
      %v2460 = vand.u32 %v2155, 65535
      %v2461 = vshra.s32 %v2155, 16
      %v2462 = vcvt.s32.f32 %v2460
      %v2463 = vcvt.s32.f32 %v2461
      %2464 = vmin.xlane.f32.xlu0 %v2463
      %v2465 = vpop.xlane.xlu0 %2464
      %vm2466 = vcmp.eq.f32.partialorder %v2463, %v2465
      %v2467 = vsel %vm2466, %v2462, inf
      %2468 = vmin.xlane.f32.xlu0 %v2467
      %v2469 = vpop.xlane.xlu0 %2468
      %v2470 = vcvt.f32.s32 %v2469
      %v2471 = vcvt.f32.s32 %v2465
      %v2472 = vshll.u32 %v2471, 16
      %v2473 = vadd.s32 %v2472, %v2470
      %v2474 = vand.u32 %v2156, 65535
      %v2475 = vshra.s32 %v2156, 16
      %v2476 = vcvt.s32.f32 %v2474
      %v2477 = vcvt.s32.f32 %v2475
      %2478 = vmin.xlane.f32.xlu0 %v2477
      %v2479 = vpop.xlane.xlu0 %2478
      %vm2480 = vcmp.eq.f32.partialorder %v2477, %v2479
      %v2481 = vsel %vm2480, %v2476, inf
      %2482 = vmin.xlane.f32.xlu0 %v2481
      %v2483 = vpop.xlane.xlu0 %2482
      %v2484 = vcvt.f32.s32 %v2483
      %v2485 = vcvt.f32.s32 %v2479
      %v2486 = vshll.u32 %v2485, 16
      %v2487 = vadd.s32 %v2486, %v2484
      %v2488 = vand.u32 %v2157, 65535
      %v2489 = vshra.s32 %v2157, 16
      %v2490 = vcvt.s32.f32 %v2488
      %v2491 = vcvt.s32.f32 %v2489
      %2492 = vmin.xlane.f32.xlu0 %v2491
      %v2493 = vpop.xlane.xlu0 %2492
      %vm2494 = vcmp.eq.f32.partialorder %v2491, %v2493
      %v2495 = vsel %vm2494, %v2490, inf
      %2496 = vmin.xlane.f32.xlu0 %v2495
      %v2497 = vpop.xlane.xlu0 %2496
      %v2498 = vcvt.f32.s32 %v2497
      %v2499 = vcvt.f32.s32 %v2493
      %v2500 = vshll.u32 %v2499, 16
      %v2501 = vadd.s32 %v2500, %v2498
      %v2502 = vand.u32 %v2158, 65535
      %v2503 = vshra.s32 %v2158, 16
      %v2504 = vcvt.s32.f32 %v2502
      %v2505 = vcvt.s32.f32 %v2503
      %2506 = vmin.xlane.f32.xlu0 %v2505
      %v2507 = vpop.xlane.xlu0 %2506
      %vm2508 = vcmp.eq.f32.partialorder %v2505, %v2507
      %v2509 = vsel %vm2508, %v2504, inf
      %2510 = vmin.xlane.f32.xlu0 %v2509
      %v2511 = vpop.xlane.xlu0 %2510
      %v2512 = vcvt.f32.s32 %v2511
      %v2513 = vcvt.f32.s32 %v2507
      %v2514 = vshll.u32 %v2513, 16
      %v2515 = vadd.s32 %v2514, %v2512
      %v2516 = vand.u32 %v2159, 65535
      %v2517 = vshra.s32 %v2159, 16
      %v2518 = vcvt.s32.f32 %v2516
      %v2519 = vcvt.s32.f32 %v2517
      %2520 = vmin.xlane.f32.xlu0 %v2519
      %v2521 = vpop.xlane.xlu0 %2520
      %vm2522 = vcmp.eq.f32.partialorder %v2519, %v2521
      %v2523 = vsel %vm2522, %v2518, inf
      %2524 = vmin.xlane.f32.xlu0 %v2523
      %v2525 = vpop.xlane.xlu0 %2524
      %v2526 = vcvt.f32.s32 %v2525
      %v2527 = vcvt.f32.s32 %v2521
      %v2528 = vshll.u32 %v2527, 16
      %v2529 = vadd.s32 %v2528, %v2526
      %v2530 = vand.u32 %v2160, 65535
      %v2531 = vshra.s32 %v2160, 16
      %v2532 = vcvt.s32.f32 %v2530
      %v2533 = vcvt.s32.f32 %v2531
      %2534 = vmin.xlane.f32.xlu0 %v2533
      %v2535 = vpop.xlane.xlu0 %2534
      %vm2536 = vcmp.eq.f32.partialorder %v2533, %v2535
      %v2537 = vsel %vm2536, %v2532, inf
      %2538 = vmin.xlane.f32.xlu0 %v2537
      %v2539 = vpop.xlane.xlu0 %2538
      %v2540 = vcvt.f32.s32 %v2539
      %v2541 = vcvt.f32.s32 %v2535
      %v2542 = vshll.u32 %v2541, 16
      %v2543 = vadd.s32 %v2542, %v2540
      %v2544 = vand.u32 %v2161, 65535
      %v2545 = vshra.s32 %v2161, 16
      %v2546 = vcvt.s32.f32 %v2544
      %v2547 = vcvt.s32.f32 %v2545
      %2548 = vmin.xlane.f32.xlu0 %v2547
      %v2549 = vpop.xlane.xlu0 %2548
      %vm2550 = vcmp.eq.f32.partialorder %v2547, %v2549
      %v2551 = vsel %vm2550, %v2546, inf
      %2552 = vmin.xlane.f32.xlu0 %v2551
      %v2553 = vpop.xlane.xlu0 %2552
      %v2554 = vcvt.f32.s32 %v2553
      %v2555 = vcvt.f32.s32 %v2549
      %v2556 = vshll.u32 %v2555, 16
      %v2557 = vadd.s32 %v2556, %v2554
      %v2558 = vand.u32 %v2162, 65535
      %v2559 = vshra.s32 %v2162, 16
      %v2560 = vcvt.s32.f32 %v2558
      %v2561 = vcvt.s32.f32 %v2559
      %2562 = vmin.xlane.f32.xlu0 %v2561
      %v2563 = vpop.xlane.xlu0 %2562
      %vm2564 = vcmp.eq.f32.partialorder %v2561, %v2563
      %v2565 = vsel %vm2564, %v2560, inf
      %2566 = vmin.xlane.f32.xlu0 %v2565
      %v2567 = vpop.xlane.xlu0 %2566
      %v2568 = vcvt.f32.s32 %v2567
      %v2569 = vcvt.f32.s32 %v2563
      %v2570 = vshll.u32 %v2569, 16
      %v2571 = vadd.s32 %v2570, %v2568
      %v2572 = vand.u32 %v2163, 65535
      %v2573 = vshra.s32 %v2163, 16
      %v2574 = vcvt.s32.f32 %v2572
      %v2575 = vcvt.s32.f32 %v2573
      %2576 = vmin.xlane.f32.xlu0 %v2575
      %v2577 = vpop.xlane.xlu0 %2576
      %vm2578 = vcmp.eq.f32.partialorder %v2575, %v2577
      %v2579 = vsel %vm2578, %v2574, inf
      %2580 = vmin.xlane.f32.xlu0 %v2579
      %v2581 = vpop.xlane.xlu0 %2580
      %v2582 = vcvt.f32.s32 %v2581
      %v2583 = vcvt.f32.s32 %v2577
      %v2584 = vshll.u32 %v2583, 16
      %v2585 = vadd.s32 %v2584, %v2582
      %v2586 = vand.u32 %v2164, 65535
      %v2587 = vshra.s32 %v2164, 16
      %v2588 = vcvt.s32.f32 %v2586
      %v2589 = vcvt.s32.f32 %v2587
      %2590 = vmin.xlane.f32.xlu0 %v2589
      %v2591 = vpop.xlane.xlu0 %2590
      %vm2592 = vcmp.eq.f32.partialorder %v2589, %v2591
      %v2593 = vsel %vm2592, %v2588, inf
      %2594 = vmin.xlane.f32.xlu0 %v2593
      %v2595 = vpop.xlane.xlu0 %2594
      %v2596 = vcvt.f32.s32 %v2595
      %v2597 = vcvt.f32.s32 %v2591
      %v2598 = vshll.u32 %v2597, 16
      %v2599 = vadd.s32 %v2598, %v2596
      %v2600 = vand.u32 %v2165, 65535
      %v2601 = vshra.s32 %v2165, 16
      %v2602 = vcvt.s32.f32 %v2600
      %v2603 = vcvt.s32.f32 %v2601
      %2604 = vmin.xlane.f32.xlu0 %v2603
      %v2605 = vpop.xlane.xlu0 %2604
      %vm2606 = vcmp.eq.f32.partialorder %v2603, %v2605
      %v2607 = vsel %vm2606, %v2602, inf
      %2608 = vmin.xlane.f32.xlu0 %v2607
      %v2609 = vpop.xlane.xlu0 %2608
      %v2610 = vcvt.f32.s32 %v2609
      %v2611 = vcvt.f32.s32 %v2605
      %v2612 = vshll.u32 %v2611, 16
      %v2613 = vadd.s32 %v2612, %v2610
      %vm2614 = vcmp.eq.s32.totalorder %v2004, %v2179
      %vm2615 = vcmp.eq.s32.totalorder %v2004, %v2193
      %vm2616 = vcmp.eq.s32.totalorder %v2004, %v2207
      %vm2617 = vcmp.eq.s32.totalorder %v2004, %v2221
      %vm2618 = vcmp.eq.s32.totalorder %v2004, %v2235
      %vm2619 = vcmp.eq.s32.totalorder %v2004, %v2249
      %vm2620 = vcmp.eq.s32.totalorder %v2004, %v2263
      %vm2621 = vcmp.eq.s32.totalorder %v2004, %v2277
      %vm2622 = vcmp.eq.s32.totalorder %v2004, %v2291
      %vm2623 = vcmp.eq.s32.totalorder %v2004, %v2305
      %vm2624 = vcmp.eq.s32.totalorder %v2004, %v2319
      %vm2625 = vcmp.eq.s32.totalorder %v2004, %v2333
      %vm2626 = vcmp.eq.s32.totalorder %v2004, %v2347
      %vm2627 = vcmp.eq.s32.totalorder %v2004, %v2361
      %vm2628 = vcmp.eq.s32.totalorder %v2004, %v2375
      %vm2629 = vcmp.eq.s32.totalorder %v2004, %v2389
      %vm2630 = vcmp.eq.s32.totalorder %v2004, %v2403
      %vm2631 = vcmp.eq.s32.totalorder %v2004, %v2417
      %vm2632 = vcmp.eq.s32.totalorder %v2004, %v2431
      %vm2633 = vcmp.eq.s32.totalorder %v2004, %v2445
      %vm2634 = vcmp.eq.s32.totalorder %v2004, %v2459
      %vm2635 = vcmp.eq.s32.totalorder %v2004, %v2473
      %vm2636 = vcmp.eq.s32.totalorder %v2004, %v2487
      %vm2637 = vcmp.eq.s32.totalorder %v2004, %v2501
      %vm2638 = vcmp.eq.s32.totalorder %v2004, %v2515
      %vm2639 = vcmp.eq.s32.totalorder %v2004, %v2529
      %vm2640 = vcmp.eq.s32.totalorder %v2004, %v2543
      %vm2641 = vcmp.eq.s32.totalorder %v2004, %v2557
      %vm2642 = vcmp.eq.s32.totalorder %v2004, %v2571
      %vm2643 = vcmp.eq.s32.totalorder %v2004, %v2585
      %vm2644 = vcmp.eq.s32.totalorder %v2004, %v2599
      %vm2645 = vcmp.eq.s32.totalorder %v2004, %v2613
      %v2646 = vsel %vm2614, 1, 0
      %v2647 = vsel %vm2615, 1, 0
      %v2648 = vsel %vm2616, 1, 0
      %v2649 = vsel %vm2617, 1, 0
      %v2650 = vsel %vm2618, 1, 0
      %v2651 = vsel %vm2619, 1, 0
      %v2652 = vsel %vm2620, 1, 0
      %v2653 = vsel %vm2621, 1, 0
      %v2654 = vsel %vm2622, 1, 0
      %v2655 = vsel %vm2623, 1, 0
      %v2656 = vsel %vm2624, 1, 0
      %v2657 = vsel %vm2625, 1, 0
      %v2658 = vsel %vm2626, 1, 0
      %v2659 = vsel %vm2627, 1, 0
      %v2660 = vsel %vm2628, 1, 0
      %v2661 = vsel %vm2629, 1, 0
      %v2662 = vsel %vm2630, 1, 0
      %v2663 = vsel %vm2631, 1, 0
      %v2664 = vsel %vm2632, 1, 0
      %v2665 = vsel %vm2633, 1, 0
      %v2666 = vsel %vm2634, 1, 0
      %v2667 = vsel %vm2635, 1, 0
      %v2668 = vsel %vm2636, 1, 0
      %v2669 = vsel %vm2637, 1, 0
      %v2670 = vsel %vm2638, 1, 0
      %v2671 = vsel %vm2639, 1, 0
      %v2672 = vsel %vm2640, 1, 0
      %v2673 = vsel %vm2641, 1, 0
      %v2674 = vsel %vm2642, 1, 0
      %v2675 = vsel %vm2643, 1, 0
      %v2676 = vsel %vm2644, 1, 0
      %v2677 = vsel %vm2645, 1, 0
      %v2678 = vcvt.s32.f32 %v2646
      %v2679 = vcvt.s32.f32 %v2647
      %v2680 = vcvt.s32.f32 %v2648
      %v2681 = vcvt.s32.f32 %v2649
      %v2682 = vcvt.s32.f32 %v2650
      %v2683 = vcvt.s32.f32 %v2651
      %v2684 = vcvt.s32.f32 %v2652
      %v2685 = vcvt.s32.f32 %v2653
      %v2686 = vcvt.s32.f32 %v2654
      %v2687 = vcvt.s32.f32 %v2655
      %v2688 = vcvt.s32.f32 %v2656
      %v2689 = vcvt.s32.f32 %v2657
      %v2690 = vcvt.s32.f32 %v2658
      %v2691 = vcvt.s32.f32 %v2659
      %v2692 = vcvt.s32.f32 %v2660
      %v2693 = vcvt.s32.f32 %v2661
      %v2694 = vcvt.s32.f32 %v2662
      %v2695 = vcvt.s32.f32 %v2663
      %v2696 = vcvt.s32.f32 %v2664
      %v2697 = vcvt.s32.f32 %v2665
      %v2698 = vcvt.s32.f32 %v2666
      %v2699 = vcvt.s32.f32 %v2667
      %v2700 = vcvt.s32.f32 %v2668
      %v2701 = vcvt.s32.f32 %v2669
      %v2702 = vcvt.s32.f32 %v2670
      %v2703 = vcvt.s32.f32 %v2671
      %v2704 = vcvt.s32.f32 %v2672
      %v2705 = vcvt.s32.f32 %v2673
      %v2706 = vcvt.s32.f32 %v2674
      %v2707 = vcvt.s32.f32 %v2675
      %v2708 = vcvt.s32.f32 %v2676
      %v2709 = vcvt.s32.f32 %v2677
      %v2710 = vpack.c.bf16 %v2679, %v2678
      %v2711 = vpack.c.bf16 %v2681, %v2680
      %v2712 = vpack.c.bf16 %v2683, %v2682
      %v2713 = vpack.c.bf16 %v2685, %v2684
      %v2714 = vpack.c.bf16 %v2687, %v2686
      %v2715 = vpack.c.bf16 %v2689, %v2688
      %v2716 = vpack.c.bf16 %v2691, %v2690
      %v2717 = vpack.c.bf16 %v2693, %v2692
      %v2718 = vpack.c.bf16 %v2695, %v2694
      %v2719 = vpack.c.bf16 %v2697, %v2696
      %v2720 = vpack.c.bf16 %v2699, %v2698
      %v2721 = vpack.c.bf16 %v2701, %v2700
      %v2722 = vpack.c.bf16 %v2703, %v2702
      %v2723 = vpack.c.bf16 %v2705, %v2704
      %v2724 = vpack.c.bf16 %v2707, %v2706
      %v2725 = vpack.c.bf16 %v2709, %v2708
      %s2726 = scalar_lea.vmem %s1, 256
      %v2727 = vld [vmem:[%s2726] sm:$0xf]
      %v2728 = vld [vmem:[%s2726 + $0x4] sm:$0xf]
      %v2729 = vld [vmem:[%s2726 + $0x8] sm:$0xf]
      %v2730 = vld [vmem:[%s2726 + $0xc] sm:$0xf]
      %v2731 = vld [vmem:[%s2726 + $0x10] sm:$0xf]
      %v2732 = vld [vmem:[%s2726 + $0x14] sm:$0xf]
      %v2733 = vld [vmem:[%s2726 + $0x18] sm:$0xf]
      %v2734 = vld [vmem:[%s2726 + $0x1c] sm:$0xf]
      %v2735 = vld [vmem:[%s2726 + $0x20] sm:$0xf]
      %v2736 = vld [vmem:[%s2726 + $0x24] sm:$0xf]
      %v2737 = vld [vmem:[%s2726 + $0x28] sm:$0xf]
      %v2738 = vld [vmem:[%s2726 + $0x2c] sm:$0xf]
      %v2739 = vld [vmem:[%s2726 + $0x30] sm:$0xf]
      %v2740 = vld [vmem:[%s2726 + $0x34] sm:$0xf]
      %v2741 = vld [vmem:[%s2726 + $0x38] sm:$0xf]
      %v2742 = vld [vmem:[%s2726 + $0x3c] sm:$0xf]
      %v2759 = vunpack.c.l.b16 %v2727
      %v2760 = vunpack.c.l.b16 %v2728
      %v2761 = vunpack.c.l.b16 %v2729
      %v2762 = vunpack.c.l.b16 %v2730
      %v2763 = vunpack.c.l.b16 %v2731
      %v2764 = vunpack.c.l.b16 %v2732
      %v2765 = vunpack.c.l.b16 %v2733
      %v2766 = vunpack.c.l.b16 %v2734
      %v2767 = vunpack.c.l.b16 %v2735
      %v2768 = vunpack.c.l.b16 %v2736
      %v2769 = vunpack.c.l.b16 %v2737
      %v2770 = vunpack.c.l.b16 %v2738
      %v2771 = vunpack.c.l.b16 %v2739
      %v2772 = vunpack.c.l.b16 %v2740
      %v2773 = vunpack.c.l.b16 %v2741
      %v2774 = vunpack.c.l.b16 %v2742
      %v2775 = vpack.c.b16 %v2760, %v2759
      %v2776 = vpack.c.b16 %v2762, %v2761
      %v2777 = vpack.c.b16 %v2764, %v2763
      %v2778 = vpack.c.b16 %v2766, %v2765
      %v2779 = vpack.c.b16 %v2768, %v2767
      %v2780 = vpack.c.b16 %v2770, %v2769
      %v2781 = vpack.c.b16 %v2772, %v2771
      %v2782 = vpack.c.b16 %v2774, %v2773
      %2791 = vmatprep.subr.bf16.mxu0 0
      %2792 = vmatpush1.bf16.msra.mxu0 %v2782
      %2793 = vmatprep.subr.bf16.mxu0 0
      %2794 = vmatpush1.bf16.msra.mxu0 %v2781
      %2795 = vmatprep.subr.bf16.mxu0 0
      %2796 = vmatpush1.bf16.msra.mxu0 %v2780
      %2797 = vmatprep.subr.bf16.mxu0 0
      %2798 = vmatpush1.bf16.msra.mxu0 %v2779
      %2799 = vmatprep.subr.bf16.mxu0 0
      %2800 = vmatpush1.bf16.msra.mxu0 %v2778
      %2801 = vmatprep.subr.bf16.mxu0 0
      %2802 = vmatpush1.bf16.msra.mxu0 %v2777
      %2803 = vmatprep.subr.bf16.mxu0 0
      %2804 = vmatpush1.bf16.msra.mxu0 %v2776
      %2805 = vmatprep.subr.bf16.mxu0 0
      %2806 = vmatpush1.bf16.msra.mxu0 %v2775
      %2807 = vmatprep.subr.bf16.mxu0 0
      %2808 = vmatpush2.bf16.msra.mxu0 0
      %2809 = vmatprep.subr.bf16.mxu0 0
      %2810 = vmatpush2.bf16.msra.mxu0 0
      %2811 = vmatprep.subr.bf16.mxu0 0
      %2812 = vmatpush2.bf16.msra.mxu0 0
      %2813 = vmatprep.subr.bf16.mxu0 0
      %2814 = vmatpush2.bf16.msra.mxu0 0
      %2815 = vmatprep.subr.bf16.mxu0 0
      %2816 = vmatpush2.bf16.msra.mxu0 0
      %2817 = vmatprep.subr.bf16.mxu0 0
      %2818 = vmatpush2.bf16.msra.mxu0 0
      %2819 = vmatprep.subr.bf16.mxu0 0
      %2820 = vmatpush2.bf16.msra.mxu0 0
      %2821 = vmatprep.subr.bf16.mxu0 0
      %2822 = vmatpush2.bf16.msra.mxu0 0
      %2823 = vmatprep.mubr.bf16.mxu0 0
      %2824 = vmatmul.mubr.bf16.gmra.mxu0 %v2710
      %v2825 = vpop.f32.mrf.mxu0
      %v2826 = vadd.f32 0.0, %v2825
      %v2827 = vpop.f32.mrf.mxu0
      %v2828 = vpop.f32.mrf.mxu0
      %v2829 = vadd.f32 0.0, %v2828
      %v2830 = vpop.f32.mrf.mxu0
      %2831 = vmatprep.mubr.bf16.mxu0 0
      %2832 = vmatmul.mubr.bf16.gmra.mxu0 %v2711
      %v2833 = vpop.f32.mrf.mxu0
      %v2834 = vadd.f32 0.0, %v2833
      %v2835 = vpop.f32.mrf.mxu0
      %v2836 = vpop.f32.mrf.mxu0
      %v2837 = vadd.f32 0.0, %v2836
      %v2838 = vpop.f32.mrf.mxu0
      %2839 = vmatprep.mubr.bf16.mxu0 0
      %2840 = vmatmul.mubr.bf16.gmra.mxu0 %v2712
      %v2841 = vpop.f32.mrf.mxu0
      %v2842 = vadd.f32 0.0, %v2841
      %v2843 = vpop.f32.mrf.mxu0
      %v2844 = vpop.f32.mrf.mxu0
      %v2845 = vadd.f32 0.0, %v2844
      %v2846 = vpop.f32.mrf.mxu0
      %2847 = vmatprep.mubr.bf16.mxu0 0
      %2848 = vmatmul.mubr.bf16.gmra.mxu0 %v2713
      %v2849 = vpop.f32.mrf.mxu0
      %v2850 = vadd.f32 0.0, %v2849
      %v2851 = vpop.f32.mrf.mxu0
      %v2852 = vpop.f32.mrf.mxu0
      %v2853 = vadd.f32 0.0, %v2852
      %v2854 = vpop.f32.mrf.mxu0
      %2855 = vmatprep.mubr.bf16.mxu0 0
      %2856 = vmatmul.mubr.bf16.gmra.mxu0 %v2714
      %v2857 = vpop.f32.mrf.mxu0
      %v2858 = vadd.f32 0.0, %v2857
      %v2859 = vpop.f32.mrf.mxu0
      %v2860 = vpop.f32.mrf.mxu0
      %v2861 = vadd.f32 0.0, %v2860
      %v2862 = vpop.f32.mrf.mxu0
      %2863 = vmatprep.mubr.bf16.mxu0 0
      %2864 = vmatmul.mubr.bf16.gmra.mxu0 %v2715
      %v2865 = vpop.f32.mrf.mxu0
      %v2866 = vadd.f32 0.0, %v2865
      %v2867 = vpop.f32.mrf.mxu0
      %v2868 = vpop.f32.mrf.mxu0
      %v2869 = vadd.f32 0.0, %v2868
      %v2870 = vpop.f32.mrf.mxu0
      %2871 = vmatprep.mubr.bf16.mxu0 0
      %2872 = vmatmul.mubr.bf16.gmra.mxu0 %v2716
      %v2873 = vpop.f32.mrf.mxu0
      %v2874 = vadd.f32 0.0, %v2873
      %v2875 = vpop.f32.mrf.mxu0
      %v2876 = vpop.f32.mrf.mxu0
      %v2877 = vadd.f32 0.0, %v2876
      %v2878 = vpop.f32.mrf.mxu0
      %2879 = vmatprep.mubr.bf16.mxu0 0
      %2880 = vmatmul.mubr.bf16.gmra.mxu0 %v2717
      %v2881 = vpop.f32.mrf.mxu0
      %v2882 = vadd.f32 0.0, %v2881
      %v2883 = vpop.f32.mrf.mxu0
      %v2884 = vpop.f32.mrf.mxu0
      %v2885 = vadd.f32 0.0, %v2884
      %v2886 = vpop.f32.mrf.mxu0
      %2887 = vmatprep.mubr.bf16.mxu0 0
      %2888 = vmatmul.mubr.bf16.gmra.mxu0 %v2718
      %v2889 = vpop.f32.mrf.mxu0
      %v2890 = vadd.f32 0.0, %v2889
      %v2891 = vpop.f32.mrf.mxu0
      %v2892 = vpop.f32.mrf.mxu0
      %v2893 = vadd.f32 0.0, %v2892
      %v2894 = vpop.f32.mrf.mxu0
      %2895 = vmatprep.mubr.bf16.mxu0 0
      %2896 = vmatmul.mubr.bf16.gmra.mxu0 %v2719
      %v2897 = vpop.f32.mrf.mxu0
      %v2898 = vadd.f32 0.0, %v2897
      %v2899 = vpop.f32.mrf.mxu0
      %v2900 = vpop.f32.mrf.mxu0
      %v2901 = vadd.f32 0.0, %v2900
      %v2902 = vpop.f32.mrf.mxu0
      %2903 = vmatprep.mubr.bf16.mxu0 0
      %2904 = vmatmul.mubr.bf16.gmra.mxu0 %v2720
      %v2905 = vpop.f32.mrf.mxu0
      %v2906 = vadd.f32 0.0, %v2905
      %v2907 = vpop.f32.mrf.mxu0
      %v2908 = vpop.f32.mrf.mxu0
      %v2909 = vadd.f32 0.0, %v2908
      %v2910 = vpop.f32.mrf.mxu0
      %2911 = vmatprep.mubr.bf16.mxu0 0
      %2912 = vmatmul.mubr.bf16.gmra.mxu0 %v2721
      %v2913 = vpop.f32.mrf.mxu0
      %v2914 = vadd.f32 0.0, %v2913
      %v2915 = vpop.f32.mrf.mxu0
      %v2916 = vpop.f32.mrf.mxu0
      %v2917 = vadd.f32 0.0, %v2916
      %v2918 = vpop.f32.mrf.mxu0
      %2919 = vmatprep.mubr.bf16.mxu0 0
      %2920 = vmatmul.mubr.bf16.gmra.mxu0 %v2722
      %v2921 = vpop.f32.mrf.mxu0
      %v2922 = vadd.f32 0.0, %v2921
      %v2923 = vpop.f32.mrf.mxu0
      %v2924 = vpop.f32.mrf.mxu0
      %v2925 = vadd.f32 0.0, %v2924
      %v2926 = vpop.f32.mrf.mxu0
      %2927 = vmatprep.mubr.bf16.mxu0 0
      %2928 = vmatmul.mubr.bf16.gmra.mxu0 %v2723
      %v2929 = vpop.f32.mrf.mxu0
      %v2930 = vadd.f32 0.0, %v2929
      %v2931 = vpop.f32.mrf.mxu0
      %v2932 = vpop.f32.mrf.mxu0
      %v2933 = vadd.f32 0.0, %v2932
      %v2934 = vpop.f32.mrf.mxu0
      %2935 = vmatprep.mubr.bf16.mxu0 0
      %2936 = vmatmul.mubr.bf16.gmra.mxu0 %v2724
      %v2937 = vpop.f32.mrf.mxu0
      %v2938 = vadd.f32 0.0, %v2937
      %v2939 = vpop.f32.mrf.mxu0
      %v2940 = vpop.f32.mrf.mxu0
      %v2941 = vadd.f32 0.0, %v2940
      %v2942 = vpop.f32.mrf.mxu0
      %2943 = vmatprep.mubr.bf16.mxu0 0
      %2944 = vmatmul.mubr.bf16.gmra.mxu0 %v2725
      %v2945 = vpop.f32.mrf.mxu0
      %v2946 = vadd.f32 0.0, %v2945
      %v2947 = vpop.f32.mrf.mxu0
      %v2948 = vpop.f32.mrf.mxu0
      %v2949 = vadd.f32 0.0, %v2948
      %v2950 = vpop.f32.mrf.mxu0
      %2951 = vdwg.mxu0
      %v2952 = vsub.f32 %v2826, %v1438
      %v2953 = vsub.f32 %v2829, %v1441
      %v2954 = vsub.f32 %v2834, %v1446
      %v2955 = vsub.f32 %v2837, %v1449
      %v2956 = vsub.f32 %v2842, %v1454
      %v2957 = vsub.f32 %v2845, %v1457
      %v2958 = vsub.f32 %v2850, %v1462
      %v2959 = vsub.f32 %v2853, %v1465
      %v2960 = vsub.f32 %v2858, %v1470
      %v2961 = vsub.f32 %v2861, %v1473
      %v2962 = vsub.f32 %v2866, %v1478
      %v2963 = vsub.f32 %v2869, %v1481
      %v2964 = vsub.f32 %v2874, %v1486
      %v2965 = vsub.f32 %v2877, %v1489
      %v2966 = vsub.f32 %v2882, %v1494
      %v2967 = vsub.f32 %v2885, %v1497
      %v2968 = vsub.f32 %v2890, %v1502
      %v2969 = vsub.f32 %v2893, %v1505
      %v2970 = vsub.f32 %v2898, %v1510
      %v2971 = vsub.f32 %v2901, %v1513
      %v2972 = vsub.f32 %v2906, %v1518
      %v2973 = vsub.f32 %v2909, %v1521
      %v2974 = vsub.f32 %v2914, %v1526
      %v2975 = vsub.f32 %v2917, %v1529
      %v2976 = vsub.f32 %v2922, %v1534
      %v2977 = vsub.f32 %v2925, %v1537
      %v2978 = vsub.f32 %v2930, %v1542
      %v2979 = vsub.f32 %v2933, %v1545
      %v2980 = vsub.f32 %v2938, %v1550
      %v2981 = vsub.f32 %v2941, %v1553
      %v2982 = vsub.f32 %v2946, %v1558
      %v2983 = vsub.f32 %v2949, %v1561
      %v2984 = vmul.f32 %v2952, %v2952
      %v2985 = vmul.f32 %v2953, %v2953
      %v2986 = vmul.f32 %v2954, %v2954
      %v2987 = vmul.f32 %v2955, %v2955
      %v2988 = vmul.f32 %v2956, %v2956
      %v2989 = vmul.f32 %v2957, %v2957
      %v2990 = vmul.f32 %v2958, %v2958
      %v2991 = vmul.f32 %v2959, %v2959
      %v2992 = vmul.f32 %v2960, %v2960
      %v2993 = vmul.f32 %v2961, %v2961
      %v2994 = vmul.f32 %v2962, %v2962
      %v2995 = vmul.f32 %v2963, %v2963
      %v2996 = vmul.f32 %v2964, %v2964
      %v2997 = vmul.f32 %v2965, %v2965
      %v2998 = vmul.f32 %v2966, %v2966
      %v2999 = vmul.f32 %v2967, %v2967
      %v3000 = vmul.f32 %v2968, %v2968
      %v3001 = vmul.f32 %v2969, %v2969
      %v3002 = vmul.f32 %v2970, %v2970
      %v3003 = vmul.f32 %v2971, %v2971
      %v3004 = vmul.f32 %v2972, %v2972
      %v3005 = vmul.f32 %v2973, %v2973
      %v3006 = vmul.f32 %v2974, %v2974
      %v3007 = vmul.f32 %v2975, %v2975
      %v3008 = vmul.f32 %v2976, %v2976
      %v3009 = vmul.f32 %v2977, %v2977
      %v3010 = vmul.f32 %v2978, %v2978
      %v3011 = vmul.f32 %v2979, %v2979
      %v3012 = vmul.f32 %v2980, %v2980
      %v3013 = vmul.f32 %v2981, %v2981
      %v3014 = vmul.f32 %v2982, %v2982
      %v3015 = vmul.f32 %v2983, %v2983
      %3016 = vadd.xlane.f32.xlu0 %v2984
      %v3017 = vpop.xlane.xlu0 %3016
      %3018 = vadd.xlane.f32.xlu0 %v2985
      %v3019 = vpop.xlane.xlu0 %3018
      %3020 = vadd.xlane.f32.xlu0 %v2986
      %v3021 = vpop.xlane.xlu0 %3020
      %3022 = vadd.xlane.f32.xlu0 %v2987
      %v3023 = vpop.xlane.xlu0 %3022
      %3024 = vadd.xlane.f32.xlu0 %v2988
      %v3025 = vpop.xlane.xlu0 %3024
      %3026 = vadd.xlane.f32.xlu0 %v2989
      %v3027 = vpop.xlane.xlu0 %3026
      %3028 = vadd.xlane.f32.xlu0 %v2990
      %v3029 = vpop.xlane.xlu0 %3028
      %3030 = vadd.xlane.f32.xlu0 %v2991
      %v3031 = vpop.xlane.xlu0 %3030
      %3032 = vadd.xlane.f32.xlu0 %v2992
      %v3033 = vpop.xlane.xlu0 %3032
      %3034 = vadd.xlane.f32.xlu0 %v2993
      %v3035 = vpop.xlane.xlu0 %3034
      %3036 = vadd.xlane.f32.xlu0 %v2994
      %v3037 = vpop.xlane.xlu0 %3036
      %3038 = vadd.xlane.f32.xlu0 %v2995
      %v3039 = vpop.xlane.xlu0 %3038
      %3040 = vadd.xlane.f32.xlu0 %v2996
      %v3041 = vpop.xlane.xlu0 %3040
      %3042 = vadd.xlane.f32.xlu0 %v2997
      %v3043 = vpop.xlane.xlu0 %3042
      %3044 = vadd.xlane.f32.xlu0 %v2998
      %v3045 = vpop.xlane.xlu0 %3044
      %3046 = vadd.xlane.f32.xlu0 %v2999
      %v3047 = vpop.xlane.xlu0 %3046
      %3048 = vadd.xlane.f32.xlu0 %v3000
      %v3049 = vpop.xlane.xlu0 %3048
      %3050 = vadd.xlane.f32.xlu0 %v3001
      %v3051 = vpop.xlane.xlu0 %3050
      %3052 = vadd.xlane.f32.xlu0 %v3002
      %v3053 = vpop.xlane.xlu0 %3052
      %3054 = vadd.xlane.f32.xlu0 %v3003
      %v3055 = vpop.xlane.xlu0 %3054
      %3056 = vadd.xlane.f32.xlu0 %v3004
      %v3057 = vpop.xlane.xlu0 %3056
      %3058 = vadd.xlane.f32.xlu0 %v3005
      %v3059 = vpop.xlane.xlu0 %3058
      %3060 = vadd.xlane.f32.xlu0 %v3006
      %v3061 = vpop.xlane.xlu0 %3060
      %3062 = vadd.xlane.f32.xlu0 %v3007
      %v3063 = vpop.xlane.xlu0 %3062
      %3064 = vadd.xlane.f32.xlu0 %v3008
      %v3065 = vpop.xlane.xlu0 %3064
      %3066 = vadd.xlane.f32.xlu0 %v3009
      %v3067 = vpop.xlane.xlu0 %3066
      %3068 = vadd.xlane.f32.xlu0 %v3010
      %v3069 = vpop.xlane.xlu0 %3068
      %3070 = vadd.xlane.f32.xlu0 %v3011
      %v3071 = vpop.xlane.xlu0 %3070
      %3072 = vadd.xlane.f32.xlu0 %v3012
      %v3073 = vpop.xlane.xlu0 %3072
      %3074 = vadd.xlane.f32.xlu0 %v3013
      %v3075 = vpop.xlane.xlu0 %3074
      %3076 = vadd.xlane.f32.xlu0 %v3014
      %v3077 = vpop.xlane.xlu0 %3076
      %3078 = vadd.xlane.f32.xlu0 %v3015
      %v3079 = vpop.xlane.xlu0 %3078
      %vm3080 = vcmp.lt.s32.totalorder %v2004, 32
      %v3081 = vpack.c.bf16 %v2829, %v2826
      %v3082 = vpack.c.bf16 %v2837, %v2834
      %v3083 = vpack.c.bf16 %v2845, %v2842
      %v3084 = vpack.c.bf16 %v2853, %v2850
      %v3085 = vpack.c.bf16 %v2861, %v2858
      %v3086 = vpack.c.bf16 %v2869, %v2866
      %v3087 = vpack.c.bf16 %v2877, %v2874
      %v3088 = vpack.c.bf16 %v2885, %v2882
      %v3089 = vpack.c.bf16 %v2893, %v2890
      %v3090 = vpack.c.bf16 %v2901, %v2898
      %v3091 = vpack.c.bf16 %v2909, %v2906
      %v3092 = vpack.c.bf16 %v2917, %v2914
      %v3093 = vpack.c.bf16 %v2925, %v2922
      %v3094 = vpack.c.bf16 %v2933, %v2930
      %v3095 = vpack.c.bf16 %v2941, %v2938
      %v3096 = vpack.c.bf16 %v2949, %v2946
      %vm3097 = vmpackc.low %vm3080, %vm3080
      %v3098 = vsel %vm3097, 65537, 0
      %v3099 = vlaneseq
      %v3100 = vshrl.u32 %v3099, 7
      %v3101 = vsub.s32 0, %v3100
      %v3102 = vrot.slane %v3098, %v3101
      %vm3103 = vcmp.ne.s16.totalorder %v3102, 0
      %v3104 = vsel %vm3103, %v3081, %v294
      %v3105 = vsel %vm3103, %v3082, %v295
      %v3106 = vsel %vm3103, %v3083, %v296
      %v3107 = vsel %vm3103, %v3084, %v297
      %v3108 = vsel %vm3103, %v3085, %v298
      %v3109 = vsel %vm3103, %v3086, %v299
      %v3110 = vsel %vm3103, %v3087, %v300
      %v3111 = vsel %vm3103, %v3088, %v301
      %v3112 = vsel %vm3103, %v3089, %v302
      %v3113 = vsel %vm3103, %v3090, %v303
      %v3114 = vsel %vm3103, %v3091, %v304
      %v3115 = vsel %vm3103, %v3092, %v305
      %v3116 = vsel %vm3103, %v3093, %v306
      %v3117 = vsel %vm3103, %v3094, %v307
      %v3118 = vsel %vm3103, %v3095, %v308
      %v3119 = vsel %vm3103, %v3096, %v309
      %s3120 = scalar_lea.vmem %s1, 384
      %v3121 = vld [vmem:[%s3120] sm:$0xf]
      %v3122 = vld [vmem:[%s3120 + $0x4] sm:$0xf]
      %v3123 = vld [vmem:[%s3120 + $0x8] sm:$0xf]
      %v3124 = vld [vmem:[%s3120 + $0xc] sm:$0xf]
      %v3125 = vld [vmem:[%s3120 + $0x10] sm:$0xf]
      %v3126 = vld [vmem:[%s3120 + $0x14] sm:$0xf]
      %v3127 = vld [vmem:[%s3120 + $0x18] sm:$0xf]
      %v3128 = vld [vmem:[%s3120 + $0x1c] sm:$0xf]
      %v3129 = vld [vmem:[%s3120 + $0x20] sm:$0xf]
      %v3130 = vld [vmem:[%s3120 + $0x24] sm:$0xf]
      %v3131 = vld [vmem:[%s3120 + $0x28] sm:$0xf]
      %v3132 = vld [vmem:[%s3120 + $0x2c] sm:$0xf]
      %v3133 = vld [vmem:[%s3120 + $0x30] sm:$0xf]
      %v3134 = vld [vmem:[%s3120 + $0x34] sm:$0xf]
      %v3135 = vld [vmem:[%s3120 + $0x38] sm:$0xf]
      %v3136 = vld [vmem:[%s3120 + $0x3c] sm:$0xf]
      %v3137 = vld [vmem:[%s2 + $0x4] sm:$0x1]
      %v3138 = vlaneseq
      %v3139 = vshrl.u32 %v3138, 7
      %v3140 = vsub.s32 0, %v3139
      %v3141 = vrot.slane %v3137, %v3140
      %v3158 = vunpack.c.l.b16 %v3121
      %v3159 = vunpack.c.l.b16 %v3122
      %v3160 = vunpack.c.l.b16 %v3123
      %v3161 = vunpack.c.l.b16 %v3124
      %v3162 = vunpack.c.l.b16 %v3125
      %v3163 = vunpack.c.l.b16 %v3126
      %v3164 = vunpack.c.l.b16 %v3127
      %v3165 = vunpack.c.l.b16 %v3128
      %v3166 = vunpack.c.l.b16 %v3129
      %v3167 = vunpack.c.l.b16 %v3130
      %v3168 = vunpack.c.l.b16 %v3131
      %v3169 = vunpack.c.l.b16 %v3132
      %v3170 = vunpack.c.l.b16 %v3133
      %v3171 = vunpack.c.l.b16 %v3134
      %v3172 = vunpack.c.l.b16 %v3135
      %v3173 = vunpack.c.l.b16 %v3136
      %v3174 = vpack.c.b16 %v3159, %v3158
      %v3175 = vpack.c.b16 %v3161, %v3160
      %v3176 = vpack.c.b16 %v3163, %v3162
      %v3177 = vpack.c.b16 %v3165, %v3164
      %v3178 = vpack.c.b16 %v3167, %v3166
      %v3179 = vpack.c.b16 %v3169, %v3168
      %v3180 = vpack.c.b16 %v3171, %v3170
      %v3181 = vpack.c.b16 %v3173, %v3172
      %3190 = vmatprep.subr.bf16.mxu0 0
      %3191 = vmatpush1.bf16.msra.mxu0 %v3181
      %3192 = vmatprep.subr.bf16.mxu0 0
      %3193 = vmatpush1.bf16.msra.mxu0 %v3180
      %3194 = vmatprep.subr.bf16.mxu0 0
      %3195 = vmatpush1.bf16.msra.mxu0 %v3179
      %3196 = vmatprep.subr.bf16.mxu0 0
      %3197 = vmatpush1.bf16.msra.mxu0 %v3178
      %3198 = vmatprep.subr.bf16.mxu0 0
      %3199 = vmatpush1.bf16.msra.mxu0 %v3177
      %3200 = vmatprep.subr.bf16.mxu0 0
      %3201 = vmatpush1.bf16.msra.mxu0 %v3176
      %3202 = vmatprep.subr.bf16.mxu0 0
      %3203 = vmatpush1.bf16.msra.mxu0 %v3175
      %3204 = vmatprep.subr.bf16.mxu0 0
      %3205 = vmatpush1.bf16.msra.mxu0 %v3174
      %3206 = vmatprep.subr.bf16.mxu0 0
      %3207 = vmatpush2.bf16.msra.mxu0 0
      %3208 = vmatprep.subr.bf16.mxu0 0
      %3209 = vmatpush2.bf16.msra.mxu0 0
      %3210 = vmatprep.subr.bf16.mxu0 0
      %3211 = vmatpush2.bf16.msra.mxu0 0
      %3212 = vmatprep.subr.bf16.mxu0 0
      %3213 = vmatpush2.bf16.msra.mxu0 0
      %3214 = vmatprep.subr.bf16.mxu0 0
      %3215 = vmatpush2.bf16.msra.mxu0 0
      %3216 = vmatprep.subr.bf16.mxu0 0
      %3217 = vmatpush2.bf16.msra.mxu0 0
      %3218 = vmatprep.subr.bf16.mxu0 0
      %3219 = vmatpush2.bf16.msra.mxu0 0
      %3220 = vmatprep.subr.bf16.mxu0 0
      %3221 = vmatpush2.bf16.msra.mxu0 0
      %3222 = vmatprep.mubr.bf16.mxu0 0
      %3223 = vmatmul.mubr.bf16.gmra.mxu0 %v3104
      %v3224 = vpop.f32.mrf.mxu0
      %v3225 = vadd.f32 %v3141, %v3224
      %v3226 = vpop.f32.mrf.mxu0
      %v3227 = vpop.f32.mrf.mxu0
      %v3228 = vadd.f32 %v3141, %v3227
      %v3229 = vpop.f32.mrf.mxu0
      %3230 = vmatprep.mubr.bf16.mxu0 0
      %3231 = vmatmul.mubr.bf16.gmra.mxu0 %v3105
      %v3232 = vpop.f32.mrf.mxu0
      %v3233 = vadd.f32 %v3141, %v3232
      %v3234 = vpop.f32.mrf.mxu0
      %v3235 = vpop.f32.mrf.mxu0
      %v3236 = vadd.f32 %v3141, %v3235
      %v3237 = vpop.f32.mrf.mxu0
      %3238 = vmatprep.mubr.bf16.mxu0 0
      %3239 = vmatmul.mubr.bf16.gmra.mxu0 %v3106
      %v3240 = vpop.f32.mrf.mxu0
      %v3241 = vadd.f32 %v3141, %v3240
      %v3242 = vpop.f32.mrf.mxu0
      %v3243 = vpop.f32.mrf.mxu0
      %v3244 = vadd.f32 %v3141, %v3243
      %v3245 = vpop.f32.mrf.mxu0
      %3246 = vmatprep.mubr.bf16.mxu0 0
      %3247 = vmatmul.mubr.bf16.gmra.mxu0 %v3107
      %v3248 = vpop.f32.mrf.mxu0
      %v3249 = vadd.f32 %v3141, %v3248
      %v3250 = vpop.f32.mrf.mxu0
      %v3251 = vpop.f32.mrf.mxu0
      %v3252 = vadd.f32 %v3141, %v3251
      %v3253 = vpop.f32.mrf.mxu0
      %3254 = vmatprep.mubr.bf16.mxu0 0
      %3255 = vmatmul.mubr.bf16.gmra.mxu0 %v3108
      %v3256 = vpop.f32.mrf.mxu0
      %v3257 = vadd.f32 %v3141, %v3256
      %v3258 = vpop.f32.mrf.mxu0
      %v3259 = vpop.f32.mrf.mxu0
      %v3260 = vadd.f32 %v3141, %v3259
      %v3261 = vpop.f32.mrf.mxu0
      %3262 = vmatprep.mubr.bf16.mxu0 0
      %3263 = vmatmul.mubr.bf16.gmra.mxu0 %v3109
      %v3264 = vpop.f32.mrf.mxu0
      %v3265 = vadd.f32 %v3141, %v3264
      %v3266 = vpop.f32.mrf.mxu0
      %v3267 = vpop.f32.mrf.mxu0
      %v3268 = vadd.f32 %v3141, %v3267
      %v3269 = vpop.f32.mrf.mxu0
      %3270 = vmatprep.mubr.bf16.mxu0 0
      %3271 = vmatmul.mubr.bf16.gmra.mxu0 %v3110
      %v3272 = vpop.f32.mrf.mxu0
      %v3273 = vadd.f32 %v3141, %v3272
      %v3274 = vpop.f32.mrf.mxu0
      %v3275 = vpop.f32.mrf.mxu0
      %v3276 = vadd.f32 %v3141, %v3275
      %v3277 = vpop.f32.mrf.mxu0
      %3278 = vmatprep.mubr.bf16.mxu0 0
      %3279 = vmatmul.mubr.bf16.gmra.mxu0 %v3111
      %v3280 = vpop.f32.mrf.mxu0
      %v3281 = vadd.f32 %v3141, %v3280
      %v3282 = vpop.f32.mrf.mxu0
      %v3283 = vpop.f32.mrf.mxu0
      %v3284 = vadd.f32 %v3141, %v3283
      %v3285 = vpop.f32.mrf.mxu0
      %3286 = vmatprep.mubr.bf16.mxu0 0
      %3287 = vmatmul.mubr.bf16.gmra.mxu0 %v3112
      %v3288 = vpop.f32.mrf.mxu0
      %v3289 = vadd.f32 %v3141, %v3288
      %v3290 = vpop.f32.mrf.mxu0
      %v3291 = vpop.f32.mrf.mxu0
      %v3292 = vadd.f32 %v3141, %v3291
      %v3293 = vpop.f32.mrf.mxu0
      %3294 = vmatprep.mubr.bf16.mxu0 0
      %3295 = vmatmul.mubr.bf16.gmra.mxu0 %v3113
      %v3296 = vpop.f32.mrf.mxu0
      %v3297 = vadd.f32 %v3141, %v3296
      %v3298 = vpop.f32.mrf.mxu0
      %v3299 = vpop.f32.mrf.mxu0
      %v3300 = vadd.f32 %v3141, %v3299
      %v3301 = vpop.f32.mrf.mxu0
      %3302 = vmatprep.mubr.bf16.mxu0 0
      %3303 = vmatmul.mubr.bf16.gmra.mxu0 %v3114
      %v3304 = vpop.f32.mrf.mxu0
      %v3305 = vadd.f32 %v3141, %v3304
      %v3306 = vpop.f32.mrf.mxu0
      %v3307 = vpop.f32.mrf.mxu0
      %v3308 = vadd.f32 %v3141, %v3307
      %v3309 = vpop.f32.mrf.mxu0
      %3310 = vmatprep.mubr.bf16.mxu0 0
      %3311 = vmatmul.mubr.bf16.gmra.mxu0 %v3115
      %v3312 = vpop.f32.mrf.mxu0
      %v3313 = vadd.f32 %v3141, %v3312
      %v3314 = vpop.f32.mrf.mxu0
      %v3315 = vpop.f32.mrf.mxu0
      %v3316 = vadd.f32 %v3141, %v3315
      %v3317 = vpop.f32.mrf.mxu0
      %3318 = vmatprep.mubr.bf16.mxu0 0
      %3319 = vmatmul.mubr.bf16.gmra.mxu0 %v3116
      %v3320 = vpop.f32.mrf.mxu0
      %v3321 = vadd.f32 %v3141, %v3320
      %v3322 = vpop.f32.mrf.mxu0
      %v3323 = vpop.f32.mrf.mxu0
      %v3324 = vadd.f32 %v3141, %v3323
      %v3325 = vpop.f32.mrf.mxu0
      %3326 = vmatprep.mubr.bf16.mxu0 0
      %3327 = vmatmul.mubr.bf16.gmra.mxu0 %v3117
      %v3328 = vpop.f32.mrf.mxu0
      %v3329 = vadd.f32 %v3141, %v3328
      %v3330 = vpop.f32.mrf.mxu0
      %v3331 = vpop.f32.mrf.mxu0
      %v3332 = vadd.f32 %v3141, %v3331
      %v3333 = vpop.f32.mrf.mxu0
      %3334 = vmatprep.mubr.bf16.mxu0 0
      %3335 = vmatmul.mubr.bf16.gmra.mxu0 %v3118
      %v3336 = vpop.f32.mrf.mxu0
      %v3337 = vadd.f32 %v3141, %v3336
      %v3338 = vpop.f32.mrf.mxu0
      %v3339 = vpop.f32.mrf.mxu0
      %v3340 = vadd.f32 %v3141, %v3339
      %v3341 = vpop.f32.mrf.mxu0
      %3342 = vmatprep.mubr.bf16.mxu0 0
      %3343 = vmatmul.mubr.bf16.gmra.mxu0 %v3119
      %v3344 = vpop.f32.mrf.mxu0
      %v3345 = vadd.f32 %v3141, %v3344
      %v3346 = vpop.f32.mrf.mxu0
      %v3347 = vpop.f32.mrf.mxu0
      %v3348 = vadd.f32 %v3141, %v3347
      %v3349 = vpop.f32.mrf.mxu0
      %3350 = vdwg.mxu0
      %vm3351 = vcmp.gt.f32.partialorder %v3225, 0.0
      %vm3352 = vcmp.gt.f32.partialorder %v3228, 0.0
      %vm3353 = vcmp.gt.f32.partialorder %v3233, 0.0
      %vm3354 = vcmp.gt.f32.partialorder %v3236, 0.0
      %vm3355 = vcmp.gt.f32.partialorder %v3241, 0.0
      %vm3356 = vcmp.gt.f32.partialorder %v3244, 0.0
      %vm3357 = vcmp.gt.f32.partialorder %v3249, 0.0
      %vm3358 = vcmp.gt.f32.partialorder %v3252, 0.0
      %vm3359 = vcmp.gt.f32.partialorder %v3257, 0.0
      %vm3360 = vcmp.gt.f32.partialorder %v3260, 0.0
      %vm3361 = vcmp.gt.f32.partialorder %v3265, 0.0
      %vm3362 = vcmp.gt.f32.partialorder %v3268, 0.0
      %vm3363 = vcmp.gt.f32.partialorder %v3273, 0.0
      %vm3364 = vcmp.gt.f32.partialorder %v3276, 0.0
      %vm3365 = vcmp.gt.f32.partialorder %v3281, 0.0
      %vm3366 = vcmp.gt.f32.partialorder %v3284, 0.0
      %vm3367 = vcmp.gt.f32.partialorder %v3289, 0.0
      %vm3368 = vcmp.gt.f32.partialorder %v3292, 0.0
      %vm3369 = vcmp.gt.f32.partialorder %v3297, 0.0
      %vm3370 = vcmp.gt.f32.partialorder %v3300, 0.0
      %vm3371 = vcmp.gt.f32.partialorder %v3305, 0.0
      %vm3372 = vcmp.gt.f32.partialorder %v3308, 0.0
      %vm3373 = vcmp.gt.f32.partialorder %v3313, 0.0
      %vm3374 = vcmp.gt.f32.partialorder %v3316, 0.0
      %vm3375 = vcmp.gt.f32.partialorder %v3321, 0.0
      %vm3376 = vcmp.gt.f32.partialorder %v3324, 0.0
      %vm3377 = vcmp.gt.f32.partialorder %v3329, 0.0
      %vm3378 = vcmp.gt.f32.partialorder %v3332, 0.0
      %vm3379 = vcmp.gt.f32.partialorder %v3337, 0.0
      %vm3380 = vcmp.gt.f32.partialorder %v3340, 0.0
      %vm3381 = vcmp.gt.f32.partialorder %v3345, 0.0
      %vm3382 = vcmp.gt.f32.partialorder %v3348, 0.0
      %v3383 = vmul.f32 %v3225, 0.2
      %v3384 = vmul.f32 %v3228, 0.2
      %v3385 = vmul.f32 %v3233, 0.2
      %v3386 = vmul.f32 %v3236, 0.2
      %v3387 = vmul.f32 %v3241, 0.2
      %v3388 = vmul.f32 %v3244, 0.2
      %v3389 = vmul.f32 %v3249, 0.2
      %v3390 = vmul.f32 %v3252, 0.2
      %v3391 = vmul.f32 %v3257, 0.2
      %v3392 = vmul.f32 %v3260, 0.2
      %v3393 = vmul.f32 %v3265, 0.2
      %v3394 = vmul.f32 %v3268, 0.2
      %v3395 = vmul.f32 %v3273, 0.2
      %v3396 = vmul.f32 %v3276, 0.2
      %v3397 = vmul.f32 %v3281, 0.2
      %v3398 = vmul.f32 %v3284, 0.2
      %v3399 = vmul.f32 %v3289, 0.2
      %v3400 = vmul.f32 %v3292, 0.2
      %v3401 = vmul.f32 %v3297, 0.2
      %v3402 = vmul.f32 %v3300, 0.2
      %v3403 = vmul.f32 %v3305, 0.2
      %v3404 = vmul.f32 %v3308, 0.2
      %v3405 = vmul.f32 %v3313, 0.2
      %v3406 = vmul.f32 %v3316, 0.2
      %v3407 = vmul.f32 %v3321, 0.2
      %v3408 = vmul.f32 %v3324, 0.2
      %v3409 = vmul.f32 %v3329, 0.2
      %v3410 = vmul.f32 %v3332, 0.2
      %v3411 = vmul.f32 %v3337, 0.2
      %v3412 = vmul.f32 %v3340, 0.2
      %v3413 = vmul.f32 %v3345, 0.2
      %v3414 = vmul.f32 %v3348, 0.2
      %v3415 = vsel %vm3351, %v3225, %v3383
      %v3416 = vsel %vm3352, %v3228, %v3384
      %v3417 = vsel %vm3353, %v3233, %v3385
      %v3418 = vsel %vm3354, %v3236, %v3386
      %v3419 = vsel %vm3355, %v3241, %v3387
      %v3420 = vsel %vm3356, %v3244, %v3388
      %v3421 = vsel %vm3357, %v3249, %v3389
      %v3422 = vsel %vm3358, %v3252, %v3390
      %v3423 = vsel %vm3359, %v3257, %v3391
      %v3424 = vsel %vm3360, %v3260, %v3392
      %v3425 = vsel %vm3361, %v3265, %v3393
      %v3426 = vsel %vm3362, %v3268, %v3394
      %v3427 = vsel %vm3363, %v3273, %v3395
      %v3428 = vsel %vm3364, %v3276, %v3396
      %v3429 = vsel %vm3365, %v3281, %v3397
      %v3430 = vsel %vm3366, %v3284, %v3398
      %v3431 = vsel %vm3367, %v3289, %v3399
      %v3432 = vsel %vm3368, %v3292, %v3400
      %v3433 = vsel %vm3369, %v3297, %v3401
      %v3434 = vsel %vm3370, %v3300, %v3402
      %v3435 = vsel %vm3371, %v3305, %v3403
      %v3436 = vsel %vm3372, %v3308, %v3404
      %v3437 = vsel %vm3373, %v3313, %v3405
      %v3438 = vsel %vm3374, %v3316, %v3406
      %v3439 = vsel %vm3375, %v3321, %v3407
      %v3440 = vsel %vm3376, %v3324, %v3408
      %v3441 = vsel %vm3377, %v3329, %v3409
      %v3442 = vsel %vm3378, %v3332, %v3410
      %v3443 = vsel %vm3379, %v3337, %v3411
      %v3444 = vsel %vm3380, %v3340, %v3412
      %v3445 = vsel %vm3381, %v3345, %v3413
      %v3446 = vsel %vm3382, %v3348, %v3414
      %v3447 = vpack.c.bf16 %v3416, %v3415
      %v3448 = vpack.c.bf16 %v3418, %v3417
      %v3449 = vpack.c.bf16 %v3420, %v3419
      %v3450 = vpack.c.bf16 %v3422, %v3421
      %v3451 = vpack.c.bf16 %v3424, %v3423
      %v3452 = vpack.c.bf16 %v3426, %v3425
      %v3453 = vpack.c.bf16 %v3428, %v3427
      %v3454 = vpack.c.bf16 %v3430, %v3429
      %v3455 = vpack.c.bf16 %v3432, %v3431
      %v3456 = vpack.c.bf16 %v3434, %v3433
      %v3457 = vpack.c.bf16 %v3436, %v3435
      %v3458 = vpack.c.bf16 %v3438, %v3437
      %v3459 = vpack.c.bf16 %v3440, %v3439
      %v3460 = vpack.c.bf16 %v3442, %v3441
      %v3461 = vpack.c.bf16 %v3444, %v3443
      %v3462 = vpack.c.bf16 %v3446, %v3445
      %s3463 = scalar_lea.vmem %s1, 448
      %v3464 = vld [vmem:[%s3463] sm:$0xf]
      %v3465 = vld [vmem:[%s3463 + $0x4] sm:$0xf]
      %v3466 = vld [vmem:[%s3463 + $0x8] sm:$0xf]
      %v3467 = vld [vmem:[%s3463 + $0xc] sm:$0xf]
      %v3468 = vld [vmem:[%s3463 + $0x10] sm:$0xf]
      %v3469 = vld [vmem:[%s3463 + $0x14] sm:$0xf]
      %v3470 = vld [vmem:[%s3463 + $0x18] sm:$0xf]
      %v3471 = vld [vmem:[%s3463 + $0x1c] sm:$0xf]
      %v3472 = vld [vmem:[%s3463 + $0x20] sm:$0xf]
      %v3473 = vld [vmem:[%s3463 + $0x24] sm:$0xf]
      %v3474 = vld [vmem:[%s3463 + $0x28] sm:$0xf]
      %v3475 = vld [vmem:[%s3463 + $0x2c] sm:$0xf]
      %v3476 = vld [vmem:[%s3463 + $0x30] sm:$0xf]
      %v3477 = vld [vmem:[%s3463 + $0x34] sm:$0xf]
      %v3478 = vld [vmem:[%s3463 + $0x38] sm:$0xf]
      %v3479 = vld [vmem:[%s3463 + $0x3c] sm:$0xf]
      %v3480 = vld [vmem:[%s2 + $0x5] sm:$0x1]
      %v3481 = vlaneseq
      %v3482 = vshrl.u32 %v3481, 7
      %v3483 = vsub.s32 0, %v3482
      %v3484 = vrot.slane %v3480, %v3483
      %v3501 = vunpack.c.l.b16 %v3464
      %v3502 = vunpack.c.l.b16 %v3465
      %v3503 = vunpack.c.l.b16 %v3466
      %v3504 = vunpack.c.l.b16 %v3467
      %v3505 = vunpack.c.l.b16 %v3468
      %v3506 = vunpack.c.l.b16 %v3469
      %v3507 = vunpack.c.l.b16 %v3470
      %v3508 = vunpack.c.l.b16 %v3471
      %v3509 = vunpack.c.l.b16 %v3472
      %v3510 = vunpack.c.l.b16 %v3473
      %v3511 = vunpack.c.l.b16 %v3474
      %v3512 = vunpack.c.l.b16 %v3475
      %v3513 = vunpack.c.l.b16 %v3476
      %v3514 = vunpack.c.l.b16 %v3477
      %v3515 = vunpack.c.l.b16 %v3478
      %v3516 = vunpack.c.l.b16 %v3479
      %v3517 = vpack.c.b16 %v3502, %v3501
      %v3518 = vpack.c.b16 %v3504, %v3503
      %v3519 = vpack.c.b16 %v3506, %v3505
      %v3520 = vpack.c.b16 %v3508, %v3507
      %v3521 = vpack.c.b16 %v3510, %v3509
      %v3522 = vpack.c.b16 %v3512, %v3511
      %v3523 = vpack.c.b16 %v3514, %v3513
      %v3524 = vpack.c.b16 %v3516, %v3515
      %3533 = vmatprep.subr.bf16.mxu0 0
      %3534 = vmatpush1.bf16.msra.mxu0 %v3524
      %3535 = vmatprep.subr.bf16.mxu0 0
      %3536 = vmatpush1.bf16.msra.mxu0 %v3523
      %3537 = vmatprep.subr.bf16.mxu0 0
      %3538 = vmatpush1.bf16.msra.mxu0 %v3522
      %3539 = vmatprep.subr.bf16.mxu0 0
      %3540 = vmatpush1.bf16.msra.mxu0 %v3521
      %3541 = vmatprep.subr.bf16.mxu0 0
      %3542 = vmatpush1.bf16.msra.mxu0 %v3520
      %3543 = vmatprep.subr.bf16.mxu0 0
      %3544 = vmatpush1.bf16.msra.mxu0 %v3519
      %3545 = vmatprep.subr.bf16.mxu0 0
      %3546 = vmatpush1.bf16.msra.mxu0 %v3518
      %3547 = vmatprep.subr.bf16.mxu0 0
      %3548 = vmatpush1.bf16.msra.mxu0 %v3517
      %3549 = vmatprep.subr.bf16.mxu0 0
      %3550 = vmatpush2.bf16.msra.mxu0 0
      %3551 = vmatprep.subr.bf16.mxu0 0
      %3552 = vmatpush2.bf16.msra.mxu0 0
      %3553 = vmatprep.subr.bf16.mxu0 0
      %3554 = vmatpush2.bf16.msra.mxu0 0
      %3555 = vmatprep.subr.bf16.mxu0 0
      %3556 = vmatpush2.bf16.msra.mxu0 0
      %3557 = vmatprep.subr.bf16.mxu0 0
      %3558 = vmatpush2.bf16.msra.mxu0 0
      %3559 = vmatprep.subr.bf16.mxu0 0
      %3560 = vmatpush2.bf16.msra.mxu0 0
      %3561 = vmatprep.subr.bf16.mxu0 0
      %3562 = vmatpush2.bf16.msra.mxu0 0
      %3563 = vmatprep.subr.bf16.mxu0 0
      %3564 = vmatpush2.bf16.msra.mxu0 0
      %3565 = vmatprep.mubr.bf16.mxu0 0
      %3566 = vmatmul.mubr.bf16.gmra.mxu0 %v3447
      %v3567 = vpop.f32.mrf.mxu0
      %v3568 = vadd.f32 %v3484, %v3567
      %v3569 = vpop.f32.mrf.mxu0
      %v3570 = vpop.f32.mrf.mxu0
      %v3571 = vadd.f32 %v3484, %v3570
      %v3572 = vpop.f32.mrf.mxu0
      %3573 = vmatprep.mubr.bf16.mxu0 0
      %3574 = vmatmul.mubr.bf16.gmra.mxu0 %v3448
      %v3575 = vpop.f32.mrf.mxu0
      %v3576 = vadd.f32 %v3484, %v3575
      %v3577 = vpop.f32.mrf.mxu0
      %v3578 = vpop.f32.mrf.mxu0
      %v3579 = vadd.f32 %v3484, %v3578
      %v3580 = vpop.f32.mrf.mxu0
      %3581 = vmatprep.mubr.bf16.mxu0 0
      %3582 = vmatmul.mubr.bf16.gmra.mxu0 %v3449
      %v3583 = vpop.f32.mrf.mxu0
      %v3584 = vadd.f32 %v3484, %v3583
      %v3585 = vpop.f32.mrf.mxu0
      %v3586 = vpop.f32.mrf.mxu0
      %v3587 = vadd.f32 %v3484, %v3586
      %v3588 = vpop.f32.mrf.mxu0
      %3589 = vmatprep.mubr.bf16.mxu0 0
      %3590 = vmatmul.mubr.bf16.gmra.mxu0 %v3450
      %v3591 = vpop.f32.mrf.mxu0
      %v3592 = vadd.f32 %v3484, %v3591
      %v3593 = vpop.f32.mrf.mxu0
      %v3594 = vpop.f32.mrf.mxu0
      %v3595 = vadd.f32 %v3484, %v3594
      %v3596 = vpop.f32.mrf.mxu0
      %3597 = vmatprep.mubr.bf16.mxu0 0
      %3598 = vmatmul.mubr.bf16.gmra.mxu0 %v3451
      %v3599 = vpop.f32.mrf.mxu0
      %v3600 = vadd.f32 %v3484, %v3599
      %v3601 = vpop.f32.mrf.mxu0
      %v3602 = vpop.f32.mrf.mxu0
      %v3603 = vadd.f32 %v3484, %v3602
      %v3604 = vpop.f32.mrf.mxu0
      %3605 = vmatprep.mubr.bf16.mxu0 0
      %3606 = vmatmul.mubr.bf16.gmra.mxu0 %v3452
      %v3607 = vpop.f32.mrf.mxu0
      %v3608 = vadd.f32 %v3484, %v3607
      %v3609 = vpop.f32.mrf.mxu0
      %v3610 = vpop.f32.mrf.mxu0
      %v3611 = vadd.f32 %v3484, %v3610
      %v3612 = vpop.f32.mrf.mxu0
      %3613 = vmatprep.mubr.bf16.mxu0 0
      %3614 = vmatmul.mubr.bf16.gmra.mxu0 %v3453
      %v3615 = vpop.f32.mrf.mxu0
      %v3616 = vadd.f32 %v3484, %v3615
      %v3617 = vpop.f32.mrf.mxu0
      %v3618 = vpop.f32.mrf.mxu0
      %v3619 = vadd.f32 %v3484, %v3618
      %v3620 = vpop.f32.mrf.mxu0
      %3621 = vmatprep.mubr.bf16.mxu0 0
      %3622 = vmatmul.mubr.bf16.gmra.mxu0 %v3454
      %v3623 = vpop.f32.mrf.mxu0
      %v3624 = vadd.f32 %v3484, %v3623
      %v3625 = vpop.f32.mrf.mxu0
      %v3626 = vpop.f32.mrf.mxu0
      %v3627 = vadd.f32 %v3484, %v3626
      %v3628 = vpop.f32.mrf.mxu0
      %3629 = vmatprep.mubr.bf16.mxu0 0
      %3630 = vmatmul.mubr.bf16.gmra.mxu0 %v3455
      %v3631 = vpop.f32.mrf.mxu0
      %v3632 = vadd.f32 %v3484, %v3631
      %v3633 = vpop.f32.mrf.mxu0
      %v3634 = vpop.f32.mrf.mxu0
      %v3635 = vadd.f32 %v3484, %v3634
      %v3636 = vpop.f32.mrf.mxu0
      %3637 = vmatprep.mubr.bf16.mxu0 0
      %3638 = vmatmul.mubr.bf16.gmra.mxu0 %v3456
      %v3639 = vpop.f32.mrf.mxu0
      %v3640 = vadd.f32 %v3484, %v3639
      %v3641 = vpop.f32.mrf.mxu0
      %v3642 = vpop.f32.mrf.mxu0
      %v3643 = vadd.f32 %v3484, %v3642
      %v3644 = vpop.f32.mrf.mxu0
      %3645 = vmatprep.mubr.bf16.mxu0 0
      %3646 = vmatmul.mubr.bf16.gmra.mxu0 %v3457
      %v3647 = vpop.f32.mrf.mxu0
      %v3648 = vadd.f32 %v3484, %v3647
      %v3649 = vpop.f32.mrf.mxu0
      %v3650 = vpop.f32.mrf.mxu0
      %v3651 = vadd.f32 %v3484, %v3650
      %v3652 = vpop.f32.mrf.mxu0
      %3653 = vmatprep.mubr.bf16.mxu0 0
      %3654 = vmatmul.mubr.bf16.gmra.mxu0 %v3458
      %v3655 = vpop.f32.mrf.mxu0
      %v3656 = vadd.f32 %v3484, %v3655
      %v3657 = vpop.f32.mrf.mxu0
      %v3658 = vpop.f32.mrf.mxu0
      %v3659 = vadd.f32 %v3484, %v3658
      %v3660 = vpop.f32.mrf.mxu0
      %3661 = vmatprep.mubr.bf16.mxu0 0
      %3662 = vmatmul.mubr.bf16.gmra.mxu0 %v3459
      %v3663 = vpop.f32.mrf.mxu0
      %v3664 = vadd.f32 %v3484, %v3663
      %v3665 = vpop.f32.mrf.mxu0
      %v3666 = vpop.f32.mrf.mxu0
      %v3667 = vadd.f32 %v3484, %v3666
      %v3668 = vpop.f32.mrf.mxu0
      %3669 = vmatprep.mubr.bf16.mxu0 0
      %3670 = vmatmul.mubr.bf16.gmra.mxu0 %v3460
      %v3671 = vpop.f32.mrf.mxu0
      %v3672 = vadd.f32 %v3484, %v3671
      %v3673 = vpop.f32.mrf.mxu0
      %v3674 = vpop.f32.mrf.mxu0
      %v3675 = vadd.f32 %v3484, %v3674
      %v3676 = vpop.f32.mrf.mxu0
      %3677 = vmatprep.mubr.bf16.mxu0 0
      %3678 = vmatmul.mubr.bf16.gmra.mxu0 %v3461
      %v3679 = vpop.f32.mrf.mxu0
      %v3680 = vadd.f32 %v3484, %v3679
      %v3681 = vpop.f32.mrf.mxu0
      %v3682 = vpop.f32.mrf.mxu0
      %v3683 = vadd.f32 %v3484, %v3682
      %v3684 = vpop.f32.mrf.mxu0
      %3685 = vmatprep.mubr.bf16.mxu0 0
      %3686 = vmatmul.mubr.bf16.gmra.mxu0 %v3462
      %v3687 = vpop.f32.mrf.mxu0
      %v3688 = vadd.f32 %v3484, %v3687
      %v3689 = vpop.f32.mrf.mxu0
      %v3690 = vpop.f32.mrf.mxu0
      %v3691 = vadd.f32 %v3484, %v3690
      %v3692 = vpop.f32.mrf.mxu0
      %3693 = vdwg.mxu0
      %vm3694 = vcmp.gt.f32.partialorder %v3568, 0.0
      %vm3695 = vcmp.gt.f32.partialorder %v3571, 0.0
      %vm3696 = vcmp.gt.f32.partialorder %v3576, 0.0
      %vm3697 = vcmp.gt.f32.partialorder %v3579, 0.0
      %vm3698 = vcmp.gt.f32.partialorder %v3584, 0.0
      %vm3699 = vcmp.gt.f32.partialorder %v3587, 0.0
      %vm3700 = vcmp.gt.f32.partialorder %v3592, 0.0
      %vm3701 = vcmp.gt.f32.partialorder %v3595, 0.0
      %vm3702 = vcmp.gt.f32.partialorder %v3600, 0.0
      %vm3703 = vcmp.gt.f32.partialorder %v3603, 0.0
      %vm3704 = vcmp.gt.f32.partialorder %v3608, 0.0
      %vm3705 = vcmp.gt.f32.partialorder %v3611, 0.0
      %vm3706 = vcmp.gt.f32.partialorder %v3616, 0.0
      %vm3707 = vcmp.gt.f32.partialorder %v3619, 0.0
      %vm3708 = vcmp.gt.f32.partialorder %v3624, 0.0
      %vm3709 = vcmp.gt.f32.partialorder %v3627, 0.0
      %vm3710 = vcmp.gt.f32.partialorder %v3632, 0.0
      %vm3711 = vcmp.gt.f32.partialorder %v3635, 0.0
      %vm3712 = vcmp.gt.f32.partialorder %v3640, 0.0
      %vm3713 = vcmp.gt.f32.partialorder %v3643, 0.0
      %vm3714 = vcmp.gt.f32.partialorder %v3648, 0.0
      %vm3715 = vcmp.gt.f32.partialorder %v3651, 0.0
      %vm3716 = vcmp.gt.f32.partialorder %v3656, 0.0
      %vm3717 = vcmp.gt.f32.partialorder %v3659, 0.0
      %vm3718 = vcmp.gt.f32.partialorder %v3664, 0.0
      %vm3719 = vcmp.gt.f32.partialorder %v3667, 0.0
      %vm3720 = vcmp.gt.f32.partialorder %v3672, 0.0
      %vm3721 = vcmp.gt.f32.partialorder %v3675, 0.0
      %vm3722 = vcmp.gt.f32.partialorder %v3680, 0.0
      %vm3723 = vcmp.gt.f32.partialorder %v3683, 0.0
      %vm3724 = vcmp.gt.f32.partialorder %v3688, 0.0
      %vm3725 = vcmp.gt.f32.partialorder %v3691, 0.0
      %v3726 = vmul.f32 %v3568, 0.2
      %v3727 = vmul.f32 %v3571, 0.2
      %v3728 = vmul.f32 %v3576, 0.2
      %v3729 = vmul.f32 %v3579, 0.2
      %v3730 = vmul.f32 %v3584, 0.2
      %v3731 = vmul.f32 %v3587, 0.2
      %v3732 = vmul.f32 %v3592, 0.2
      %v3733 = vmul.f32 %v3595, 0.2
      %v3734 = vmul.f32 %v3600, 0.2
      %v3735 = vmul.f32 %v3603, 0.2
      %v3736 = vmul.f32 %v3608, 0.2
      %v3737 = vmul.f32 %v3611, 0.2
      %v3738 = vmul.f32 %v3616, 0.2
      %v3739 = vmul.f32 %v3619, 0.2
      %v3740 = vmul.f32 %v3624, 0.2
      %v3741 = vmul.f32 %v3627, 0.2
      %v3742 = vmul.f32 %v3632, 0.2
      %v3743 = vmul.f32 %v3635, 0.2
      %v3744 = vmul.f32 %v3640, 0.2
      %v3745 = vmul.f32 %v3643, 0.2
      %v3746 = vmul.f32 %v3648, 0.2
      %v3747 = vmul.f32 %v3651, 0.2
      %v3748 = vmul.f32 %v3656, 0.2
      %v3749 = vmul.f32 %v3659, 0.2
      %v3750 = vmul.f32 %v3664, 0.2
      %v3751 = vmul.f32 %v3667, 0.2
      %v3752 = vmul.f32 %v3672, 0.2
      %v3753 = vmul.f32 %v3675, 0.2
      %v3754 = vmul.f32 %v3680, 0.2
      %v3755 = vmul.f32 %v3683, 0.2
      %v3756 = vmul.f32 %v3688, 0.2
      %v3757 = vmul.f32 %v3691, 0.2
      %v3758 = vsel %vm3694, %v3568, %v3726
      %v3759 = vsel %vm3695, %v3571, %v3727
      %v3760 = vsel %vm3696, %v3576, %v3728
      %v3761 = vsel %vm3697, %v3579, %v3729
      %v3762 = vsel %vm3698, %v3584, %v3730
      %v3763 = vsel %vm3699, %v3587, %v3731
      %v3764 = vsel %vm3700, %v3592, %v3732
      %v3765 = vsel %vm3701, %v3595, %v3733
      %v3766 = vsel %vm3702, %v3600, %v3734
      %v3767 = vsel %vm3703, %v3603, %v3735
      %v3768 = vsel %vm3704, %v3608, %v3736
      %v3769 = vsel %vm3705, %v3611, %v3737
      %v3770 = vsel %vm3706, %v3616, %v3738
      %v3771 = vsel %vm3707, %v3619, %v3739
      %v3772 = vsel %vm3708, %v3624, %v3740
      %v3773 = vsel %vm3709, %v3627, %v3741
      %v3774 = vsel %vm3710, %v3632, %v3742
      %v3775 = vsel %vm3711, %v3635, %v3743
      %v3776 = vsel %vm3712, %v3640, %v3744
      %v3777 = vsel %vm3713, %v3643, %v3745
      %v3778 = vsel %vm3714, %v3648, %v3746
      %v3779 = vsel %vm3715, %v3651, %v3747
      %v3780 = vsel %vm3716, %v3656, %v3748
      %v3781 = vsel %vm3717, %v3659, %v3749
      %v3782 = vsel %vm3718, %v3664, %v3750
      %v3783 = vsel %vm3719, %v3667, %v3751
      %v3784 = vsel %vm3720, %v3672, %v3752
      %v3785 = vsel %vm3721, %v3675, %v3753
      %v3786 = vsel %vm3722, %v3680, %v3754
      %v3787 = vsel %vm3723, %v3683, %v3755
      %v3788 = vsel %vm3724, %v3688, %v3756
      %v3789 = vsel %vm3725, %v3691, %v3757
      %v3790 = vpack.c.bf16 %v3759, %v3758
      %v3791 = vpack.c.bf16 %v3761, %v3760
      %v3792 = vpack.c.bf16 %v3763, %v3762
      %v3793 = vpack.c.bf16 %v3765, %v3764
      %v3794 = vpack.c.bf16 %v3767, %v3766
      %v3795 = vpack.c.bf16 %v3769, %v3768
      %v3796 = vpack.c.bf16 %v3771, %v3770
      %v3797 = vpack.c.bf16 %v3773, %v3772
      %v3798 = vpack.c.bf16 %v3775, %v3774
      %v3799 = vpack.c.bf16 %v3777, %v3776
      %v3800 = vpack.c.bf16 %v3779, %v3778
      %v3801 = vpack.c.bf16 %v3781, %v3780
      %v3802 = vpack.c.bf16 %v3783, %v3782
      %v3803 = vpack.c.bf16 %v3785, %v3784
      %v3804 = vpack.c.bf16 %v3787, %v3786
      %v3805 = vpack.c.bf16 %v3789, %v3788
      %s3806 = scalar_lea.vmem %s1, 512
      %v3807 = vld [vmem:[%s3806] sm:$0xf]
      %v3808 = vld [vmem:[%s3806 + $0x4] sm:$0xf]
      %v3809 = vld [vmem:[%s3806 + $0x8] sm:$0xf]
      %v3810 = vld [vmem:[%s3806 + $0xc] sm:$0xf]
      %v3811 = vld [vmem:[%s3806 + $0x10] sm:$0xf]
      %v3812 = vld [vmem:[%s3806 + $0x14] sm:$0xf]
      %v3813 = vld [vmem:[%s3806 + $0x18] sm:$0xf]
      %v3814 = vld [vmem:[%s3806 + $0x1c] sm:$0xf]
      %v3815 = vld [vmem:[%s3806 + $0x20] sm:$0xf]
      %v3816 = vld [vmem:[%s3806 + $0x24] sm:$0xf]
      %v3817 = vld [vmem:[%s3806 + $0x28] sm:$0xf]
      %v3818 = vld [vmem:[%s3806 + $0x2c] sm:$0xf]
      %v3819 = vld [vmem:[%s3806 + $0x30] sm:$0xf]
      %v3820 = vld [vmem:[%s3806 + $0x34] sm:$0xf]
      %v3821 = vld [vmem:[%s3806 + $0x38] sm:$0xf]
      %v3822 = vld [vmem:[%s3806 + $0x3c] sm:$0xf]
      %v3823 = vld [vmem:[%s2 + $0x6] sm:$0x1]
      %v3824 = vlaneseq
      %v3825 = vshrl.u32 %v3824, 7
      %v3826 = vsub.s32 0, %v3825
      %v3827 = vrot.slane %v3823, %v3826
      %v3844 = vunpack.c.l.b16 %v3807
      %v3845 = vunpack.c.l.b16 %v3808
      %v3846 = vunpack.c.l.b16 %v3809
      %v3847 = vunpack.c.l.b16 %v3810
      %v3848 = vunpack.c.l.b16 %v3811
      %v3849 = vunpack.c.l.b16 %v3812
      %v3850 = vunpack.c.l.b16 %v3813
      %v3851 = vunpack.c.l.b16 %v3814
      %v3852 = vunpack.c.l.b16 %v3815
      %v3853 = vunpack.c.l.b16 %v3816
      %v3854 = vunpack.c.l.b16 %v3817
      %v3855 = vunpack.c.l.b16 %v3818
      %v3856 = vunpack.c.l.b16 %v3819
      %v3857 = vunpack.c.l.b16 %v3820
      %v3858 = vunpack.c.l.b16 %v3821
      %v3859 = vunpack.c.l.b16 %v3822
      %v3860 = vpack.c.b16 %v3845, %v3844
      %v3861 = vpack.c.b16 %v3847, %v3846
      %v3862 = vpack.c.b16 %v3849, %v3848
      %v3863 = vpack.c.b16 %v3851, %v3850
      %v3864 = vpack.c.b16 %v3853, %v3852
      %v3865 = vpack.c.b16 %v3855, %v3854
      %v3866 = vpack.c.b16 %v3857, %v3856
      %v3867 = vpack.c.b16 %v3859, %v3858
      %3876 = vmatprep.subr.bf16.mxu0 0
      %3877 = vmatpush1.bf16.msra.mxu0 %v3867
      %3878 = vmatprep.subr.bf16.mxu0 0
      %3879 = vmatpush1.bf16.msra.mxu0 %v3866
      %3880 = vmatprep.subr.bf16.mxu0 0
      %3881 = vmatpush1.bf16.msra.mxu0 %v3865
      %3882 = vmatprep.subr.bf16.mxu0 0
      %3883 = vmatpush1.bf16.msra.mxu0 %v3864
      %3884 = vmatprep.subr.bf16.mxu0 0
      %3885 = vmatpush1.bf16.msra.mxu0 %v3863
      %3886 = vmatprep.subr.bf16.mxu0 0
      %3887 = vmatpush1.bf16.msra.mxu0 %v3862
      %3888 = vmatprep.subr.bf16.mxu0 0
      %3889 = vmatpush1.bf16.msra.mxu0 %v3861
      %3890 = vmatprep.subr.bf16.mxu0 0
      %3891 = vmatpush1.bf16.msra.mxu0 %v3860
      %3892 = vmatprep.subr.bf16.mxu0 0
      %3893 = vmatpush2.bf16.msra.mxu0 0
      %3894 = vmatprep.subr.bf16.mxu0 0
      %3895 = vmatpush2.bf16.msra.mxu0 0
      %3896 = vmatprep.subr.bf16.mxu0 0
      %3897 = vmatpush2.bf16.msra.mxu0 0
      %3898 = vmatprep.subr.bf16.mxu0 0
      %3899 = vmatpush2.bf16.msra.mxu0 0
      %3900 = vmatprep.subr.bf16.mxu0 0
      %3901 = vmatpush2.bf16.msra.mxu0 0
      %3902 = vmatprep.subr.bf16.mxu0 0
      %3903 = vmatpush2.bf16.msra.mxu0 0
      %3904 = vmatprep.subr.bf16.mxu0 0
      %3905 = vmatpush2.bf16.msra.mxu0 0
      %3906 = vmatprep.subr.bf16.mxu0 0
      %3907 = vmatpush2.bf16.msra.mxu0 0
      %3908 = vmatprep.mubr.bf16.mxu0 0
      %3909 = vmatmul.mubr.bf16.gmra.mxu0 %v3790
      %v3910 = vpop.f32.mrf.mxu0
      %v3911 = vadd.f32 %v3827, %v3910
      %v3912 = vpop.f32.mrf.mxu0
      %v3913 = vpop.f32.mrf.mxu0
      %v3914 = vadd.f32 %v3827, %v3913
      %v3915 = vpop.f32.mrf.mxu0
      %3916 = vmatprep.mubr.bf16.mxu0 0
      %3917 = vmatmul.mubr.bf16.gmra.mxu0 %v3791
      %v3918 = vpop.f32.mrf.mxu0
      %v3919 = vadd.f32 %v3827, %v3918
      %v3920 = vpop.f32.mrf.mxu0
      %v3921 = vpop.f32.mrf.mxu0
      %v3922 = vadd.f32 %v3827, %v3921
      %v3923 = vpop.f32.mrf.mxu0
      %3924 = vmatprep.mubr.bf16.mxu0 0
      %3925 = vmatmul.mubr.bf16.gmra.mxu0 %v3792
      %v3926 = vpop.f32.mrf.mxu0
      %v3927 = vadd.f32 %v3827, %v3926
      %v3928 = vpop.f32.mrf.mxu0
      %v3929 = vpop.f32.mrf.mxu0
      %v3930 = vadd.f32 %v3827, %v3929
      %v3931 = vpop.f32.mrf.mxu0
      %3932 = vmatprep.mubr.bf16.mxu0 0
      %3933 = vmatmul.mubr.bf16.gmra.mxu0 %v3793
      %v3934 = vpop.f32.mrf.mxu0
      %v3935 = vadd.f32 %v3827, %v3934
      %v3936 = vpop.f32.mrf.mxu0
      %v3937 = vpop.f32.mrf.mxu0
      %v3938 = vadd.f32 %v3827, %v3937
      %v3939 = vpop.f32.mrf.mxu0
      %3940 = vmatprep.mubr.bf16.mxu0 0
      %3941 = vmatmul.mubr.bf16.gmra.mxu0 %v3794
      %v3942 = vpop.f32.mrf.mxu0
      %v3943 = vadd.f32 %v3827, %v3942
      %v3944 = vpop.f32.mrf.mxu0
      %v3945 = vpop.f32.mrf.mxu0
      %v3946 = vadd.f32 %v3827, %v3945
      %v3947 = vpop.f32.mrf.mxu0
      %3948 = vmatprep.mubr.bf16.mxu0 0
      %3949 = vmatmul.mubr.bf16.gmra.mxu0 %v3795
      %v3950 = vpop.f32.mrf.mxu0
      %v3951 = vadd.f32 %v3827, %v3950
      %v3952 = vpop.f32.mrf.mxu0
      %v3953 = vpop.f32.mrf.mxu0
      %v3954 = vadd.f32 %v3827, %v3953
      %v3955 = vpop.f32.mrf.mxu0
      %3956 = vmatprep.mubr.bf16.mxu0 0
      %3957 = vmatmul.mubr.bf16.gmra.mxu0 %v3796
      %v3958 = vpop.f32.mrf.mxu0
      %v3959 = vadd.f32 %v3827, %v3958
      %v3960 = vpop.f32.mrf.mxu0
      %v3961 = vpop.f32.mrf.mxu0
      %v3962 = vadd.f32 %v3827, %v3961
      %v3963 = vpop.f32.mrf.mxu0
      %3964 = vmatprep.mubr.bf16.mxu0 0
      %3965 = vmatmul.mubr.bf16.gmra.mxu0 %v3797
      %v3966 = vpop.f32.mrf.mxu0
      %v3967 = vadd.f32 %v3827, %v3966
      %v3968 = vpop.f32.mrf.mxu0
      %v3969 = vpop.f32.mrf.mxu0
      %v3970 = vadd.f32 %v3827, %v3969
      %v3971 = vpop.f32.mrf.mxu0
      %3972 = vmatprep.mubr.bf16.mxu0 0
      %3973 = vmatmul.mubr.bf16.gmra.mxu0 %v3798
      %v3974 = vpop.f32.mrf.mxu0
      %v3975 = vadd.f32 %v3827, %v3974
      %v3976 = vpop.f32.mrf.mxu0
      %v3977 = vpop.f32.mrf.mxu0
      %v3978 = vadd.f32 %v3827, %v3977
      %v3979 = vpop.f32.mrf.mxu0
      %3980 = vmatprep.mubr.bf16.mxu0 0
      %3981 = vmatmul.mubr.bf16.gmra.mxu0 %v3799
      %v3982 = vpop.f32.mrf.mxu0
      %v3983 = vadd.f32 %v3827, %v3982
      %v3984 = vpop.f32.mrf.mxu0
      %v3985 = vpop.f32.mrf.mxu0
      %v3986 = vadd.f32 %v3827, %v3985
      %v3987 = vpop.f32.mrf.mxu0
      %3988 = vmatprep.mubr.bf16.mxu0 0
      %3989 = vmatmul.mubr.bf16.gmra.mxu0 %v3800
      %v3990 = vpop.f32.mrf.mxu0
      %v3991 = vadd.f32 %v3827, %v3990
      %v3992 = vpop.f32.mrf.mxu0
      %v3993 = vpop.f32.mrf.mxu0
      %v3994 = vadd.f32 %v3827, %v3993
      %v3995 = vpop.f32.mrf.mxu0
      %3996 = vmatprep.mubr.bf16.mxu0 0
      %3997 = vmatmul.mubr.bf16.gmra.mxu0 %v3801
      %v3998 = vpop.f32.mrf.mxu0
      %v3999 = vadd.f32 %v3827, %v3998
      %v4000 = vpop.f32.mrf.mxu0
      %v4001 = vpop.f32.mrf.mxu0
      %v4002 = vadd.f32 %v3827, %v4001
      %v4003 = vpop.f32.mrf.mxu0
      %4004 = vmatprep.mubr.bf16.mxu0 0
      %4005 = vmatmul.mubr.bf16.gmra.mxu0 %v3802
      %v4006 = vpop.f32.mrf.mxu0
      %v4007 = vadd.f32 %v3827, %v4006
      %v4008 = vpop.f32.mrf.mxu0
      %v4009 = vpop.f32.mrf.mxu0
      %v4010 = vadd.f32 %v3827, %v4009
      %v4011 = vpop.f32.mrf.mxu0
      %4012 = vmatprep.mubr.bf16.mxu0 0
      %4013 = vmatmul.mubr.bf16.gmra.mxu0 %v3803
      %v4014 = vpop.f32.mrf.mxu0
      %v4015 = vadd.f32 %v3827, %v4014
      %v4016 = vpop.f32.mrf.mxu0
      %v4017 = vpop.f32.mrf.mxu0
      %v4018 = vadd.f32 %v3827, %v4017
      %v4019 = vpop.f32.mrf.mxu0
      %4020 = vmatprep.mubr.bf16.mxu0 0
      %4021 = vmatmul.mubr.bf16.gmra.mxu0 %v3804
      %v4022 = vpop.f32.mrf.mxu0
      %v4023 = vadd.f32 %v3827, %v4022
      %v4024 = vpop.f32.mrf.mxu0
      %v4025 = vpop.f32.mrf.mxu0
      %v4026 = vadd.f32 %v3827, %v4025
      %v4027 = vpop.f32.mrf.mxu0
      %4028 = vmatprep.mubr.bf16.mxu0 0
      %4029 = vmatmul.mubr.bf16.gmra.mxu0 %v3805
      %v4030 = vpop.f32.mrf.mxu0
      %v4031 = vadd.f32 %v3827, %v4030
      %v4032 = vpop.f32.mrf.mxu0
      %v4033 = vpop.f32.mrf.mxu0
      %v4034 = vadd.f32 %v3827, %v4033
      %v4035 = vpop.f32.mrf.mxu0
      %4036 = vdwg.mxu0
      %vm4037 = vcmp.gt.f32.partialorder %v3911, 0.0
      %vm4038 = vcmp.gt.f32.partialorder %v3914, 0.0
      %vm4039 = vcmp.gt.f32.partialorder %v3919, 0.0
      %vm4040 = vcmp.gt.f32.partialorder %v3922, 0.0
      %vm4041 = vcmp.gt.f32.partialorder %v3927, 0.0
      %vm4042 = vcmp.gt.f32.partialorder %v3930, 0.0
      %vm4043 = vcmp.gt.f32.partialorder %v3935, 0.0
      %vm4044 = vcmp.gt.f32.partialorder %v3938, 0.0
      %vm4045 = vcmp.gt.f32.partialorder %v3943, 0.0
      %vm4046 = vcmp.gt.f32.partialorder %v3946, 0.0
      %vm4047 = vcmp.gt.f32.partialorder %v3951, 0.0
      %vm4048 = vcmp.gt.f32.partialorder %v3954, 0.0
      %vm4049 = vcmp.gt.f32.partialorder %v3959, 0.0
      %vm4050 = vcmp.gt.f32.partialorder %v3962, 0.0
      %vm4051 = vcmp.gt.f32.partialorder %v3967, 0.0
      %vm4052 = vcmp.gt.f32.partialorder %v3970, 0.0
      %vm4053 = vcmp.gt.f32.partialorder %v3975, 0.0
      %vm4054 = vcmp.gt.f32.partialorder %v3978, 0.0
      %vm4055 = vcmp.gt.f32.partialorder %v3983, 0.0
      %vm4056 = vcmp.gt.f32.partialorder %v3986, 0.0
      %vm4057 = vcmp.gt.f32.partialorder %v3991, 0.0
      %vm4058 = vcmp.gt.f32.partialorder %v3994, 0.0
      %vm4059 = vcmp.gt.f32.partialorder %v3999, 0.0
      %vm4060 = vcmp.gt.f32.partialorder %v4002, 0.0
      %vm4061 = vcmp.gt.f32.partialorder %v4007, 0.0
      %vm4062 = vcmp.gt.f32.partialorder %v4010, 0.0
      %vm4063 = vcmp.gt.f32.partialorder %v4015, 0.0
      %vm4064 = vcmp.gt.f32.partialorder %v4018, 0.0
      %vm4065 = vcmp.gt.f32.partialorder %v4023, 0.0
      %vm4066 = vcmp.gt.f32.partialorder %v4026, 0.0
      %vm4067 = vcmp.gt.f32.partialorder %v4031, 0.0
      %vm4068 = vcmp.gt.f32.partialorder %v4034, 0.0
      %v4069 = vmul.f32 %v3911, 0.2
      %v4070 = vmul.f32 %v3914, 0.2
      %v4071 = vmul.f32 %v3919, 0.2
      %v4072 = vmul.f32 %v3922, 0.2
      %v4073 = vmul.f32 %v3927, 0.2
      %v4074 = vmul.f32 %v3930, 0.2
      %v4075 = vmul.f32 %v3935, 0.2
      %v4076 = vmul.f32 %v3938, 0.2
      %v4077 = vmul.f32 %v3943, 0.2
      %v4078 = vmul.f32 %v3946, 0.2
      %v4079 = vmul.f32 %v3951, 0.2
      %v4080 = vmul.f32 %v3954, 0.2
      %v4081 = vmul.f32 %v3959, 0.2
      %v4082 = vmul.f32 %v3962, 0.2
      %v4083 = vmul.f32 %v3967, 0.2
      %v4084 = vmul.f32 %v3970, 0.2
      %v4085 = vmul.f32 %v3975, 0.2
      %v4086 = vmul.f32 %v3978, 0.2
      %v4087 = vmul.f32 %v3983, 0.2
      %v4088 = vmul.f32 %v3986, 0.2
      %v4089 = vmul.f32 %v3991, 0.2
      %v4090 = vmul.f32 %v3994, 0.2
      %v4091 = vmul.f32 %v3999, 0.2
      %v4092 = vmul.f32 %v4002, 0.2
      %v4093 = vmul.f32 %v4007, 0.2
      %v4094 = vmul.f32 %v4010, 0.2
      %v4095 = vmul.f32 %v4015, 0.2
      %v4096 = vmul.f32 %v4018, 0.2
      %v4097 = vmul.f32 %v4023, 0.2
      %v4098 = vmul.f32 %v4026, 0.2
      %v4099 = vmul.f32 %v4031, 0.2
      %v4100 = vmul.f32 %v4034, 0.2
      %v4101 = vsel %vm4037, %v3911, %v4069
      %v4102 = vsel %vm4038, %v3914, %v4070
      %v4103 = vsel %vm4039, %v3919, %v4071
      %v4104 = vsel %vm4040, %v3922, %v4072
      %v4105 = vsel %vm4041, %v3927, %v4073
      %v4106 = vsel %vm4042, %v3930, %v4074
      %v4107 = vsel %vm4043, %v3935, %v4075
      %v4108 = vsel %vm4044, %v3938, %v4076
      %v4109 = vsel %vm4045, %v3943, %v4077
      %v4110 = vsel %vm4046, %v3946, %v4078
      %v4111 = vsel %vm4047, %v3951, %v4079
      %v4112 = vsel %vm4048, %v3954, %v4080
      %v4113 = vsel %vm4049, %v3959, %v4081
      %v4114 = vsel %vm4050, %v3962, %v4082
      %v4115 = vsel %vm4051, %v3967, %v4083
      %v4116 = vsel %vm4052, %v3970, %v4084
      %v4117 = vsel %vm4053, %v3975, %v4085
      %v4118 = vsel %vm4054, %v3978, %v4086
      %v4119 = vsel %vm4055, %v3983, %v4087
      %v4120 = vsel %vm4056, %v3986, %v4088
      %v4121 = vsel %vm4057, %v3991, %v4089
      %v4122 = vsel %vm4058, %v3994, %v4090
      %v4123 = vsel %vm4059, %v3999, %v4091
      %v4124 = vsel %vm4060, %v4002, %v4092
      %v4125 = vsel %vm4061, %v4007, %v4093
      %v4126 = vsel %vm4062, %v4010, %v4094
      %v4127 = vsel %vm4063, %v4015, %v4095
      %v4128 = vsel %vm4064, %v4018, %v4096
      %v4129 = vsel %vm4065, %v4023, %v4097
      %v4130 = vsel %vm4066, %v4026, %v4098
      %v4131 = vsel %vm4067, %v4031, %v4099
      %v4132 = vsel %vm4068, %v4034, %v4100
      %v4133 = vpack.c.bf16 %v4102, %v4101
      %v4134 = vpack.c.bf16 %v4104, %v4103
      %v4135 = vpack.c.bf16 %v4106, %v4105
      %v4136 = vpack.c.bf16 %v4108, %v4107
      %v4137 = vpack.c.bf16 %v4110, %v4109
      %v4138 = vpack.c.bf16 %v4112, %v4111
      %v4139 = vpack.c.bf16 %v4114, %v4113
      %v4140 = vpack.c.bf16 %v4116, %v4115
      %v4141 = vpack.c.bf16 %v4118, %v4117
      %v4142 = vpack.c.bf16 %v4120, %v4119
      %v4143 = vpack.c.bf16 %v4122, %v4121
      %v4144 = vpack.c.bf16 %v4124, %v4123
      %v4145 = vpack.c.bf16 %v4126, %v4125
      %v4146 = vpack.c.bf16 %v4128, %v4127
      %v4147 = vpack.c.bf16 %v4130, %v4129
      %v4148 = vpack.c.bf16 %v4132, %v4131
      %s4149 = scalar_lea.vmem %s1, 576
      %v4150 = vld [vmem:[%s4149] sm:$0xf]
      %v4151 = vld [vmem:[%s4149 + $0x4] sm:$0xf]
      %v4152 = vld [vmem:[%s4149 + $0x8] sm:$0xf]
      %v4153 = vld [vmem:[%s4149 + $0xc] sm:$0xf]
      %v4154 = vld [vmem:[%s4149 + $0x10] sm:$0xf]
      %v4155 = vld [vmem:[%s4149 + $0x14] sm:$0xf]
      %v4156 = vld [vmem:[%s4149 + $0x18] sm:$0xf]
      %v4157 = vld [vmem:[%s4149 + $0x1c] sm:$0xf]
      %v4158 = vld [vmem:[%s4149 + $0x20] sm:$0xf]
      %v4159 = vld [vmem:[%s4149 + $0x24] sm:$0xf]
      %v4160 = vld [vmem:[%s4149 + $0x28] sm:$0xf]
      %v4161 = vld [vmem:[%s4149 + $0x2c] sm:$0xf]
      %v4162 = vld [vmem:[%s4149 + $0x30] sm:$0xf]
      %v4163 = vld [vmem:[%s4149 + $0x34] sm:$0xf]
      %v4164 = vld [vmem:[%s4149 + $0x38] sm:$0xf]
      %v4165 = vld [vmem:[%s4149 + $0x3c] sm:$0xf]
      %v4166 = vld [vmem:[%s2 + $0x7] sm:$0x1]
      %v4167 = vlaneseq
      %v4168 = vshrl.u32 %v4167, 7
      %v4169 = vsub.s32 0, %v4168
      %v4170 = vrot.slane %v4166, %v4169
      %v4187 = vunpack.c.l.b16 %v4150
      %v4188 = vunpack.c.l.b16 %v4151
      %v4189 = vunpack.c.l.b16 %v4152
      %v4190 = vunpack.c.l.b16 %v4153
      %v4191 = vunpack.c.l.b16 %v4154
      %v4192 = vunpack.c.l.b16 %v4155
      %v4193 = vunpack.c.l.b16 %v4156
      %v4194 = vunpack.c.l.b16 %v4157
      %v4195 = vunpack.c.l.b16 %v4158
      %v4196 = vunpack.c.l.b16 %v4159
      %v4197 = vunpack.c.l.b16 %v4160
      %v4198 = vunpack.c.l.b16 %v4161
      %v4199 = vunpack.c.l.b16 %v4162
      %v4200 = vunpack.c.l.b16 %v4163
      %v4201 = vunpack.c.l.b16 %v4164
      %v4202 = vunpack.c.l.b16 %v4165
      %v4203 = vpack.c.b16 %v4188, %v4187
      %v4204 = vpack.c.b16 %v4190, %v4189
      %v4205 = vpack.c.b16 %v4192, %v4191
      %v4206 = vpack.c.b16 %v4194, %v4193
      %v4207 = vpack.c.b16 %v4196, %v4195
      %v4208 = vpack.c.b16 %v4198, %v4197
      %v4209 = vpack.c.b16 %v4200, %v4199
      %v4210 = vpack.c.b16 %v4202, %v4201
      %4219 = vmatprep.subr.bf16.mxu0 0
      %4220 = vmatpush1.bf16.msra.mxu0 %v4210
      %4221 = vmatprep.subr.bf16.mxu0 0
      %4222 = vmatpush1.bf16.msra.mxu0 %v4209
      %4223 = vmatprep.subr.bf16.mxu0 0
      %4224 = vmatpush1.bf16.msra.mxu0 %v4208
      %4225 = vmatprep.subr.bf16.mxu0 0
      %4226 = vmatpush1.bf16.msra.mxu0 %v4207
      %4227 = vmatprep.subr.bf16.mxu0 0
      %4228 = vmatpush1.bf16.msra.mxu0 %v4206
      %4229 = vmatprep.subr.bf16.mxu0 0
      %4230 = vmatpush1.bf16.msra.mxu0 %v4205
      %4231 = vmatprep.subr.bf16.mxu0 0
      %4232 = vmatpush1.bf16.msra.mxu0 %v4204
      %4233 = vmatprep.subr.bf16.mxu0 0
      %4234 = vmatpush1.bf16.msra.mxu0 %v4203
      %4235 = vmatprep.subr.bf16.mxu0 0
      %4236 = vmatpush2.bf16.msra.mxu0 0
      %4237 = vmatprep.subr.bf16.mxu0 0
      %4238 = vmatpush2.bf16.msra.mxu0 0
      %4239 = vmatprep.subr.bf16.mxu0 0
      %4240 = vmatpush2.bf16.msra.mxu0 0
      %4241 = vmatprep.subr.bf16.mxu0 0
      %4242 = vmatpush2.bf16.msra.mxu0 0
      %4243 = vmatprep.subr.bf16.mxu0 0
      %4244 = vmatpush2.bf16.msra.mxu0 0
      %4245 = vmatprep.subr.bf16.mxu0 0
      %4246 = vmatpush2.bf16.msra.mxu0 0
      %4247 = vmatprep.subr.bf16.mxu0 0
      %4248 = vmatpush2.bf16.msra.mxu0 0
      %4249 = vmatprep.subr.bf16.mxu0 0
      %4250 = vmatpush2.bf16.msra.mxu0 0
      %4251 = vmatprep.mubr.bf16.mxu0 0
      %4252 = vmatmul.mubr.bf16.gmra.mxu0 %v4133
      %v4253 = vpop.f32.mrf.mxu0
      %v4254 = vadd.f32 %v4170, %v4253
      %v4255 = vpop.f32.mrf.mxu0
      %v4256 = vpop.f32.mrf.mxu0
      %v4257 = vadd.f32 %v4170, %v4256
      %v4258 = vpop.f32.mrf.mxu0
      %4259 = vmatprep.mubr.bf16.mxu0 0
      %4260 = vmatmul.mubr.bf16.gmra.mxu0 %v4134
      %v4261 = vpop.f32.mrf.mxu0
      %v4262 = vadd.f32 %v4170, %v4261
      %v4263 = vpop.f32.mrf.mxu0
      %v4264 = vpop.f32.mrf.mxu0
      %v4265 = vadd.f32 %v4170, %v4264
      %v4266 = vpop.f32.mrf.mxu0
      %4267 = vmatprep.mubr.bf16.mxu0 0
      %4268 = vmatmul.mubr.bf16.gmra.mxu0 %v4135
      %v4269 = vpop.f32.mrf.mxu0
      %v4270 = vadd.f32 %v4170, %v4269
      %v4271 = vpop.f32.mrf.mxu0
      %v4272 = vpop.f32.mrf.mxu0
      %v4273 = vadd.f32 %v4170, %v4272
      %v4274 = vpop.f32.mrf.mxu0
      %4275 = vmatprep.mubr.bf16.mxu0 0
      %4276 = vmatmul.mubr.bf16.gmra.mxu0 %v4136
      %v4277 = vpop.f32.mrf.mxu0
      %v4278 = vadd.f32 %v4170, %v4277
      %v4279 = vpop.f32.mrf.mxu0
      %v4280 = vpop.f32.mrf.mxu0
      %v4281 = vadd.f32 %v4170, %v4280
      %v4282 = vpop.f32.mrf.mxu0
      %4283 = vmatprep.mubr.bf16.mxu0 0
      %4284 = vmatmul.mubr.bf16.gmra.mxu0 %v4137
      %v4285 = vpop.f32.mrf.mxu0
      %v4286 = vadd.f32 %v4170, %v4285
      %v4287 = vpop.f32.mrf.mxu0
      %v4288 = vpop.f32.mrf.mxu0
      %v4289 = vadd.f32 %v4170, %v4288
      %v4290 = vpop.f32.mrf.mxu0
      %4291 = vmatprep.mubr.bf16.mxu0 0
      %4292 = vmatmul.mubr.bf16.gmra.mxu0 %v4138
      %v4293 = vpop.f32.mrf.mxu0
      %v4294 = vadd.f32 %v4170, %v4293
      %v4295 = vpop.f32.mrf.mxu0
      %v4296 = vpop.f32.mrf.mxu0
      %v4297 = vadd.f32 %v4170, %v4296
      %v4298 = vpop.f32.mrf.mxu0
      %4299 = vmatprep.mubr.bf16.mxu0 0
      %4300 = vmatmul.mubr.bf16.gmra.mxu0 %v4139
      %v4301 = vpop.f32.mrf.mxu0
      %v4302 = vadd.f32 %v4170, %v4301
      %v4303 = vpop.f32.mrf.mxu0
      %v4304 = vpop.f32.mrf.mxu0
      %v4305 = vadd.f32 %v4170, %v4304
      %v4306 = vpop.f32.mrf.mxu0
      %4307 = vmatprep.mubr.bf16.mxu0 0
      %4308 = vmatmul.mubr.bf16.gmra.mxu0 %v4140
      %v4309 = vpop.f32.mrf.mxu0
      %v4310 = vadd.f32 %v4170, %v4309
      %v4311 = vpop.f32.mrf.mxu0
      %v4312 = vpop.f32.mrf.mxu0
      %v4313 = vadd.f32 %v4170, %v4312
      %v4314 = vpop.f32.mrf.mxu0
      %4315 = vmatprep.mubr.bf16.mxu0 0
      %4316 = vmatmul.mubr.bf16.gmra.mxu0 %v4141
      %v4317 = vpop.f32.mrf.mxu0
      %v4318 = vadd.f32 %v4170, %v4317
      %v4319 = vpop.f32.mrf.mxu0
      %v4320 = vpop.f32.mrf.mxu0
      %v4321 = vadd.f32 %v4170, %v4320
      %v4322 = vpop.f32.mrf.mxu0
      %4323 = vmatprep.mubr.bf16.mxu0 0
      %4324 = vmatmul.mubr.bf16.gmra.mxu0 %v4142
      %v4325 = vpop.f32.mrf.mxu0
      %v4326 = vadd.f32 %v4170, %v4325
      %v4327 = vpop.f32.mrf.mxu0
      %v4328 = vpop.f32.mrf.mxu0
      %v4329 = vadd.f32 %v4170, %v4328
      %v4330 = vpop.f32.mrf.mxu0
      %4331 = vmatprep.mubr.bf16.mxu0 0
      %4332 = vmatmul.mubr.bf16.gmra.mxu0 %v4143
      %v4333 = vpop.f32.mrf.mxu0
      %v4334 = vadd.f32 %v4170, %v4333
      %v4335 = vpop.f32.mrf.mxu0
      %v4336 = vpop.f32.mrf.mxu0
      %v4337 = vadd.f32 %v4170, %v4336
      %v4338 = vpop.f32.mrf.mxu0
      %4339 = vmatprep.mubr.bf16.mxu0 0
      %4340 = vmatmul.mubr.bf16.gmra.mxu0 %v4144
      %v4341 = vpop.f32.mrf.mxu0
      %v4342 = vadd.f32 %v4170, %v4341
      %v4343 = vpop.f32.mrf.mxu0
      %v4344 = vpop.f32.mrf.mxu0
      %v4345 = vadd.f32 %v4170, %v4344
      %v4346 = vpop.f32.mrf.mxu0
      %4347 = vmatprep.mubr.bf16.mxu0 0
      %4348 = vmatmul.mubr.bf16.gmra.mxu0 %v4145
      %v4349 = vpop.f32.mrf.mxu0
      %v4350 = vadd.f32 %v4170, %v4349
      %v4351 = vpop.f32.mrf.mxu0
      %v4352 = vpop.f32.mrf.mxu0
      %v4353 = vadd.f32 %v4170, %v4352
      %v4354 = vpop.f32.mrf.mxu0
      %4355 = vmatprep.mubr.bf16.mxu0 0
      %4356 = vmatmul.mubr.bf16.gmra.mxu0 %v4146
      %v4357 = vpop.f32.mrf.mxu0
      %v4358 = vadd.f32 %v4170, %v4357
      %v4359 = vpop.f32.mrf.mxu0
      %v4360 = vpop.f32.mrf.mxu0
      %v4361 = vadd.f32 %v4170, %v4360
      %v4362 = vpop.f32.mrf.mxu0
      %4363 = vmatprep.mubr.bf16.mxu0 0
      %4364 = vmatmul.mubr.bf16.gmra.mxu0 %v4147
      %v4365 = vpop.f32.mrf.mxu0
      %v4366 = vadd.f32 %v4170, %v4365
      %v4367 = vpop.f32.mrf.mxu0
      %v4368 = vpop.f32.mrf.mxu0
      %v4369 = vadd.f32 %v4170, %v4368
      %v4370 = vpop.f32.mrf.mxu0
      %4371 = vmatprep.mubr.bf16.mxu0 0
      %4372 = vmatmul.mubr.bf16.gmra.mxu0 %v4148
      %v4373 = vpop.f32.mrf.mxu0
      %v4374 = vadd.f32 %v4170, %v4373
      %v4375 = vpop.f32.mrf.mxu0
      %v4376 = vpop.f32.mrf.mxu0
      %v4377 = vadd.f32 %v4170, %v4376
      %v4378 = vpop.f32.mrf.mxu0
      %4379 = vdwg.mxu0
      %vm4380 = vcmp.eq.s32.totalorder %v2004, 8
      %v4381 = vsel %vm4380, %v3017, 0.0
      %v4382 = vsel %vm4380, %v3019, 0.0
      %v4383 = vsel %vm4380, %v3021, 0.0
      %v4384 = vsel %vm4380, %v3023, 0.0
      %v4385 = vsel %vm4380, %v3025, 0.0
      %v4386 = vsel %vm4380, %v3027, 0.0
      %v4387 = vsel %vm4380, %v3029, 0.0
      %v4388 = vsel %vm4380, %v3031, 0.0
      %v4389 = vsel %vm4380, %v3033, 0.0
      %v4390 = vsel %vm4380, %v3035, 0.0
      %v4391 = vsel %vm4380, %v3037, 0.0
      %v4392 = vsel %vm4380, %v3039, 0.0
      %v4393 = vsel %vm4380, %v3041, 0.0
      %v4394 = vsel %vm4380, %v3043, 0.0
      %v4395 = vsel %vm4380, %v3045, 0.0
      %v4396 = vsel %vm4380, %v3047, 0.0
      %v4397 = vsel %vm4380, %v3049, 0.0
      %v4398 = vsel %vm4380, %v3051, 0.0
      %v4399 = vsel %vm4380, %v3053, 0.0
      %v4400 = vsel %vm4380, %v3055, 0.0
      %v4401 = vsel %vm4380, %v3057, 0.0
      %v4402 = vsel %vm4380, %v3059, 0.0
      %v4403 = vsel %vm4380, %v3061, 0.0
      %v4404 = vsel %vm4380, %v3063, 0.0
      %v4405 = vsel %vm4380, %v3065, 0.0
      %v4406 = vsel %vm4380, %v3067, 0.0
      %v4407 = vsel %vm4380, %v3069, 0.0
      %v4408 = vsel %vm4380, %v3071, 0.0
      %v4409 = vsel %vm4380, %v3073, 0.0
      %v4410 = vsel %vm4380, %v3075, 0.0
      %v4411 = vsel %vm4380, %v3077, 0.0
      %v4412 = vsel %vm4380, %v3079, 0.0
      %v4413 = vadd.f32 %v4254, %v4381
      %v4414 = vadd.f32 %v4257, %v4382
      %v4415 = vadd.f32 %v4262, %v4383
      %v4416 = vadd.f32 %v4265, %v4384
      %v4417 = vadd.f32 %v4270, %v4385
      %v4418 = vadd.f32 %v4273, %v4386
      %v4419 = vadd.f32 %v4278, %v4387
      %v4420 = vadd.f32 %v4281, %v4388
      %v4421 = vadd.f32 %v4286, %v4389
      %v4422 = vadd.f32 %v4289, %v4390
      %v4423 = vadd.f32 %v4294, %v4391
      %v4424 = vadd.f32 %v4297, %v4392
      %v4425 = vadd.f32 %v4302, %v4393
      %v4426 = vadd.f32 %v4305, %v4394
      %v4427 = vadd.f32 %v4310, %v4395
      %v4428 = vadd.f32 %v4313, %v4396
      %v4429 = vadd.f32 %v4318, %v4397
      %v4430 = vadd.f32 %v4321, %v4398
      %v4431 = vadd.f32 %v4326, %v4399
      %v4432 = vadd.f32 %v4329, %v4400
      %v4433 = vadd.f32 %v4334, %v4401
      %v4434 = vadd.f32 %v4337, %v4402
      %v4435 = vadd.f32 %v4342, %v4403
      %v4436 = vadd.f32 %v4345, %v4404
      %v4437 = vadd.f32 %v4350, %v4405
      %v4438 = vadd.f32 %v4353, %v4406
      %v4439 = vadd.f32 %v4358, %v4407
      %v4440 = vadd.f32 %v4361, %v4408
      %v4441 = vadd.f32 %v4366, %v4409
      %v4442 = vadd.f32 %v4369, %v4410
      %v4443 = vadd.f32 %v4374, %v4411
      %v4444 = vadd.f32 %v4377, %v4412
      %4445 = vst [vmem:[%s172] sm:$0xff] %v4413
      %4446 = vst [vmem:[%s172 + $0x8] sm:$0xff] %v4414
      %4447 = vst [vmem:[%s172 + $0x10] sm:$0xff] %v4415
      %4448 = vst [vmem:[%s172 + $0x18] sm:$0xff] %v4416
      %4449 = vst [vmem:[%s172 + $0x20] sm:$0xff] %v4417
      %4450 = vst [vmem:[%s172 + $0x28] sm:$0xff] %v4418
      %4451 = vst [vmem:[%s172 + $0x30] sm:$0xff] %v4419
      %4452 = vst [vmem:[%s172 + $0x38] sm:$0xff] %v4420
      %4453 = vst [vmem:[%s172 + $0x40] sm:$0xff] %v4421
      %4454 = vst [vmem:[%s172 + $0x48] sm:$0xff] %v4422
      %4455 = vst [vmem:[%s172 + $0x50] sm:$0xff] %v4423
      %4456 = vst [vmem:[%s172 + $0x58] sm:$0xff] %v4424
      %4457 = vst [vmem:[%s172 + $0x60] sm:$0xff] %v4425
      %4458 = vst [vmem:[%s172 + $0x68] sm:$0xff] %v4426
      %4459 = vst [vmem:[%s172 + $0x70] sm:$0xff] %v4427
      %4460 = vst [vmem:[%s172 + $0x78] sm:$0xff] %v4428
      %4461 = vst [vmem:[%s172 + $0x80] sm:$0xff] %v4429
      %4462 = vst [vmem:[%s172 + $0x88] sm:$0xff] %v4430
      %4463 = vst [vmem:[%s172 + $0x90] sm:$0xff] %v4431
      %4464 = vst [vmem:[%s172 + $0x98] sm:$0xff] %v4432
      %4465 = vst [vmem:[%s172 + $0xa0] sm:$0xff] %v4433
      %4466 = vst [vmem:[%s172 + $0xa8] sm:$0xff] %v4434
      %4467 = vst [vmem:[%s172 + $0xb0] sm:$0xff] %v4435
      %4468 = vst [vmem:[%s172 + $0xb8] sm:$0xff] %v4436
      %4469 = vst [vmem:[%s172 + $0xc0] sm:$0xff] %v4437
      %4470 = vst [vmem:[%s172 + $0xc8] sm:$0xff] %v4438
      %4471 = vst [vmem:[%s172 + $0xd0] sm:$0xff] %v4439
      %4472 = vst [vmem:[%s172 + $0xd8] sm:$0xff] %v4440
      %4473 = vst [vmem:[%s172 + $0xe0] sm:$0xff] %v4441
      %4474 = vst [vmem:[%s172 + $0xe8] sm:$0xff] %v4442
      %4475 = vst [vmem:[%s172 + $0xf0] sm:$0xff] %v4443
      %4476 = vst [vmem:[%s172 + $0xf8] sm:$0xff] %v4444
      %s4477 = smul.u32 32, %s14
      %p4478 = scmp.lt.s32.totalorder %s4477, 63
      %s4479 = scalar_select %p4478, %s4477, 63
      %s4480 = smul.addr %s4479, 8
      %s4481 = scalar_lea.vmem %s3, %s4480
      // Predicated region
      $region33: #{vae_forward.1} parent=31 // pred_check
        %p4482 = pneg %p100
      $region34: #{vae_forward.1} parent=31 // pred_check_branch
        %4484 = sbr.rel (%p4482) target = $region36
      $region35: #{vae_forward.1} parent=31 // pred_region
        %s4485 = smul.u32 32, %s14
      $region36: #{vae_forward.1} parent=31 // pred_fallthru
        _
    $region32: #{vae_forward.1} parent=5 // pred_fallthru
      _
    %p4486 = scmp.le.s32.totalorder 2, %s9
    // Predicated region
    $region37: #{vae_forward.1} parent=5 // pred_check
      %p4487 = pneg %p4486
    $region38: #{vae_forward.1} parent=5 // pred_check_branch
      %4489 = sbr.rel (%p4487) target = $region40
    $region39: #{vae_forward.1} parent=5 // pred_region
      %s4490 = ssub.s32 %s9, 2
      // Predicated region
      $region41: #{vae_forward.1} parent=39 // pred_check
        %p4491 = pneg %p106
      $region42: #{vae_forward.1} parent=39 // pred_check_branch
        %4493 = sbr.rel (%p4491) target = $region44
      $region43: #{vae_forward.1} parent=39 // pred_region
        %s4494 = smul.u32 32, %s15
        %p4495 = scmp.lt.s32.totalorder %s4494, 63
        %s4496 = scalar_select %p4495, %s4494, 63
        %s4497 = smul.addr %s4496, 8
        %s4498 = scalar_lea.vmem %s3, %s4497
      $region44: #{vae_forward.1} parent=39 // pred_fallthru
        _
    $region40: #{vae_forward.1} parent=5 // pred_fallthru
      _
  $region6: #{vae_forward.1} parent=0 // loop_footer
    %s13 = sadd.s32 1, %s9
  $region7: #{vae_forward.1} parent=0 // loop_footer_branch
    %8 = sbr.rel target = $region3
  $region8: #{vae_forward.1} parent=0 // loop_exit
    _

</llo_original>
